<compile_context>
chip_gen: v6e
topology: v6e:2x2x1
jax: 0.10.0
libtpu: 0.0.40
codegen_flags: <defaults>
</compile_context>

<pallas_src>
import functools
import math

import jax
import jax.numpy as jnp
from jax.experimental import pallas as pl
from jax.experimental.pallas import tpu as pltpu


# ------------------------------ fused kernel --------------------------------

def _fused_kernel(tgt_ref, lk_ref, lv_ref, ln_g_ref, ln_b_ref,
                  wq_ref, wk_ref, wv_ref, bq_ref, bk_ref, bv_ref,
                  wo_ref, bo_ref, out_ref, *, nhead, eps):
    Bt, T, d_model = tgt_ref.shape
    head_dim = d_model // nhead

    x3 = tgt_ref[...].astype(jnp.float32)                # (Bt, T, D)
    x = x3.reshape(Bt * T, d_model)                       # tile-aligned merge (free)

    # ---- LayerNorm (f32 statistics) ----
    mean = jnp.mean(x, axis=-1, keepdims=True)
    xc = x - mean
    var = jnp.mean(xc * xc, axis=-1, keepdims=True)
    xn = (xc * jax.lax.rsqrt(var + eps)) * ln_g_ref[...] + ln_b_ref[...]
    xn_bf = xn.astype(jnp.bfloat16)

    # ---- Q/K/V projections (bf16 weights pre-cast & pre-split; scale in wq/bq) ----
    q = (jnp.dot(xn_bf, wq_ref[...], preferred_element_type=jnp.float32)
         + bq_ref[...]).reshape(Bt, T, d_model)
    k = (jnp.dot(xn_bf, wk_ref[...], preferred_element_type=jnp.float32)
         + bk_ref[...]).reshape(Bt, T, d_model)
    v = (jnp.dot(xn_bf, wv_ref[...], preferred_element_type=jnp.float32)
         + bv_ref[...]).reshape(Bt, T, d_model)

    lk = lk_ref[...]                                      # (Bt, 1, D) f32
    lv = lv_ref[...]                                      # (Bt, 1, D) f32

    # additive causal mask for sequence keys; the latent key (separate score column)
    # is always visible => bottom-right aligned mask with Skv = T + 1.
    qi = jax.lax.broadcasted_iota(jnp.int32, (T, T), 0)
    kj = jax.lax.broadcasted_iota(jnp.int32, (T, T), 1)
    neg = jnp.where(kj <= qi, 0.0, -1e30)[None, :, :]     # (1, T, T)

    lane = jax.lax.broadcasted_iota(jnp.int32, (1, 1, d_model), 2)

    o = jnp.zeros((Bt, T, d_model), jnp.float32)
    for h in range(nhead):                                # unrolled; all ops lane-dense
        mh = jnp.logical_and(lane >= h * head_dim,
                             lane < (h + 1) * head_dim).astype(jnp.float32)
        qh = q * mh                                       # zero other heads' lanes

        s = jnp.einsum('btd,bsd->bts', qh, k,
                       preferred_element_type=jnp.float32) + neg        # (Bt, T, T)
        s_lat = jnp.sum(qh * lk, axis=-1, keepdims=True)                # (Bt, T, 1)

        m = jnp.maximum(jnp.max(s, axis=-1, keepdims=True), s_lat)
        p = jnp.exp(s - m)                # masked entries underflow to exactly 0
        p_lat = jnp.exp(s_lat - m)
        inv = pl.reciprocal(jnp.sum(p, axis=-1, keepdims=True) + p_lat, approx=True)

        oh = jnp.einsum('bts,bsd->btd', p, v,
                        preferred_element_type=jnp.float32) + p_lat * lv
        o = o + oh * inv * mh             # keep only this head's lanes, accumulate

    # ---- output projection + residual (single lane-dense store) ----
    y_bf = o.reshape(Bt * T, d_model).astype(jnp.bfloat16)
    out = jnp.dot(y_bf, wo_ref[...], preferred_element_type=jnp.float32) + bo_ref[...]
    out_ref[...] = (x + out).reshape(Bt, T, d_model).astype(out_ref.dtype)


# ------------------------------ wrapper --------------------------------------

def flash_attention_latent_injection(tgt, latent, params, nhead, eps=1e-5,
                                     batch_tile=None):
    """tgt: (B, T, d_model), latent: (B, latent_dim) -> (B, T, d_model)."""
    B, T, d_model = tgt.shape
    head_dim = d_model // nhead
    scale = 1.0 / math.sqrt(head_dim)

    if batch_tile is None:
        batch_tile = min(B, 8)
    assert B % batch_tile == 0, "B must be divisible by batch_tile"

    # Latent K/V projection hoisted out of the kernel (tiny per-row GEMV).
    lk = (latent @ params["lk_w"] + params["lk_b"]).reshape(B, 1, d_model)
    lv = (latent @ params["lv_w"] + params["lv_b"]).reshape(B, 1, d_model)

    # Split fused c_attn into lane-0-aligned q/k/v slabs, fold softmax scale into q,
    # pre-cast MXU weights to bf16 (halves their DMA bytes / VMEM residency).
    wq = (params["c_attn_w"][:, :d_model] * scale).astype(jnp.bfloat16)
    wk = params["c_attn_w"][:, d_model:2 * d_model].astype(jnp.bfloat16)
    wv = params["c_attn_w"][:, 2 * d_model:].astype(jnp.bfloat16)
    bq = (params["c_attn_b"][:d_model] * scale).reshape(1, d_model)
    bk = params["c_attn_b"][d_model:2 * d_model].reshape(1, d_model)
    bv = params["c_attn_b"][2 * d_model:].reshape(1, d_model)
    wo = params["c_proj_w"].astype(jnp.bfloat16)
    bo = params["c_proj_b"].reshape(1, d_model)
    ln_g = params["ln_g"].reshape(1, d_model)
    ln_b = params["ln_b"].reshape(1, d_model)

    def const2d(shape):
        return pl.BlockSpec(shape, lambda i: (0, 0))

    kernel = functools.partial(_fused_kernel, nhead=nhead, eps=eps)

    return pl.pallas_call(
        kernel,
        out_shape=jax.ShapeDtypeStruct((B, T, d_model), jnp.float32),
        grid=(B // batch_tile,),
        in_specs=[
            pl.BlockSpec((batch_tile, T, d_model), lambda i: (i, 0, 0)),   # tgt
            pl.BlockSpec((batch_tile, 1, d_model), lambda i: (i, 0, 0)),   # latent K
            pl.BlockSpec((batch_tile, 1, d_model), lambda i: (i, 0, 0)),   # latent V
            const2d((1, d_model)), const2d((1, d_model)),                  # LN gamma/beta
            const2d((d_model, d_model)),                                   # wq (bf16)
            const2d((d_model, d_model)),                                   # wk (bf16)
            const2d((d_model, d_model)),                                   # wv (bf16)
            const2d((1, d_model)), const2d((1, d_model)), const2d((1, d_model)),  # bq/bk/bv
            const2d((d_model, d_model)),                                   # wo (bf16)
            const2d((1, d_model)),                                         # bo
        ],
        out_specs=pl.BlockSpec((batch_tile, T, d_model), lambda i: (i, 0, 0)),
        compiler_params=pltpu.CompilerParams(
            dimension_semantics=("parallel",),           # batch-tile axis across TCs
            vmem_limit_bytes=32 * 1024 * 1024),
    )(tgt, lk, lv, ln_g, ln_b, wq, wk, wv, bq, bk, bv, wo, bo)


# --------------------------- params & reference ------------------------------

def init_params(key, d_model, nhead, latent_dim):
    """Deterministic synthetic parameters (torch.nn.Linear-style scaling).
    Weights stored as [in_features, out_features] so y = x @ W + b."""
    ks = jax.random.split(key, 8)

    def lin(kw, kb, fan_in, fan_out):
        bound = 1.0 / math.sqrt(fan_in)
        w = jax.random.uniform(kw, (fan_in, fan_out), jnp.float32, -bound, bound)
        b = jax.random.uniform(kb, (fan_out,), jnp.float32, -bound, bound)
        return w, b

    p = {}
    p["c_attn_w"], p["c_attn_b"] = lin(ks[0], ks[1], d_model, 3 * d_model)
    p["c_proj_w"], p["c_proj_b"] = lin(ks[2], ks[3], d_model, d_model)
    p["lk_w"], p["lk_b"] = lin(ks[4], ks[5], latent_dim, d_model)
    p["lv_w"], p["lv_b"] = lin(ks[6], ks[7], latent_dim, d_model)
    p["ln_g"] = jnp.ones((d_model,), jnp.float32)
    p["ln_b"] = jnp.zeros((d_model,), jnp.float32)
    return p


def reference_forward(tgt, latent, params, nhead, eps=1e-5):
    """Pure-JAX reference of the norm_first=True forward (f32 everywhere)."""
    B, T, d_model = tgt.shape
    head_dim = d_model // nhead
    mean = jnp.mean(tgt, axis=-1, keepdims=True)
    var = jnp.mean((tgt - mean) ** 2, axis=-1, keepdims=True)
    xn = (tgt - mean) / jnp.sqrt(var + eps) * params["ln_g"] + params["ln_b"]
    qkv = (xn @ params["c_attn_w"] + params["c_attn_b"]).reshape(B, T, 3, nhead, head_dim)
    q, k, v = qkv[:, :, 0], qkv[:, :, 1], qkv[:, :, 2]
    lk = (latent @ params["lk_w"] + params["lk_b"]).reshape(B, 1, nhead, head_dim)
    lv = (latent @ params["lv_w"] + params["lv_b"]).reshape(B, 1, nhead, head_dim)
    k = jnp.concatenate([lk, k], axis=1)
    v = jnp.concatenate([lv, v], axis=1)
    q, k, v = (t.transpose(0, 2, 1, 3) for t in (q, k, v))          # (B,H,·,D)
    s = jnp.einsum("bhtd,bhsd->bhts", q, k) / math.sqrt(head_dim)
    S = T + 1
    mask = jnp.arange(S)[None, :] <= jnp.arange(T)[:, None] + (S - T)
    s = jnp.where(mask, s, -jnp.inf)
    p = jax.nn.softmax(s, axis=-1)
    y = jnp.einsum("bhts,bhsd->bhtd", p, v).transpose(0, 2, 1, 3).reshape(B, T, d_model)
    return tgt + y @ params["c_proj_w"] + params["c_proj_b"]


# ---------------------------------- main -------------------------------------

if __name__ == "__main__":
    # d_model = 128 keeps every tensor lane-dense (128-lane stores, no vst.msk);
    # batch_tile = 4 -> grid = (2,), 4 rows per step, one step per v7x TensorCore.
    B, T, d_model, nhead, latent_dim = 8, 8, 128, 4, 64

    key = jax.random.PRNGKey(0)
    k_tgt, k_lat, k_par = jax.random.split(key, 3)

    tgt = jax.random.normal(k_tgt, (B, T, d_model), dtype=jnp.float32)
    latent = jax.random.normal(k_lat, (B, latent_dim), dtype=jnp.float32)
    params = init_params(k_par, d_model, nhead, latent_dim)

    fwd = jax.jit(functools.partial(flash_attention_latent_injection,
                                    nhead=nhead, batch_tile=4))
    out = jax.block_until_ready(fwd(tgt, latent, params))

    assert out.shape == (B, T, d_model)
    assert not bool(jnp.isnan(out).any())

    ref = reference_forward(tgt, latent, params, nhead)
    max_err = float(jnp.max(jnp.abs(out - ref)))
    # bf16 MXU weights + approx reciprocal => small, bounded deviation from f32 ref.
    assert max_err < 0.1, f"max abs error vs reference: {max_err}"

    print("KERNEL_OK")
</pallas_src>

<mosaic_0001>
module attributes {stable_mosaic.version = 11 : i64} {
  func.func @_fused_kernel(%arg0: i32, %arg1: memref<4x8x128xf32, #tpu.memory_space<vmem>>, %arg2: memref<4x1x128xf32, #tpu.memory_space<vmem>>, %arg3: memref<4x1x128xf32, #tpu.memory_space<vmem>>, %arg4: memref<1x128xf32, #tpu.memory_space<vmem>>, %arg5: memref<1x128xf32, #tpu.memory_space<vmem>>, %arg6: memref<128x128xbf16, #tpu.memory_space<vmem>>, %arg7: memref<128x128xbf16, #tpu.memory_space<vmem>>, %arg8: memref<128x128xbf16, #tpu.memory_space<vmem>>, %arg9: memref<1x128xf32, #tpu.memory_space<vmem>>, %arg10: memref<1x128xf32, #tpu.memory_space<vmem>>, %arg11: memref<1x128xf32, #tpu.memory_space<vmem>>, %arg12: memref<128x128xbf16, #tpu.memory_space<vmem>>, %arg13: memref<1x128xf32, #tpu.memory_space<vmem>>, %arg14: memref<4x8x128xf32, #tpu.memory_space<vmem>>) attributes {dimension_semantics = [#tpu.dimension_semantics<parallel>], iteration_bounds = array<i64: 2>, scalar_prefetch = 0 : i64, scratch_operands = 0 : i64, tpu.core_type = #tpu.core_type<tc>, window_params = [{transform_indices = @transform_0, window_bounds = array<i64: 4, 8, 128>}, {transform_indices = @transform_1, window_bounds = array<i64: 4, 1, 128>}, {transform_indices = @transform_2, window_bounds = array<i64: 4, 1, 128>}, {pipeline_mode = #tpu.pipeline_mode<synchronous>, transform_indices = @transform_3, window_bounds = array<i64: 1, 128>}, {pipeline_mode = #tpu.pipeline_mode<synchronous>, transform_indices = @transform_4, window_bounds = array<i64: 1, 128>}, {pipeline_mode = #tpu.pipeline_mode<synchronous>, transform_indices = @transform_5, window_bounds = array<i64: 128, 128>}, {pipeline_mode = #tpu.pipeline_mode<synchronous>, transform_indices = @transform_6, window_bounds = array<i64: 128, 128>}, {pipeline_mode = #tpu.pipeline_mode<synchronous>, transform_indices = @transform_7, window_bounds = array<i64: 128, 128>}, {pipeline_mode = #tpu.pipeline_mode<synchronous>, transform_indices = @transform_8, window_bounds = array<i64: 1, 128>}, {pipeline_mode = #tpu.pipeline_mode<synchronous>, transform_indices = @transform_9, window_bounds = array<i64: 1, 128>}, {pipeline_mode = #tpu.pipeline_mode<synchronous>, transform_indices = @transform_10, window_bounds = array<i64: 1, 128>}, {pipeline_mode = #tpu.pipeline_mode<synchronous>, transform_indices = @transform_11, window_bounds = array<i64: 128, 128>}, {pipeline_mode = #tpu.pipeline_mode<synchronous>, transform_indices = @transform_12, window_bounds = array<i64: 1, 128>}, {transform_indices = @transform_13, window_bounds = array<i64: 4, 8, 128>}]} {
    %c0 = arith.constant 0 : index
    %c0_0 = arith.constant 0 : index
    %c0_1 = arith.constant 0 : index
    %0 = vector.load %arg1[%c0, %c0_0, %c0_1] : memref<4x8x128xf32, #tpu.memory_space<vmem>>, vector<4x8x128xf32>
    %1 = vector.shape_cast %0 : vector<4x8x128xf32> to vector<32x128xf32>
    %cst = arith.constant dense<0.000000e+00> : vector<32xf32>
    %2 = vector.multi_reduction <add>, %1, %cst [1] : vector<32x128xf32> to vector<32xf32>
    %3 = vector.shape_cast %2 : vector<32xf32> to vector<32x1xf32>
    %cst_2 = arith.constant 1.280000e+02 : f32
    %4 = vector.broadcast %cst_2 : f32 to vector<32x1xf32>
    %5 = arith.divf %3, %4 : vector<32x1xf32>
    %6 = vector.broadcast %5 : vector<32x1xf32> to vector<32x128xf32>
    %7 = arith.subf %1, %6 : vector<32x128xf32>
    %8 = arith.mulf %7, %7 : vector<32x128xf32>
    %cst_3 = arith.constant dense<0.000000e+00> : vector<32xf32>
    %9 = vector.multi_reduction <add>, %8, %cst_3 [1] : vector<32x128xf32> to vector<32xf32>
    %10 = vector.shape_cast %9 : vector<32xf32> to vector<32x1xf32>
    %cst_4 = arith.constant 1.280000e+02 : f32
    %11 = vector.broadcast %cst_4 : f32 to vector<32x1xf32>
    %12 = arith.divf %10, %11 : vector<32x1xf32>
    %cst_5 = arith.constant 9.99999974E-6 : f32
    %13 = vector.broadcast %cst_5 : f32 to vector<32x1xf32>
    %14 = arith.addf %12, %13 : vector<32x1xf32>
    %15 = math.rsqrt %14 : vector<32x1xf32>
    %16 = vector.broadcast %15 : vector<32x1xf32> to vector<32x128xf32>
    %17 = arith.mulf %7, %16 : vector<32x128xf32>
    %c0_6 = arith.constant 0 : index
    %c0_7 = arith.constant 0 : index
    %18 = vector.load %arg4[%c0_6, %c0_7] : memref<1x128xf32, #tpu.memory_space<vmem>>, vector<1x128xf32>
    %19 = vector.broadcast %18 : vector<1x128xf32> to vector<32x128xf32>
    %20 = arith.mulf %17, %19 : vector<32x128xf32>
    %c0_8 = arith.constant 0 : index
    %c0_9 = arith.constant 0 : index
    %21 = vector.load %arg5[%c0_8, %c0_9] : memref<1x128xf32, #tpu.memory_space<vmem>>, vector<1x128xf32>
    %22 = vector.broadcast %21 : vector<1x128xf32> to vector<32x128xf32>
    %23 = arith.addf %20, %22 : vector<32x128xf32>
    %24 = arith.truncf %23 : vector<32x128xf32> to vector<32x128xbf16>
    %c0_10 = arith.constant 0 : index
    %c0_11 = arith.constant 0 : index
    %25 = vector.load %arg6[%c0_10, %c0_11] : memref<128x128xbf16, #tpu.memory_space<vmem>>, vector<128x128xbf16>
    %cst_12 = arith.constant dense<0.000000e+00> : vector<32x128xf32>
    %26 = tpu.matmul %24, %25, %cst_12 {dimension_numbers = #tpu.dot_dimension_numbers<[1], [0], [0], [1], [0, 0, 1, 1], [], []>} : vector<32x128xbf16>, vector<128x128xbf16>, vector<32x128xf32> -> vector<32x128xf32>
    %c0_13 = arith.constant 0 : index
    %c0_14 = arith.constant 0 : index
    %27 = vector.load %arg9[%c0_13, %c0_14] : memref<1x128xf32, #tpu.memory_space<vmem>>, vector<1x128xf32>
    %28 = vector.broadcast %27 : vector<1x128xf32> to vector<32x128xf32>
    %29 = arith.addf %26, %28 : vector<32x128xf32>
    %30 = vector.shape_cast %29 : vector<32x128xf32> to vector<4x8x128xf32>
    %c0_15 = arith.constant 0 : index
    %c0_16 = arith.constant 0 : index
    %31 = vector.load %arg7[%c0_15, %c0_16] : memref<128x128xbf16, #tpu.memory_space<vmem>>, vector<128x128xbf16>
    %cst_17 = arith.constant dense<0.000000e+00> : vector<32x128xf32>
    %32 = tpu.matmul %24, %31, %cst_17 {dimension_numbers = #tpu.dot_dimension_numbers<[1], [0], [0], [1], [0, 0, 1, 1], [], []>} : vector<32x128xbf16>, vector<128x128xbf16>, vector<32x128xf32> -> vector<32x128xf32>
    %c0_18 = arith.constant 0 : index
    %c0_19 = arith.constant 0 : index
    %33 = vector.load %arg10[%c0_18, %c0_19] : memref<1x128xf32, #tpu.memory_space<vmem>>, vector<1x128xf32>
    %34 = vector.broadcast %33 : vector<1x128xf32> to vector<32x128xf32>
    %35 = arith.addf %32, %34 : vector<32x128xf32>
    %36 = vector.shape_cast %35 : vector<32x128xf32> to vector<4x8x128xf32>
    %c0_20 = arith.constant 0 : index
    %c0_21 = arith.constant 0 : index
    %37 = vector.load %arg8[%c0_20, %c0_21] : memref<128x128xbf16, #tpu.memory_space<vmem>>, vector<128x128xbf16>
    %cst_22 = arith.constant dense<0.000000e+00> : vector<32x128xf32>
    %38 = tpu.matmul %24, %37, %cst_22 {dimension_numbers = #tpu.dot_dimension_numbers<[1], [0], [0], [1], [0, 0, 1, 1], [], []>} : vector<32x128xbf16>, vector<128x128xbf16>, vector<32x128xf32> -> vector<32x128xf32>
    %c0_23 = arith.constant 0 : index
    %c0_24 = arith.constant 0 : index
    %39 = vector.load %arg11[%c0_23, %c0_24] : memref<1x128xf32, #tpu.memory_space<vmem>>, vector<1x128xf32>
    %40 = vector.broadcast %39 : vector<1x128xf32> to vector<32x128xf32>
    %41 = arith.addf %38, %40 : vector<32x128xf32>
    %42 = vector.shape_cast %41 : vector<32x128xf32> to vector<4x8x128xf32>
    %c0_25 = arith.constant 0 : index
    %c0_26 = arith.constant 0 : index
    %c0_27 = arith.constant 0 : index
    %43 = vector.load %arg2[%c0_25, %c0_26, %c0_27] : memref<4x1x128xf32, #tpu.memory_space<vmem>>, vector<4x1x128xf32>
    %c0_28 = arith.constant 0 : index
    %c0_29 = arith.constant 0 : index
    %c0_30 = arith.constant 0 : index
    %44 = vector.load %arg3[%c0_28, %c0_29, %c0_30] : memref<4x1x128xf32, #tpu.memory_space<vmem>>, vector<4x1x128xf32>
    %45 = tpu.iota {dimensions = array<i32: 0>} : vector<8x8xi32>
    %46 = tpu.iota {dimensions = array<i32: 1>} : vector<8x8xi32>
    %47 = arith.cmpi sle, %46, %45 : vector<8x8xi32>
    %cst_31 = arith.constant 0.000000e+00 : f32
    %cst_32 = arith.constant -1.000000e+30 : f32
    %48 = vector.broadcast %cst_31 : f32 to vector<8x8xf32>
    %49 = vector.broadcast %cst_32 : f32 to vector<8x8xf32>
    %50 = arith.select %47, %48, %49 : vector<8x8xi1>, vector<8x8xf32>
    %51 = vector.shape_cast %50 : vector<8x8xf32> to vector<1x8x8xf32>
    %52 = tpu.iota {dimensions = array<i32: 2>} : vector<1x1x128xi32>
    %cst_33 = arith.constant 0.000000e+00 : f32
    %53 = vector.broadcast %cst_33 : f32 to vector<4x8x128xf32>
    %c0_i32 = arith.constant 0 : i32
    %54 = vector.broadcast %c0_i32 : i32 to vector<1x1x128xi32>
    %55 = arith.cmpi sge, %52, %54 : vector<1x1x128xi32>
    %c32_i32 = arith.constant 32 : i32
    %56 = vector.broadcast %c32_i32 : i32 to vector<1x1x128xi32>
    %57 = arith.cmpi slt, %52, %56 : vector<1x1x128xi32>
    %58 = arith.andi %55, %57 : vector<1x1x128xi1>
    %59 = arith.extui %58 : vector<1x1x128xi1> to vector<1x1x128xi32>
    %60 = arith.sitofp %59 : vector<1x1x128xi32> to vector<1x1x128xf32>
    %61 = vector.broadcast %60 : vector<1x1x128xf32> to vector<4x8x128xf32>
    %62 = arith.mulf %30, %61 : vector<4x8x128xf32>
    "tpu.trace_start"() <{level = 10 : i32, message = "btd,bsd->bts"}> : () -> ()
    %cst_34 = arith.constant dense<0.000000e+00> : vector<4x8x8xf32>
    %63 = tpu.matmul %62, %36, %cst_34 {dimension_numbers = #tpu.dot_dimension_numbers<[2], [2], [1], [1], [0, 0, 0, 1, 1, 1], [0], [0]>} : vector<4x8x128xf32>, vector<4x8x128xf32>, vector<4x8x8xf32> -> vector<4x8x8xf32>
    "tpu.trace_stop"() : () -> ()
    %64 = vector.broadcast %51 : vector<1x8x8xf32> to vector<4x8x8xf32>
    %65 = arith.addf %63, %64 : vector<4x8x8xf32>
    %66 = vector.broadcast %43 : vector<4x1x128xf32> to vector<4x8x128xf32>
    %67 = arith.mulf %62, %66 : vector<4x8x128xf32>
    %cst_35 = arith.constant dense<0.000000e+00> : vector<4x8xf32>
    %68 = vector.multi_reduction <add>, %67, %cst_35 [2] : vector<4x8x128xf32> to vector<4x8xf32>
    %69 = vector.shape_cast %68 : vector<4x8xf32> to vector<4x8x1xf32>
    %cst_36 = arith.constant dense<0xFF800000> : vector<4x8xf32>
    %70 = vector.multi_reduction <maximumf>, %65, %cst_36 [2] : vector<4x8x8xf32> to vector<4x8xf32>
    %71 = vector.shape_cast %70 : vector<4x8xf32> to vector<4x8x1xf32>
    %72 = arith.maximumf %71, %69 : vector<4x8x1xf32>
    %73 = vector.broadcast %72 : vector<4x8x1xf32> to vector<4x8x8xf32>
    %74 = arith.subf %65, %73 : vector<4x8x8xf32>
    %75 = math.exp %74 : vector<4x8x8xf32>
    %76 = arith.subf %69, %72 : vector<4x8x1xf32>
    %77 = math.exp %76 : vector<4x8x1xf32>
    %cst_37 = arith.constant dense<0.000000e+00> : vector<4x8xf32>
    %78 = vector.multi_reduction <add>, %75, %cst_37 [2] : vector<4x8x8xf32> to vector<4x8xf32>
    %79 = vector.shape_cast %78 : vector<4x8xf32> to vector<4x8x1xf32>
    %80 = arith.addf %79, %77 : vector<4x8x1xf32>
    %81 = tpu.reciprocal %80 {approx = true} : vector<4x8x1xf32> -> vector<4x8x1xf32>
    "tpu.trace_start"() <{level = 10 : i32, message = "bts,bsd->btd"}> : () -> ()
    %cst_38 = arith.constant dense<0.000000e+00> : vector<4x8x128xf32>
    %82 = tpu.matmul %75, %42, %cst_38 {dimension_numbers = #tpu.dot_dimension_numbers<[2], [1], [1], [2], [0, 0, 0, 1, 1, 2], [0], [0]>} : vector<4x8x8xf32>, vector<4x8x128xf32>, vector<4x8x128xf32> -> vector<4x8x128xf32>
    "tpu.trace_stop"() : () -> ()
    %83 = vector.broadcast %77 : vector<4x8x1xf32> to vector<4x8x128xf32>
    %84 = vector.broadcast %44 : vector<4x1x128xf32> to vector<4x8x128xf32>
    %85 = arith.mulf %83, %84 : vector<4x8x128xf32>
    %86 = arith.addf %82, %85 : vector<4x8x128xf32>
    %87 = vector.broadcast %81 : vector<4x8x1xf32> to vector<4x8x128xf32>
    %88 = arith.mulf %86, %87 : vector<4x8x128xf32>
    %89 = vector.broadcast %60 : vector<1x1x128xf32> to vector<4x8x128xf32>
    %90 = arith.mulf %88, %89 : vector<4x8x128xf32>
    %91 = arith.addf %53, %90 : vector<4x8x128xf32>
    %c32_i32_39 = arith.constant 32 : i32
    %92 = vector.broadcast %c32_i32_39 : i32 to vector<1x1x128xi32>
    %93 = arith.cmpi sge, %52, %92 : vector<1x1x128xi32>
    %c64_i32 = arith.constant 64 : i32
    %94 = vector.broadcast %c64_i32 : i32 to vector<1x1x128xi32>
    %95 = arith.cmpi slt, %52, %94 : vector<1x1x128xi32>
    %96 = arith.andi %93, %95 : vector<1x1x128xi1>
    %97 = arith.extui %96 : vector<1x1x128xi1> to vector<1x1x128xi32>
    %98 = arith.sitofp %97 : vector<1x1x128xi32> to vector<1x1x128xf32>
    %99 = vector.broadcast %98 : vector<1x1x128xf32> to vector<4x8x128xf32>
    %100 = arith.mulf %30, %99 : vector<4x8x128xf32>
    "tpu.trace_start"() <{level = 10 : i32, message = "btd,bsd->bts"}> : () -> ()
    %cst_40 = arith.constant dense<0.000000e+00> : vector<4x8x8xf32>
    %101 = tpu.matmul %100, %36, %cst_40 {dimension_numbers = #tpu.dot_dimension_numbers<[2], [2], [1], [1], [0, 0, 0, 1, 1, 1], [0], [0]>} : vector<4x8x128xf32>, vector<4x8x128xf32>, vector<4x8x8xf32> -> vector<4x8x8xf32>
    "tpu.trace_stop"() : () -> ()
    %102 = vector.broadcast %51 : vector<1x8x8xf32> to vector<4x8x8xf32>
    %103 = arith.addf %101, %102 : vector<4x8x8xf32>
    %104 = vector.broadcast %43 : vector<4x1x128xf32> to vector<4x8x128xf32>
    %105 = arith.mulf %100, %104 : vector<4x8x128xf32>
    %cst_41 = arith.constant dense<0.000000e+00> : vector<4x8xf32>
    %106 = vector.multi_reduction <add>, %105, %cst_41 [2] : vector<4x8x128xf32> to vector<4x8xf32>
    %107 = vector.shape_cast %106 : vector<4x8xf32> to vector<4x8x1xf32>
    %cst_42 = arith.constant dense<0xFF800000> : vector<4x8xf32>
    %108 = vector.multi_reduction <maximumf>, %103, %cst_42 [2] : vector<4x8x8xf32> to vector<4x8xf32>
    %109 = vector.shape_cast %108 : vector<4x8xf32> to vector<4x8x1xf32>
    %110 = arith.maximumf %109, %107 : vector<4x8x1xf32>
    %111 = vector.broadcast %110 : vector<4x8x1xf32> to vector<4x8x8xf32>
    %112 = arith.subf %103, %111 : vector<4x8x8xf32>
    %113 = math.exp %112 : vector<4x8x8xf32>
    %114 = arith.subf %107, %110 : vector<4x8x1xf32>
    %115 = math.exp %114 : vector<4x8x1xf32>
    %cst_43 = arith.constant dense<0.000000e+00> : vector<4x8xf32>
    %116 = vector.multi_reduction <add>, %113, %cst_43 [2] : vector<4x8x8xf32> to vector<4x8xf32>
    %117 = vector.shape_cast %116 : vector<4x8xf32> to vector<4x8x1xf32>
    %118 = arith.addf %117, %115 : vector<4x8x1xf32>
    %119 = tpu.reciprocal %118 {approx = true} : vector<4x8x1xf32> -> vector<4x8x1xf32>
    "tpu.trace_start"() <{level = 10 : i32, message = "bts,bsd->btd"}> : () -> ()
    %cst_44 = arith.constant dense<0.000000e+00> : vector<4x8x128xf32>
    %120 = tpu.matmul %113, %42, %cst_44 {dimension_numbers = #tpu.dot_dimension_numbers<[2], [1], [1], [2], [0, 0, 0, 1, 1, 2], [0], [0]>} : vector<4x8x8xf32>, vector<4x8x128xf32>, vector<4x8x128xf32> -> vector<4x8x128xf32>
    "tpu.trace_stop"() : () -> ()
    %121 = vector.broadcast %115 : vector<4x8x1xf32> to vector<4x8x128xf32>
    %122 = vector.broadcast %44 : vector<4x1x128xf32> to vector<4x8x128xf32>
    %123 = arith.mulf %121, %122 : vector<4x8x128xf32>
    %124 = arith.addf %120, %123 : vector<4x8x128xf32>
    %125 = vector.broadcast %119 : vector<4x8x1xf32> to vector<4x8x128xf32>
    %126 = arith.mulf %124, %125 : vector<4x8x128xf32>
    %127 = vector.broadcast %98 : vector<1x1x128xf32> to vector<4x8x128xf32>
    %128 = arith.mulf %126, %127 : vector<4x8x128xf32>
    %129 = arith.addf %91, %128 : vector<4x8x128xf32>
    %c64_i32_45 = arith.constant 64 : i32
    %130 = vector.broadcast %c64_i32_45 : i32 to vector<1x1x128xi32>
    %131 = arith.cmpi sge, %52, %130 : vector<1x1x128xi32>
    %c96_i32 = arith.constant 96 : i32
    %132 = vector.broadcast %c96_i32 : i32 to vector<1x1x128xi32>
    %133 = arith.cmpi slt, %52, %132 : vector<1x1x128xi32>
    %134 = arith.andi %131, %133 : vector<1x1x128xi1>
    %135 = arith.extui %134 : vector<1x1x128xi1> to vector<1x1x128xi32>
    %136 = arith.sitofp %135 : vector<1x1x128xi32> to vector<1x1x128xf32>
    %137 = vector.broadcast %136 : vector<1x1x128xf32> to vector<4x8x128xf32>
    %138 = arith.mulf %30, %137 : vector<4x8x128xf32>
    "tpu.trace_start"() <{level = 10 : i32, message = "btd,bsd->bts"}> : () -> ()
    %cst_46 = arith.constant dense<0.000000e+00> : vector<4x8x8xf32>
    %139 = tpu.matmul %138, %36, %cst_46 {dimension_numbers = #tpu.dot_dimension_numbers<[2], [2], [1], [1], [0, 0, 0, 1, 1, 1], [0], [0]>} : vector<4x8x128xf32>, vector<4x8x128xf32>, vector<4x8x8xf32> -> vector<4x8x8xf32>
    "tpu.trace_stop"() : () -> ()
    %140 = vector.broadcast %51 : vector<1x8x8xf32> to vector<4x8x8xf32>
    %141 = arith.addf %139, %140 : vector<4x8x8xf32>
    %142 = vector.broadcast %43 : vector<4x1x128xf32> to vector<4x8x128xf32>
    %143 = arith.mulf %138, %142 : vector<4x8x128xf32>
    %cst_47 = arith.constant dense<0.000000e+00> : vector<4x8xf32>
    %144 = vector.multi_reduction <add>, %143, %cst_47 [2] : vector<4x8x128xf32> to vector<4x8xf32>
    %145 = vector.shape_cast %144 : vector<4x8xf32> to vector<4x8x1xf32>
    %cst_48 = arith.constant dense<0xFF800000> : vector<4x8xf32>
    %146 = vector.multi_reduction <maximumf>, %141, %cst_48 [2] : vector<4x8x8xf32> to vector<4x8xf32>
    %147 = vector.shape_cast %146 : vector<4x8xf32> to vector<4x8x1xf32>
    %148 = arith.maximumf %147, %145 : vector<4x8x1xf32>
    %149 = vector.broadcast %148 : vector<4x8x1xf32> to vector<4x8x8xf32>
    %150 = arith.subf %141, %149 : vector<4x8x8xf32>
    %151 = math.exp %150 : vector<4x8x8xf32>
    %152 = arith.subf %145, %148 : vector<4x8x1xf32>
    %153 = math.exp %152 : vector<4x8x1xf32>
    %cst_49 = arith.constant dense<0.000000e+00> : vector<4x8xf32>
    %154 = vector.multi_reduction <add>, %151, %cst_49 [2] : vector<4x8x8xf32> to vector<4x8xf32>
    %155 = vector.shape_cast %154 : vector<4x8xf32> to vector<4x8x1xf32>
    %156 = arith.addf %155, %153 : vector<4x8x1xf32>
    %157 = tpu.reciprocal %156 {approx = true} : vector<4x8x1xf32> -> vector<4x8x1xf32>
    "tpu.trace_start"() <{level = 10 : i32, message = "bts,bsd->btd"}> : () -> ()
    %cst_50 = arith.constant dense<0.000000e+00> : vector<4x8x128xf32>
    %158 = tpu.matmul %151, %42, %cst_50 {dimension_numbers = #tpu.dot_dimension_numbers<[2], [1], [1], [2], [0, 0, 0, 1, 1, 2], [0], [0]>} : vector<4x8x8xf32>, vector<4x8x128xf32>, vector<4x8x128xf32> -> vector<4x8x128xf32>
    "tpu.trace_stop"() : () -> ()
    %159 = vector.broadcast %153 : vector<4x8x1xf32> to vector<4x8x128xf32>
    %160 = vector.broadcast %44 : vector<4x1x128xf32> to vector<4x8x128xf32>
    %161 = arith.mulf %159, %160 : vector<4x8x128xf32>
    %162 = arith.addf %158, %161 : vector<4x8x128xf32>
    %163 = vector.broadcast %157 : vector<4x8x1xf32> to vector<4x8x128xf32>
    %164 = arith.mulf %162, %163 : vector<4x8x128xf32>
    %165 = vector.broadcast %136 : vector<1x1x128xf32> to vector<4x8x128xf32>
    %166 = arith.mulf %164, %165 : vector<4x8x128xf32>
    %167 = arith.addf %129, %166 : vector<4x8x128xf32>
    %c96_i32_51 = arith.constant 96 : i32
    %168 = vector.broadcast %c96_i32_51 : i32 to vector<1x1x128xi32>
    %169 = arith.cmpi sge, %52, %168 : vector<1x1x128xi32>
    %c128_i32 = arith.constant 128 : i32
    %170 = vector.broadcast %c128_i32 : i32 to vector<1x1x128xi32>
    %171 = arith.cmpi slt, %52, %170 : vector<1x1x128xi32>
    %172 = arith.andi %169, %171 : vector<1x1x128xi1>
    %173 = arith.extui %172 : vector<1x1x128xi1> to vector<1x1x128xi32>
    %174 = arith.sitofp %173 : vector<1x1x128xi32> to vector<1x1x128xf32>
    %175 = vector.broadcast %174 : vector<1x1x128xf32> to vector<4x8x128xf32>
    %176 = arith.mulf %30, %175 : vector<4x8x128xf32>
    "tpu.trace_start"() <{level = 10 : i32, message = "btd,bsd->bts"}> : () -> ()
    %cst_52 = arith.constant dense<0.000000e+00> : vector<4x8x8xf32>
    %177 = tpu.matmul %176, %36, %cst_52 {dimension_numbers = #tpu.dot_dimension_numbers<[2], [2], [1], [1], [0, 0, 0, 1, 1, 1], [0], [0]>} : vector<4x8x128xf32>, vector<4x8x128xf32>, vector<4x8x8xf32> -> vector<4x8x8xf32>
    "tpu.trace_stop"() : () -> ()
    %178 = vector.broadcast %51 : vector<1x8x8xf32> to vector<4x8x8xf32>
    %179 = arith.addf %177, %178 : vector<4x8x8xf32>
    %180 = vector.broadcast %43 : vector<4x1x128xf32> to vector<4x8x128xf32>
    %181 = arith.mulf %176, %180 : vector<4x8x128xf32>
    %cst_53 = arith.constant dense<0.000000e+00> : vector<4x8xf32>
    %182 = vector.multi_reduction <add>, %181, %cst_53 [2] : vector<4x8x128xf32> to vector<4x8xf32>
    %183 = vector.shape_cast %182 : vector<4x8xf32> to vector<4x8x1xf32>
    %cst_54 = arith.constant dense<0xFF800000> : vector<4x8xf32>
    %184 = vector.multi_reduction <maximumf>, %179, %cst_54 [2] : vector<4x8x8xf32> to vector<4x8xf32>
    %185 = vector.shape_cast %184 : vector<4x8xf32> to vector<4x8x1xf32>
    %186 = arith.maximumf %185, %183 : vector<4x8x1xf32>
    %187 = vector.broadcast %186 : vector<4x8x1xf32> to vector<4x8x8xf32>
    %188 = arith.subf %179, %187 : vector<4x8x8xf32>
    %189 = math.exp %188 : vector<4x8x8xf32>
    %190 = arith.subf %183, %186 : vector<4x8x1xf32>
    %191 = math.exp %190 : vector<4x8x1xf32>
    %cst_55 = arith.constant dense<0.000000e+00> : vector<4x8xf32>
    %192 = vector.multi_reduction <add>, %189, %cst_55 [2] : vector<4x8x8xf32> to vector<4x8xf32>
    %193 = vector.shape_cast %192 : vector<4x8xf32> to vector<4x8x1xf32>
    %194 = arith.addf %193, %191 : vector<4x8x1xf32>
    %195 = tpu.reciprocal %194 {approx = true} : vector<4x8x1xf32> -> vector<4x8x1xf32>
    "tpu.trace_start"() <{level = 10 : i32, message = "bts,bsd->btd"}> : () -> ()
    %cst_56 = arith.constant dense<0.000000e+00> : vector<4x8x128xf32>
    %196 = tpu.matmul %189, %42, %cst_56 {dimension_numbers = #tpu.dot_dimension_numbers<[2], [1], [1], [2], [0, 0, 0, 1, 1, 2], [0], [0]>} : vector<4x8x8xf32>, vector<4x8x128xf32>, vector<4x8x128xf32> -> vector<4x8x128xf32>
    "tpu.trace_stop"() : () -> ()
    %197 = vector.broadcast %191 : vector<4x8x1xf32> to vector<4x8x128xf32>
    %198 = vector.broadcast %44 : vector<4x1x128xf32> to vector<4x8x128xf32>
    %199 = arith.mulf %197, %198 : vector<4x8x128xf32>
    %200 = arith.addf %196, %199 : vector<4x8x128xf32>
    %201 = vector.broadcast %195 : vector<4x8x1xf32> to vector<4x8x128xf32>
    %202 = arith.mulf %200, %201 : vector<4x8x128xf32>
    %203 = vector.broadcast %174 : vector<1x1x128xf32> to vector<4x8x128xf32>
    %204 = arith.mulf %202, %203 : vector<4x8x128xf32>
    %205 = arith.addf %167, %204 : vector<4x8x128xf32>
    %206 = vector.shape_cast %205 : vector<4x8x128xf32> to vector<32x128xf32>
    %207 = arith.truncf %206 : vector<32x128xf32> to vector<32x128xbf16>
    %c0_57 = arith.constant 0 : index
    %c0_58 = arith.constant 0 : index
    %208 = vector.load %arg12[%c0_57, %c0_58] : memref<128x128xbf16, #tpu.memory_space<vmem>>, vector<128x128xbf16>
    %cst_59 = arith.constant dense<0.000000e+00> : vector<32x128xf32>
    %209 = tpu.matmul %207, %208, %cst_59 {dimension_numbers = #tpu.dot_dimension_numbers<[1], [0], [0], [1], [0, 0, 1, 1], [], []>} : vector<32x128xbf16>, vector<128x128xbf16>, vector<32x128xf32> -> vector<32x128xf32>
    %c0_60 = arith.constant 0 : index
    %c0_61 = arith.constant 0 : index
    %210 = vector.load %arg13[%c0_60, %c0_61] : memref<1x128xf32, #tpu.memory_space<vmem>>, vector<1x128xf32>
    %211 = vector.broadcast %210 : vector<1x128xf32> to vector<32x128xf32>
    %212 = arith.addf %209, %211 : vector<32x128xf32>
    %213 = arith.addf %1, %212 : vector<32x128xf32>
    %214 = vector.shape_cast %213 : vector<32x128xf32> to vector<4x8x128xf32>
    %c0_62 = arith.constant 0 : index
    %c0_63 = arith.constant 0 : index
    %c0_64 = arith.constant 0 : index
    %215 = vector.load %arg14[%c0_62, %c0_63, %c0_64] : memref<4x8x128xf32, #tpu.memory_space<vmem>>, vector<4x8x128xf32>
    tpu.vector_store %arg14[%c0_62, %c0_63, %c0_64], %214 {strides = array<i32>} : memref<4x8x128xf32, #tpu.memory_space<vmem>>, vector<4x8x128xf32>,
    return
  }
  func.func @transform_0(%arg0: i32) -> (i32, i32, i32) {
    %c0_i32 = arith.constant 0 : i32
    %c0_i32_0 = arith.constant 0 : i32
    %c0_i32_1 = arith.constant 0 : i32
    return %arg0, %c0_i32, %c0_i32_0 : i32, i32, i32
  }
  func.func @transform_1(%arg0: i32) -> (i32, i32, i32) {
    %c0_i32 = arith.constant 0 : i32
    %c0_i32_0 = arith.constant 0 : i32
    %c0_i32_1 = arith.constant 0 : i32
    return %arg0, %c0_i32, %c0_i32_0 : i32, i32, i32
  }
  func.func @transform_2(%arg0: i32) -> (i32, i32, i32) {
    %c0_i32 = arith.constant 0 : i32
    %c0_i32_0 = arith.constant 0 : i32
    %c0_i32_1 = arith.constant 0 : i32
    return %arg0, %c0_i32, %c0_i32_0 : i32, i32, i32
  }
  func.func @transform_3(%arg0: i32) -> (i32, i32) {
    %c0_i32 = arith.constant 0 : i32
    %c0_i32_0 = arith.constant 0 : i32
    %c0_i32_1 = arith.constant 0 : i32
    return %c0_i32, %c0_i32_0 : i32, i32
  }
  func.func @transform_4(%arg0: i32) -> (i32, i32) {
    %c0_i32 = arith.constant 0 : i32
    %c0_i32_0 = arith.constant 0 : i32
    %c0_i32_1 = arith.constant 0 : i32
    return %c0_i32, %c0_i32_0 : i32, i32
  }
  func.func @transform_5(%arg0: i32) -> (i32, i32) {
    %c0_i32 = arith.constant 0 : i32
    %c0_i32_0 = arith.constant 0 : i32
    %c0_i32_1 = arith.constant 0 : i32
    return %c0_i32, %c0_i32_0 : i32, i32
  }
  func.func @transform_6(%arg0: i32) -> (i32, i32) {
    %c0_i32 = arith.constant 0 : i32
    %c0_i32_0 = arith.constant 0 : i32
    %c0_i32_1 = arith.constant 0 : i32
    return %c0_i32, %c0_i32_0 : i32, i32
  }
  func.func @transform_7(%arg0: i32) -> (i32, i32) {
    %c0_i32 = arith.constant 0 : i32
    %c0_i32_0 = arith.constant 0 : i32
    %c0_i32_1 = arith.constant 0 : i32
    return %c0_i32, %c0_i32_0 : i32, i32
  }
  func.func @transform_8(%arg0: i32) -> (i32, i32) {
    %c0_i32 = arith.constant 0 : i32
    %c0_i32_0 = arith.constant 0 : i32
    %c0_i32_1 = arith.constant 0 : i32
    return %c0_i32, %c0_i32_0 : i32, i32
  }
  func.func @transform_9(%arg0: i32) -> (i32, i32) {
    %c0_i32 = arith.constant 0 : i32
    %c0_i32_0 = arith.constant 0 : i32
    %c0_i32_1 = arith.constant 0 : i32
    return %c0_i32, %c0_i32_0 : i32, i32
  }
  func.func @transform_10(%arg0: i32) -> (i32, i32) {
    %c0_i32 = arith.constant 0 : i32
    %c0_i32_0 = arith.constant 0 : i32
    %c0_i32_1 = arith.constant 0 : i32
    return %c0_i32, %c0_i32_0 : i32, i32
  }
  func.func @transform_11(%arg0: i32) -> (i32, i32) {
    %c0_i32 = arith.constant 0 : i32
    %c0_i32_0 = arith.constant 0 : i32
    %c0_i32_1 = arith.constant 0 : i32
    return %c0_i32, %c0_i32_0 : i32, i32
  }
  func.func @transform_12(%arg0: i32) -> (i32, i32) {
    %c0_i32 = arith.constant 0 : i32
    %c0_i32_0 = arith.constant 0 : i32
    %c0_i32_1 = arith.constant 0 : i32
    return %c0_i32, %c0_i32_0 : i32, i32
  }
  func.func @transform_13(%arg0: i32) -> (i32, i32, i32) {
    %c0_i32 = arith.constant 0 : i32
    %c0_i32_0 = arith.constant 0 : i32
    %c0_i32_1 = arith.constant 0 : i32
    return %arg0, %c0_i32, %c0_i32_0 : i32, i32, i32
  }
}

</mosaic_0001>

<llo_original>
// kernel: flash_attention_latent_injection.1
$region0: #{flash_attention_latent_injection.1}
  #allocation0 [shape = 'u32[]', space=smem, size = 0x4, offset = 0x4, fixed_abs, tag = 'smem constant byte address 0x4 - core index']
  #allocation1 [shape = 'u32[144,128]{1,0:T(1,128)}', space=vmem, size = 0x12000, scoped, tag = 'internal scratch']
  %s0 = inlined_call_operand.vmem [shape: f32[8,8,128], index: 0, kind: input, shape index: {}]
  %s1 = inlined_call_operand.vmem [shape: f32[8,1,128], index: 1, kind: input, shape index: {}]
  %s2 = inlined_call_operand.vmem [shape: f32[8,1,128], index: 2, kind: input, shape index: {}]
  %s3 = inlined_call_operand.vmem [shape: f32[1,128], index: 3, kind: input, shape index: {}]
  %s4 = inlined_call_operand.vmem [shape: f32[1,128], index: 4, kind: input, shape index: {}]
  %s5 = inlined_call_operand.vmem [shape: bf16[128,128], index: 5, kind: input, shape index: {}]
  %s6 = inlined_call_operand.vmem [shape: bf16[128,128], index: 6, kind: input, shape index: {}]
  %s7 = inlined_call_operand.vmem [shape: bf16[128,128], index: 7, kind: input, shape index: {}]
  %s8 = inlined_call_operand.vmem [shape: f32[1,128], index: 8, kind: input, shape index: {}]
  %s9 = inlined_call_operand.vmem [shape: f32[1,128], index: 9, kind: input, shape index: {}]
  %s10 = inlined_call_operand.vmem [shape: f32[1,128], index: 10, kind: input, shape index: {}]
  %s11 = inlined_call_operand.vmem [shape: bf16[128,128], index: 11, kind: input, shape index: {}]
  %s12 = inlined_call_operand.vmem [shape: f32[1,128], index: 12, kind: input, shape index: {}]
  %s13 = inlined_call_operand.hbm [shape: f32[8,8,128], index: 13, kind: output, shape index: {}]
  %s14 = sld [smem:[#allocation0]]
  $region85: #{flash_attention_latent_injection.1} parent=0
    _
  %s16 = ssub.s32 1, %s14
  %s17 = scalar_select 0, %s16, %s14
  $region1: #{flash_attention_latent_injection.1} parent=0
    #allocation2 [shape = 'u8[32768]{0}', space=vmem, size = 0x8000, scoped, tag = 'output window, operand 0']
    #allocation3 [shape = 's32[2]{0}', space=sflag, size = 0x8, scoped, tag = 'scoped memory for flash_attention_latent_injection.1']
    %18 = vsyncpa [#allocation3], 0
    %s19 = scalar_lea.sflag [#allocation3], 1
    %20 = vsyncpa %s19, 0
    loop: start=0, step=1, limit=4
    $region2: #{flash_attention_latent_injection.1} parent=1 // loop_pre_header
      _
    $region3: #{flash_attention_latent_injection.1} parent=1 // loop_header
      %s22 = sphi 0, %s26
      %p23 = scmp.ge.s32.totalorder %s22, 4
      %s32 = sphi 0, %s34
      %s35 = sphi 0, %s32
      %s36 = sphi 0, %s35
      %s52 = sphi 0, %s36
      %s58 = sphi 0, %s60
      %s61 = sphi 0, %s58
      %s62 = sphi 0, %s61
      %s78 = sphi 0, %s62
      %s84 = sphi 0, %s86
      %s87 = sphi 0, %s84
      %s88 = sphi 0, %s87
      %s104 = sphi 0, %s88
      %s108 = sphi 0, %s108
      %s110 = sphi 0, %s108
      %s111 = sphi 0, %s110
      %s125 = sphi 0, %s111
      %s129 = sphi 0, %s129
      %s131 = sphi 0, %s129
      %s132 = sphi 0, %s131
      %s146 = sphi 0, %s132
      %s150 = sphi 0, %s150
      %s152 = sphi 0, %s150
      %s153 = sphi 0, %s152
      %s167 = sphi 0, %s153
      %s171 = sphi 0, %s171
      %s173 = sphi 0, %s171
      %s174 = sphi 0, %s173
      %s188 = sphi 0, %s174
      %s192 = sphi 0, %s192
      %s194 = sphi 0, %s192
      %s195 = sphi 0, %s194
      %s209 = sphi 0, %s195
      %s213 = sphi 0, %s213
      %s215 = sphi 0, %s213
      %s216 = sphi 0, %s215
      %s230 = sphi 0, %s216
      %s234 = sphi 0, %s234
      %s236 = sphi 0, %s234
      %s237 = sphi 0, %s236
      %s251 = sphi 0, %s237
      %s255 = sphi 0, %s255
      %s257 = sphi 0, %s255
      %s258 = sphi 0, %s257
      %s272 = sphi 0, %s258
      %s276 = sphi 0, %s276
      %s278 = sphi 0, %s276
      %s279 = sphi 0, %s278
      %s293 = sphi 0, %s279
      %s297 = sphi 0, %s297
      %s299 = sphi 0, %s297
      %s300 = sphi 0, %s299
      %s314 = sphi 0, %s300
      %s320 = sphi 0, %s322
      %s323 = sphi 0, %s320
      %s324 = sphi 0, %s323
      %s340 = sphi 0, %s324
    $region4: #{flash_attention_latent_injection.1} parent=1 // loop_header_branch
      %25 = sbr.rel (%p23) target = $region8
    $region5: #{flash_attention_latent_injection.1} parent=1 // loop_body
      %s27 = ssub.s32 %s22, 1
      %s28 = ssub.s32 %s22, 2
      %s29 = sadd.s32 %s22, 1
      %s30 = ssub.s32 %s22, %s29
      %p31 = scmp.eq.s32.totalorder %s30, 0
      %s33 = sadd.s32 %s32, 1
      %s34 = scalar_select %p31, %s32, %s33
      %p37 = pneg %p31
      %p38 = scmp.eq.s32.totalorder %s22, 1
      %p39 = por %p37, %p38
      %p40 = scmp.ne.s32.totalorder %s32, %s35
      %p41 = scmp.eq.s32.totalorder %s22, 0
      %p42 = por %p40, %p41
      %p43 = scmp.ne.s32.totalorder %s32, %s35
      %p44 = scmp.eq.s32.totalorder %s27, 1
      %p45 = por %p43, %p44
      %p46 = scmp.ne.s32.totalorder %s35, %s36
      %p47 = scmp.eq.s32.totalorder %s27, 0
      %p48 = por %p46, %p47
      %p49 = scmp.ne.s32.totalorder %s35, %s36
      %p50 = scmp.eq.s32.totalorder %s28, 1
      %p51 = por %p49, %p50
      %p53 = scmp.ne.s32.totalorder %s36, %s52
      %p54 = scmp.eq.s32.totalorder %s28, 0
      %p55 = por %p53, %p54
      %s56 = ssub.s32 %s22, %s29
      %p57 = scmp.eq.s32.totalorder %s56, 0
      %s59 = sadd.s32 %s58, 1
      %s60 = scalar_select %p57, %s58, %s59
      %p63 = pneg %p57
      %p64 = scmp.eq.s32.totalorder %s22, 1
      %p65 = por %p63, %p64
      %p66 = scmp.ne.s32.totalorder %s58, %s61
      %p67 = scmp.eq.s32.totalorder %s22, 0
      %p68 = por %p66, %p67
      %p69 = scmp.ne.s32.totalorder %s58, %s61
      %p70 = scmp.eq.s32.totalorder %s27, 1
      %p71 = por %p69, %p70
      %p72 = scmp.ne.s32.totalorder %s61, %s62
      %p73 = scmp.eq.s32.totalorder %s27, 0
      %p74 = por %p72, %p73
      %p75 = scmp.ne.s32.totalorder %s61, %s62
      %p76 = scmp.eq.s32.totalorder %s28, 1
      %p77 = por %p75, %p76
      %p79 = scmp.ne.s32.totalorder %s62, %s78
      %p80 = scmp.eq.s32.totalorder %s28, 0
      %p81 = por %p79, %p80
      %s82 = ssub.s32 %s22, %s29
      %p83 = scmp.eq.s32.totalorder %s82, 0
      %s85 = sadd.s32 %s84, 1
      %s86 = scalar_select %p83, %s84, %s85
      %p89 = pneg %p83
      %p90 = scmp.eq.s32.totalorder %s22, 1
      %p91 = por %p89, %p90
      %p92 = scmp.ne.s32.totalorder %s84, %s87
      %p93 = scmp.eq.s32.totalorder %s22, 0
      %p94 = por %p92, %p93
      %p95 = scmp.ne.s32.totalorder %s84, %s87
      %p96 = scmp.eq.s32.totalorder %s27, 1
      %p97 = por %p95, %p96
      %p98 = scmp.ne.s32.totalorder %s87, %s88
      %p99 = scmp.eq.s32.totalorder %s27, 0
      %p100 = por %p98, %p99
      %p101 = scmp.ne.s32.totalorder %s87, %s88
      %p102 = scmp.eq.s32.totalorder %s28, 1
      %p103 = por %p101, %p102
      %p105 = scmp.ne.s32.totalorder %s88, %s104
      %p106 = scmp.eq.s32.totalorder %s28, 0
      %p107 = por %p105, %p106
      %s109 = sadd.s32 %s108, 1
      %p112 = scmp.eq.s32.totalorder %s22, 1
      %p113 = scmp.ne.s32.totalorder %s108, %s110
      %p114 = scmp.eq.s32.totalorder %s22, 0
      %p115 = por %p113, %p114
      %p116 = scmp.ne.s32.totalorder %s108, %s110
      %p117 = scmp.eq.s32.totalorder %s27, 1
      %p118 = por %p116, %p117
      %p119 = scmp.ne.s32.totalorder %s110, %s111
      %p120 = scmp.eq.s32.totalorder %s27, 0
      %p121 = por %p119, %p120
      %p122 = scmp.ne.s32.totalorder %s110, %s111
      %p123 = scmp.eq.s32.totalorder %s28, 1
      %p124 = por %p122, %p123
      %p126 = scmp.ne.s32.totalorder %s111, %s125
      %p127 = scmp.eq.s32.totalorder %s28, 0
      %p128 = por %p126, %p127
      %s130 = sadd.s32 %s129, 1
      %p133 = scmp.eq.s32.totalorder %s22, 1
      %p134 = scmp.ne.s32.totalorder %s129, %s131
      %p135 = scmp.eq.s32.totalorder %s22, 0
      %p136 = por %p134, %p135
      %p137 = scmp.ne.s32.totalorder %s129, %s131
      %p138 = scmp.eq.s32.totalorder %s27, 1
      %p139 = por %p137, %p138
      %p140 = scmp.ne.s32.totalorder %s131, %s132
      %p141 = scmp.eq.s32.totalorder %s27, 0
      %p142 = por %p140, %p141
      %p143 = scmp.ne.s32.totalorder %s131, %s132
      %p144 = scmp.eq.s32.totalorder %s28, 1
      %p145 = por %p143, %p144
      %p147 = scmp.ne.s32.totalorder %s132, %s146
      %p148 = scmp.eq.s32.totalorder %s28, 0
      %p149 = por %p147, %p148
      %s151 = sadd.s32 %s150, 1
      %p154 = scmp.eq.s32.totalorder %s22, 1
      %p155 = scmp.ne.s32.totalorder %s150, %s152
      %p156 = scmp.eq.s32.totalorder %s22, 0
      %p157 = por %p155, %p156
      %p158 = scmp.ne.s32.totalorder %s150, %s152
      %p159 = scmp.eq.s32.totalorder %s27, 1
      %p160 = por %p158, %p159
      %p161 = scmp.ne.s32.totalorder %s152, %s153
      %p162 = scmp.eq.s32.totalorder %s27, 0
      %p163 = por %p161, %p162
      %p164 = scmp.ne.s32.totalorder %s152, %s153
      %p165 = scmp.eq.s32.totalorder %s28, 1
      %p166 = por %p164, %p165
      %p168 = scmp.ne.s32.totalorder %s153, %s167
      %p169 = scmp.eq.s32.totalorder %s28, 0
      %p170 = por %p168, %p169
      %s172 = sadd.s32 %s171, 1
      %p175 = scmp.eq.s32.totalorder %s22, 1
      %p176 = scmp.ne.s32.totalorder %s171, %s173
      %p177 = scmp.eq.s32.totalorder %s22, 0
      %p178 = por %p176, %p177
      %p179 = scmp.ne.s32.totalorder %s171, %s173
      %p180 = scmp.eq.s32.totalorder %s27, 1
      %p181 = por %p179, %p180
      %p182 = scmp.ne.s32.totalorder %s173, %s174
      %p183 = scmp.eq.s32.totalorder %s27, 0
      %p184 = por %p182, %p183
      %p185 = scmp.ne.s32.totalorder %s173, %s174
      %p186 = scmp.eq.s32.totalorder %s28, 1
      %p187 = por %p185, %p186
      %p189 = scmp.ne.s32.totalorder %s174, %s188
      %p190 = scmp.eq.s32.totalorder %s28, 0
      %p191 = por %p189, %p190
      %s193 = sadd.s32 %s192, 1
      %p196 = scmp.eq.s32.totalorder %s22, 1
      %p197 = scmp.ne.s32.totalorder %s192, %s194
      %p198 = scmp.eq.s32.totalorder %s22, 0
      %p199 = por %p197, %p198
      %p200 = scmp.ne.s32.totalorder %s192, %s194
      %p201 = scmp.eq.s32.totalorder %s27, 1
      %p202 = por %p200, %p201
      %p203 = scmp.ne.s32.totalorder %s194, %s195
      %p204 = scmp.eq.s32.totalorder %s27, 0
      %p205 = por %p203, %p204
      %p206 = scmp.ne.s32.totalorder %s194, %s195
      %p207 = scmp.eq.s32.totalorder %s28, 1
      %p208 = por %p206, %p207
      %p210 = scmp.ne.s32.totalorder %s195, %s209
      %p211 = scmp.eq.s32.totalorder %s28, 0
      %p212 = por %p210, %p211
      %s214 = sadd.s32 %s213, 1
      %p217 = scmp.eq.s32.totalorder %s22, 1
      %p218 = scmp.ne.s32.totalorder %s213, %s215
      %p219 = scmp.eq.s32.totalorder %s22, 0
      %p220 = por %p218, %p219
      %p221 = scmp.ne.s32.totalorder %s213, %s215
      %p222 = scmp.eq.s32.totalorder %s27, 1
      %p223 = por %p221, %p222
      %p224 = scmp.ne.s32.totalorder %s215, %s216
      %p225 = scmp.eq.s32.totalorder %s27, 0
      %p226 = por %p224, %p225
      %p227 = scmp.ne.s32.totalorder %s215, %s216
      %p228 = scmp.eq.s32.totalorder %s28, 1
      %p229 = por %p227, %p228
      %p231 = scmp.ne.s32.totalorder %s216, %s230
      %p232 = scmp.eq.s32.totalorder %s28, 0
      %p233 = por %p231, %p232
      %s235 = sadd.s32 %s234, 1
      %p238 = scmp.eq.s32.totalorder %s22, 1
      %p239 = scmp.ne.s32.totalorder %s234, %s236
      %p240 = scmp.eq.s32.totalorder %s22, 0
      %p241 = por %p239, %p240
      %p242 = scmp.ne.s32.totalorder %s234, %s236
      %p243 = scmp.eq.s32.totalorder %s27, 1
      %p244 = por %p242, %p243
      %p245 = scmp.ne.s32.totalorder %s236, %s237
      %p246 = scmp.eq.s32.totalorder %s27, 0
      %p247 = por %p245, %p246
      %p248 = scmp.ne.s32.totalorder %s236, %s237
      %p249 = scmp.eq.s32.totalorder %s28, 1
      %p250 = por %p248, %p249
      %p252 = scmp.ne.s32.totalorder %s237, %s251
      %p253 = scmp.eq.s32.totalorder %s28, 0
      %p254 = por %p252, %p253
      %s256 = sadd.s32 %s255, 1
      %p259 = scmp.eq.s32.totalorder %s22, 1
      %p260 = scmp.ne.s32.totalorder %s255, %s257
      %p261 = scmp.eq.s32.totalorder %s22, 0
      %p262 = por %p260, %p261
      %p263 = scmp.ne.s32.totalorder %s255, %s257
      %p264 = scmp.eq.s32.totalorder %s27, 1
      %p265 = por %p263, %p264
      %p266 = scmp.ne.s32.totalorder %s257, %s258
      %p267 = scmp.eq.s32.totalorder %s27, 0
      %p268 = por %p266, %p267
      %p269 = scmp.ne.s32.totalorder %s257, %s258
      %p270 = scmp.eq.s32.totalorder %s28, 1
      %p271 = por %p269, %p270
      %p273 = scmp.ne.s32.totalorder %s258, %s272
      %p274 = scmp.eq.s32.totalorder %s28, 0
      %p275 = por %p273, %p274
      %s277 = sadd.s32 %s276, 1
      %p280 = scmp.eq.s32.totalorder %s22, 1
      %p281 = scmp.ne.s32.totalorder %s276, %s278
      %p282 = scmp.eq.s32.totalorder %s22, 0
      %p283 = por %p281, %p282
      %p284 = scmp.ne.s32.totalorder %s276, %s278
      %p285 = scmp.eq.s32.totalorder %s27, 1
      %p286 = por %p284, %p285
      %p287 = scmp.ne.s32.totalorder %s278, %s279
      %p288 = scmp.eq.s32.totalorder %s27, 0
      %p289 = por %p287, %p288
      %p290 = scmp.ne.s32.totalorder %s278, %s279
      %p291 = scmp.eq.s32.totalorder %s28, 1
      %p292 = por %p290, %p291
      %p294 = scmp.ne.s32.totalorder %s279, %s293
      %p295 = scmp.eq.s32.totalorder %s28, 0
      %p296 = por %p294, %p295
      %s298 = sadd.s32 %s297, 1
      %p301 = scmp.eq.s32.totalorder %s22, 1
      %p302 = scmp.ne.s32.totalorder %s297, %s299
      %p303 = scmp.eq.s32.totalorder %s22, 0
      %p304 = por %p302, %p303
      %p305 = scmp.ne.s32.totalorder %s297, %s299
      %p306 = scmp.eq.s32.totalorder %s27, 1
      %p307 = por %p305, %p306
      %p308 = scmp.ne.s32.totalorder %s299, %s300
      %p309 = scmp.eq.s32.totalorder %s27, 0
      %p310 = por %p308, %p309
      %p311 = scmp.ne.s32.totalorder %s299, %s300
      %p312 = scmp.eq.s32.totalorder %s28, 1
      %p313 = por %p311, %p312
      %p315 = scmp.ne.s32.totalorder %s300, %s314
      %p316 = scmp.eq.s32.totalorder %s28, 0
      %p317 = por %p315, %p316
      %s318 = ssub.s32 %s22, %s29
      %p319 = scmp.eq.s32.totalorder %s318, 0
      %s321 = sadd.s32 %s320, 1
      %s322 = scalar_select %p319, %s320, %s321
      %p325 = pneg %p319
      %p326 = scmp.eq.s32.totalorder %s22, 1
      %p327 = por %p325, %p326
      %p328 = scmp.ne.s32.totalorder %s320, %s323
      %p329 = scmp.eq.s32.totalorder %s22, 0
      %p330 = por %p328, %p329
      %p331 = scmp.ne.s32.totalorder %s320, %s323
      %p332 = scmp.eq.s32.totalorder %s27, 1
      %p333 = por %p331, %p332
      %p334 = scmp.ne.s32.totalorder %s323, %s324
      %p335 = scmp.eq.s32.totalorder %s27, 0
      %p336 = por %p334, %p335
      %p337 = scmp.ne.s32.totalorder %s323, %s324
      %p338 = scmp.eq.s32.totalorder %s28, 1
      %p339 = por %p337, %p338
      %p341 = scmp.ne.s32.totalorder %s324, %s340
      %p342 = scmp.eq.s32.totalorder %s28, 0
      %p343 = por %p341, %p342
      %p344 = scmp.le.s32.totalorder 1, %s22
      %p345 = scmp.lt.s32.totalorder %s22, 3
      %p346 = pnand %p344, %p345
      %p347 = pneg %p346
      // Predicated region
      $region9: #{flash_attention_latent_injection.1} parent=5 // pred_check
        _
      $region10: #{flash_attention_latent_injection.1} parent=5 // pred_check_branch
        %349 = sbr.rel (%p346) target = $region12
      $region11: #{flash_attention_latent_injection.1} parent=5 // pred_region
        %s350 = ssub.s32 %s22, 1
        // Predicated region
        $region13: #{flash_attention_latent_injection.1} parent=11 // pred_check
          %p351 = pneg %p121
        $region14: #{flash_attention_latent_injection.1} parent=11 // pred_check_branch
          %353 = sbr.rel (%p351) target = $region16
        $region15: #{flash_attention_latent_injection.1} parent=11 // pred_region
          _
        $region16: #{flash_attention_latent_injection.1} parent=11 // pred_fallthru
          _
        // Predicated region
        $region17: #{flash_attention_latent_injection.1} parent=11 // pred_check
          %p354 = pneg %p142
        $region18: #{flash_attention_latent_injection.1} parent=11 // pred_check_branch
          %356 = sbr.rel (%p354) target = $region20
        $region19: #{flash_attention_latent_injection.1} parent=11 // pred_region
          _
        $region20: #{flash_attention_latent_injection.1} parent=11 // pred_fallthru
          _
        // Predicated region
        $region21: #{flash_attention_latent_injection.1} parent=11 // pred_check
          %p357 = pneg %p163
        $region22: #{flash_attention_latent_injection.1} parent=11 // pred_check_branch
          %359 = sbr.rel (%p357) target = $region24
        $region23: #{flash_attention_latent_injection.1} parent=11 // pred_region
          _
        $region24: #{flash_attention_latent_injection.1} parent=11 // pred_fallthru
          _
        // Predicated region
        $region25: #{flash_attention_latent_injection.1} parent=11 // pred_check
          %p360 = pneg %p184
        $region26: #{flash_attention_latent_injection.1} parent=11 // pred_check_branch
          %362 = sbr.rel (%p360) target = $region28
        $region27: #{flash_attention_latent_injection.1} parent=11 // pred_region
          _
        $region28: #{flash_attention_latent_injection.1} parent=11 // pred_fallthru
          _
        // Predicated region
        $region29: #{flash_attention_latent_injection.1} parent=11 // pred_check
          %p363 = pneg %p205
        $region30: #{flash_attention_latent_injection.1} parent=11 // pred_check_branch
          %365 = sbr.rel (%p363) target = $region32
        $region31: #{flash_attention_latent_injection.1} parent=11 // pred_region
          _
        $region32: #{flash_attention_latent_injection.1} parent=11 // pred_fallthru
          _
        // Predicated region
        $region33: #{flash_attention_latent_injection.1} parent=11 // pred_check
          %p366 = pneg %p226
        $region34: #{flash_attention_latent_injection.1} parent=11 // pred_check_branch
          %368 = sbr.rel (%p366) target = $region36
        $region35: #{flash_attention_latent_injection.1} parent=11 // pred_region
          _
        $region36: #{flash_attention_latent_injection.1} parent=11 // pred_fallthru
          _
        // Predicated region
        $region37: #{flash_attention_latent_injection.1} parent=11 // pred_check
          %p369 = pneg %p247
        $region38: #{flash_attention_latent_injection.1} parent=11 // pred_check_branch
          %371 = sbr.rel (%p369) target = $region40
        $region39: #{flash_attention_latent_injection.1} parent=11 // pred_region
          _
        $region40: #{flash_attention_latent_injection.1} parent=11 // pred_fallthru
          _
        // Predicated region
        $region41: #{flash_attention_latent_injection.1} parent=11 // pred_check
          %p372 = pneg %p268
        $region42: #{flash_attention_latent_injection.1} parent=11 // pred_check_branch
          %374 = sbr.rel (%p372) target = $region44
        $region43: #{flash_attention_latent_injection.1} parent=11 // pred_region
          _
        $region44: #{flash_attention_latent_injection.1} parent=11 // pred_fallthru
          _
        // Predicated region
        $region45: #{flash_attention_latent_injection.1} parent=11 // pred_check
          %p375 = pneg %p289
        $region46: #{flash_attention_latent_injection.1} parent=11 // pred_check_branch
          %377 = sbr.rel (%p375) target = $region48
        $region47: #{flash_attention_latent_injection.1} parent=11 // pred_region
          _
        $region48: #{flash_attention_latent_injection.1} parent=11 // pred_fallthru
          _
        // Predicated region
        $region49: #{flash_attention_latent_injection.1} parent=11 // pred_check
          %p378 = pneg %p310
        $region50: #{flash_attention_latent_injection.1} parent=11 // pred_check_branch
          %380 = sbr.rel (%p378) target = $region52
        $region51: #{flash_attention_latent_injection.1} parent=11 // pred_region
          _
        $region52: #{flash_attention_latent_injection.1} parent=11 // pred_fallthru
          _
      $region12: #{flash_attention_latent_injection.1} parent=5 // pred_fallthru
        _
      %p381 = scmp.lt.s32.totalorder %s22, 2
      // Predicated region
      $region53: #{flash_attention_latent_injection.1} parent=5 // pred_check
        %p382 = pneg %p381
      $region54: #{flash_attention_latent_injection.1} parent=5 // pred_check_branch
        %384 = sbr.rel (%p382) target = $region56
      $region55: #{flash_attention_latent_injection.1} parent=5 // pred_region
        // Predicated region
        $region57: #{flash_attention_latent_injection.1} parent=55 // pred_check
          %p385 = pneg %p42
        $region58: #{flash_attention_latent_injection.1} parent=55 // pred_check_branch
          %387 = sbr.rel (%p385) target = $region60
        $region59: #{flash_attention_latent_injection.1} parent=55 // pred_region
          %s388 = smul.u32 4, %s22
          %p389 = scmp.lt.s32.totalorder %s388, 7
          %s390 = scalar_select %p389, %s388, 7
          %s391 = smul.addr %s390, 8
          %s392 = scalar_lea.vmem %s0, %s391
          %s393 = smul.u32 4, %s22
        $region60: #{flash_attention_latent_injection.1} parent=55 // pred_fallthru
          _
        // Predicated region
        $region61: #{flash_attention_latent_injection.1} parent=55 // pred_check
          %p394 = pneg %p68
        $region62: #{flash_attention_latent_injection.1} parent=55 // pred_check_branch
          %396 = sbr.rel (%p394) target = $region64
        $region63: #{flash_attention_latent_injection.1} parent=55 // pred_region
          %s397 = smul.u32 4, %s22
          %p398 = scmp.lt.s32.totalorder %s397, 7
          %s399 = scalar_select %p398, %s397, 7
          %s400 = scalar_lea.vmem %s1, %s399
          %s401 = smul.u32 4, %s22
        $region64: #{flash_attention_latent_injection.1} parent=55 // pred_fallthru
          _
        // Predicated region
        $region65: #{flash_attention_latent_injection.1} parent=55 // pred_check
          %p402 = pneg %p94
        $region66: #{flash_attention_latent_injection.1} parent=55 // pred_check_branch
          %404 = sbr.rel (%p402) target = $region68
        $region67: #{flash_attention_latent_injection.1} parent=55 // pred_region
          %s405 = smul.u32 4, %s22
          %p406 = scmp.lt.s32.totalorder %s405, 7
          %s407 = scalar_select %p406, %s405, 7
          %s408 = scalar_lea.vmem %s2, %s407
          %s409 = smul.u32 4, %s22
        $region68: #{flash_attention_latent_injection.1} parent=55 // pred_fallthru
          _
      $region56: #{flash_attention_latent_injection.1} parent=5 // pred_fallthru
        _
      %p410 = scmp.le.s32.totalorder 1, %s22
      %p411 = scmp.lt.s32.totalorder %s22, 3
      %p412 = pnand %p410, %p411
      %p413 = pneg %p412
      // Predicated region
      $region69: #{flash_attention_latent_injection.1} parent=5 // pred_check
        _
      $region70: #{flash_attention_latent_injection.1} parent=5 // pred_check_branch
        %415 = sbr.rel (%p412) target = $region72
      $region71: #{flash_attention_latent_injection.1} parent=5 // pred_region
        %s416 = ssub.s32 %s22, 1
        %s417 = smul.u32 4, %s27
        %p418 = scmp.lt.s32.totalorder %s417, 7
        %s419 = scalar_select %p418, %s417, 7
        %s420 = smul.addr %s419, 8
        %s421 = scalar_lea.vmem %s0, %s420
        %p422 = pneg %p48
        %p423 = pneg %p45
        %s424 = smul.u32 4, %s27
        %p425 = scmp.lt.s32.totalorder %s424, 7
        %s426 = scalar_select %p425, %s424, 7
        %s427 = scalar_lea.vmem %s1, %s426
        %p428 = pneg %p74
        %p429 = pneg %p71
        %s430 = smul.u32 4, %s27
        %p431 = scmp.lt.s32.totalorder %s430, 7
        %s432 = scalar_select %p431, %s430, 7
        %s433 = scalar_lea.vmem %s2, %s432
        %p434 = pneg %p100
        %p435 = pneg %p97
        %p436 = pneg %p121
        %p437 = pneg %p118
        %p438 = pneg %p142
        %p439 = pneg %p139
        %p440 = pneg %p163
        %p441 = pneg %p160
        %p442 = pneg %p184
        %p443 = pneg %p181
        %p444 = pneg %p205
        %p445 = pneg %p202
        %p446 = pneg %p226
        %p447 = pneg %p223
        %p448 = pneg %p247
        %p449 = pneg %p244
        %p450 = pneg %p268
        %p451 = pneg %p265
        %p452 = pneg %p289
        %p453 = pneg %p286
        %p454 = pneg %p310
        %p455 = pneg %p307
        %p456 = pneg %p336
        %p457 = pneg %p333
        %s458 = sand.u32 %s323, 1
        %s459 = scalar_lea.sflag [#allocation3], %s458
        %s460 = sand.u32 %s323, 1
        %s461 = smul.addr %s460, 32
        %s462 = scalar_lea.vmem [#allocation2], %s461
        %s463 = smul.u32 4, %s27
        %p464 = scmp.lt.s32.totalorder %s463, 7
        %s465 = scalar_select %p464, %s463, 7
        %s466 = smul.addr %s465, 8
        %s467 = scalar_lea.vmem %s0, %s466
        %s468 = smul.u32 4, %s27
        %s469 = smul.u32 4, %s27
        %p470 = scmp.lt.s32.totalorder %s469, 7
        %s471 = scalar_select %p470, %s469, 7
        %s472 = scalar_lea.vmem %s1, %s471
        %s473 = smul.u32 4, %s27
        %s474 = smul.u32 4, %s27
        %p475 = scmp.lt.s32.totalorder %s474, 7
        %s476 = scalar_select %p475, %s474, 7
        %s477 = scalar_lea.vmem %s2, %s476
        %s478 = smul.u32 4, %s27
        %s479 = smul.u32 4, %s27
        %v481 = vld [vmem:[%s467] sm:$0xff]
        %v482 = vld [vmem:[%s467 + $0x8] sm:$0xff]
        %v483 = vld [vmem:[%s467 + $0x10] sm:$0xff]
        %v484 = vld [vmem:[%s467 + $0x18] sm:$0xff]
        %485 = vadd.xlane.f32.xlu0 %v481
        %v486 = vpop.xlane.xlu0 %485
        %487 = vadd.xlane.f32.xlu0 %v482
        %v488 = vpop.xlane.xlu0 %487
        %489 = vadd.xlane.f32.xlu0 %v483
        %v490 = vpop.xlane.xlu0 %489
        %491 = vadd.xlane.f32.xlu0 %v484
        %v492 = vpop.xlane.xlu0 %491
        %v493 = vrcp.pop 128.0
        %v494 = vmul.f32 %v486, %v493
        %v495 = vmul.f32 %v488, %v493
        %v496 = vmul.f32 %v490, %v493
        %v497 = vmul.f32 %v492, %v493
        %v498 = vsub.f32 %v481, %v494
        %v499 = vsub.f32 %v482, %v495
        %v500 = vsub.f32 %v483, %v496
        %v501 = vsub.f32 %v484, %v497
        %v502 = vmul.f32 %v498, %v498
        %v503 = vmul.f32 %v499, %v499
        %v504 = vmul.f32 %v500, %v500
        %v505 = vmul.f32 %v501, %v501
        %506 = vadd.xlane.f32.xlu0 %v502
        %v507 = vpop.xlane.xlu0 %506
        %508 = vadd.xlane.f32.xlu0 %v503
        %v509 = vpop.xlane.xlu0 %508
        %510 = vadd.xlane.f32.xlu0 %v504
        %v511 = vpop.xlane.xlu0 %510
        %512 = vadd.xlane.f32.xlu0 %v505
        %v513 = vpop.xlane.xlu0 %512
        %v514 = vmul.f32 %v507, %v493
        %v515 = vmul.f32 %v509, %v493
        %v516 = vmul.f32 %v511, %v493
        %v517 = vmul.f32 %v513, %v493
        %v518 = vadd.f32 %v514, 1e-05
        %v519 = vadd.f32 %v515, 1e-05
        %v520 = vadd.f32 %v516, 1e-05
        %v521 = vadd.f32 %v517, 1e-05
        %v522 = vrsqrt.pop %v518
        %v523 = vrsqrt.pop %v519
        %v524 = vrsqrt.pop %v520
        %v525 = vrsqrt.pop %v521
        %v526 = vmul.f32 %v498, %v522
        %v527 = vmul.f32 %v499, %v523
        %v528 = vmul.f32 %v500, %v524
        %v529 = vmul.f32 %v501, %v525
        %v530 = vld [vmem:[%s3] sm:$0x1]
        %v532 = vlaneseq
        %v533 = vshrl.u32 %v532, 7
        %v534 = vsub.s32 0, %v533
        %v535 = vrot.slane %v530, %v534
        %v537 = vmul.f32 %v526, %v535
        %v538 = vmul.f32 %v527, %v535
        %v539 = vmul.f32 %v528, %v535
        %v540 = vmul.f32 %v529, %v535
        %v541 = vld [vmem:[%s4] sm:$0x1]
        %v543 = vlaneseq
        %v544 = vshrl.u32 %v543, 7
        %v545 = vsub.s32 0, %v544
        %v546 = vrot.slane %v541, %v545
        %v548 = vadd.f32 %v537, %v546
        %v549 = vadd.f32 %v538, %v546
        %v550 = vadd.f32 %v539, %v546
        %v551 = vadd.f32 %v540, %v546
        %v552 = vpack.c.bf16 %v549, %v548
        %v553 = vpack.c.bf16 %v551, %v550
        %v554 = vld [vmem:[%s5] sm:$0xf]
        %v555 = vld [vmem:[%s5 + $0x4] sm:$0xf]
        %v556 = vld [vmem:[%s5 + $0x8] sm:$0xf]
        %v557 = vld [vmem:[%s5 + $0xc] sm:$0xf]
        %v558 = vld [vmem:[%s5 + $0x10] sm:$0xf]
        %v559 = vld [vmem:[%s5 + $0x14] sm:$0xf]
        %v560 = vld [vmem:[%s5 + $0x18] sm:$0xf]
        %v561 = vld [vmem:[%s5 + $0x1c] sm:$0xf]
        %v562 = vld [vmem:[%s5 + $0x20] sm:$0xf]
        %v563 = vld [vmem:[%s5 + $0x24] sm:$0xf]
        %v564 = vld [vmem:[%s5 + $0x28] sm:$0xf]
        %v565 = vld [vmem:[%s5 + $0x2c] sm:$0xf]
        %v566 = vld [vmem:[%s5 + $0x30] sm:$0xf]
        %v567 = vld [vmem:[%s5 + $0x34] sm:$0xf]
        %v568 = vld [vmem:[%s5 + $0x38] sm:$0xf]
        %v569 = vld [vmem:[%s5 + $0x3c] sm:$0xf]
        %v570 = vld [vmem:[%s8] sm:$0x1]
        %v572 = vlaneseq
        %v573 = vshrl.u32 %v572, 7
        %v574 = vsub.s32 0, %v573
        %v575 = vrot.slane %v570, %v574
        %v593 = vunpack.c.l.b16 %v554
        %v594 = vunpack.c.l.b16 %v555
        %v595 = vunpack.c.l.b16 %v556
        %v596 = vunpack.c.l.b16 %v557
        %v597 = vunpack.c.l.b16 %v558
        %v598 = vunpack.c.l.b16 %v559
        %v599 = vunpack.c.l.b16 %v560
        %v600 = vunpack.c.l.b16 %v561
        %v601 = vunpack.c.l.b16 %v562
        %v602 = vunpack.c.l.b16 %v563
        %v603 = vunpack.c.l.b16 %v564
        %v604 = vunpack.c.l.b16 %v565
        %v605 = vunpack.c.l.b16 %v566
        %v606 = vunpack.c.l.b16 %v567
        %v607 = vunpack.c.l.b16 %v568
        %v608 = vunpack.c.l.b16 %v569
        %v609 = vpack.c.b16 %v594, %v593
        %v610 = vpack.c.b16 %v596, %v595
        %v611 = vpack.c.b16 %v598, %v597
        %v612 = vpack.c.b16 %v600, %v599
        %v613 = vpack.c.b16 %v602, %v601
        %v614 = vpack.c.b16 %v604, %v603
        %v615 = vpack.c.b16 %v606, %v605
        %v616 = vpack.c.b16 %v608, %v607
        %625 = vmatprep.subr.bf16.mxu0 0
        %626 = vmatpush1.bf16.msra.mxu0 %v616
        %627 = vmatprep.subr.bf16.mxu0 0
        %628 = vmatpush1.bf16.msra.mxu0 %v615
        %629 = vmatprep.subr.bf16.mxu0 0
        %630 = vmatpush1.bf16.msra.mxu0 %v614
        %631 = vmatprep.subr.bf16.mxu0 0
        %632 = vmatpush1.bf16.msra.mxu0 %v613
        %633 = vmatprep.subr.bf16.mxu0 0
        %634 = vmatpush1.bf16.msra.mxu0 %v612
        %635 = vmatprep.subr.bf16.mxu0 0
        %636 = vmatpush1.bf16.msra.mxu0 %v611
        %637 = vmatprep.subr.bf16.mxu0 0
        %638 = vmatpush1.bf16.msra.mxu0 %v610
        %639 = vmatprep.subr.bf16.mxu0 0
        %640 = vmatpush1.bf16.msra.mxu0 %v609
        %641 = vmatprep.subr.bf16.mxu0 0
        %642 = vmatpush2.bf16.msra.mxu0 0
        %643 = vmatprep.subr.bf16.mxu0 0
        %644 = vmatpush2.bf16.msra.mxu0 0
        %645 = vmatprep.subr.bf16.mxu0 0
        %646 = vmatpush2.bf16.msra.mxu0 0
        %647 = vmatprep.subr.bf16.mxu0 0
        %648 = vmatpush2.bf16.msra.mxu0 0
        %649 = vmatprep.subr.bf16.mxu0 0
        %650 = vmatpush2.bf16.msra.mxu0 0
        %651 = vmatprep.subr.bf16.mxu0 0
        %652 = vmatpush2.bf16.msra.mxu0 0
        %653 = vmatprep.subr.bf16.mxu0 0
        %654 = vmatpush2.bf16.msra.mxu0 0
        %655 = vmatprep.subr.bf16.mxu0 0
        %656 = vmatpush2.bf16.msra.mxu0 0
        %657 = vmatprep.mubr.bf16.mxu0 0
        %658 = vmatmul.mubr.bf16.gmra.mxu0 %v552
        %v659 = vpop.f32.mrf.mxu0
        %v660 = vadd.f32 %v575, %v659
        %v661 = vpop.f32.mrf.mxu0
        %v662 = vpop.f32.mrf.mxu0
        %v663 = vadd.f32 %v575, %v662
        %v664 = vpop.f32.mrf.mxu0
        %665 = vmatprep.mubr.bf16.mxu0 0
        %666 = vmatmul.mubr.bf16.gmra.mxu0 %v553
        %v667 = vpop.f32.mrf.mxu0
        %v668 = vadd.f32 %v575, %v667
        %v669 = vpop.f32.mrf.mxu0
        %v670 = vpop.f32.mrf.mxu0
        %v671 = vadd.f32 %v575, %v670
        %v672 = vpop.f32.mrf.mxu0
        %673 = vdwg.mxu0
        %v674 = vld [vmem:[%s6] sm:$0xf]
        %v675 = vld [vmem:[%s6 + $0x4] sm:$0xf]
        %v676 = vld [vmem:[%s6 + $0x8] sm:$0xf]
        %v677 = vld [vmem:[%s6 + $0xc] sm:$0xf]
        %v678 = vld [vmem:[%s6 + $0x10] sm:$0xf]
        %v679 = vld [vmem:[%s6 + $0x14] sm:$0xf]
        %v680 = vld [vmem:[%s6 + $0x18] sm:$0xf]
        %v681 = vld [vmem:[%s6 + $0x1c] sm:$0xf]
        %v682 = vld [vmem:[%s6 + $0x20] sm:$0xf]
        %v683 = vld [vmem:[%s6 + $0x24] sm:$0xf]
        %v684 = vld [vmem:[%s6 + $0x28] sm:$0xf]
        %v685 = vld [vmem:[%s6 + $0x2c] sm:$0xf]
        %v686 = vld [vmem:[%s6 + $0x30] sm:$0xf]
        %v687 = vld [vmem:[%s6 + $0x34] sm:$0xf]
        %v688 = vld [vmem:[%s6 + $0x38] sm:$0xf]
        %v689 = vld [vmem:[%s6 + $0x3c] sm:$0xf]
        %v690 = vld [vmem:[%s9] sm:$0x1]
        %v692 = vlaneseq
        %v693 = vshrl.u32 %v692, 7
        %v694 = vsub.s32 0, %v693
        %v695 = vrot.slane %v690, %v694
        %v713 = vunpack.c.l.b16 %v674
        %v714 = vunpack.c.l.b16 %v675
        %v715 = vunpack.c.l.b16 %v676
        %v716 = vunpack.c.l.b16 %v677
        %v717 = vunpack.c.l.b16 %v678
        %v718 = vunpack.c.l.b16 %v679
        %v719 = vunpack.c.l.b16 %v680
        %v720 = vunpack.c.l.b16 %v681
        %v721 = vunpack.c.l.b16 %v682
        %v722 = vunpack.c.l.b16 %v683
        %v723 = vunpack.c.l.b16 %v684
        %v724 = vunpack.c.l.b16 %v685
        %v725 = vunpack.c.l.b16 %v686
        %v726 = vunpack.c.l.b16 %v687
        %v727 = vunpack.c.l.b16 %v688
        %v728 = vunpack.c.l.b16 %v689
        %v729 = vpack.c.b16 %v714, %v713
        %v730 = vpack.c.b16 %v716, %v715
        %v731 = vpack.c.b16 %v718, %v717
        %v732 = vpack.c.b16 %v720, %v719
        %v733 = vpack.c.b16 %v722, %v721
        %v734 = vpack.c.b16 %v724, %v723
        %v735 = vpack.c.b16 %v726, %v725
        %v736 = vpack.c.b16 %v728, %v727
        %745 = vmatprep.subr.bf16.mxu0 0
        %746 = vmatpush1.bf16.msra.mxu0 %v736
        %747 = vmatprep.subr.bf16.mxu0 0
        %748 = vmatpush1.bf16.msra.mxu0 %v735
        %749 = vmatprep.subr.bf16.mxu0 0
        %750 = vmatpush1.bf16.msra.mxu0 %v734
        %751 = vmatprep.subr.bf16.mxu0 0
        %752 = vmatpush1.bf16.msra.mxu0 %v733
        %753 = vmatprep.subr.bf16.mxu0 0
        %754 = vmatpush1.bf16.msra.mxu0 %v732
        %755 = vmatprep.subr.bf16.mxu0 0
        %756 = vmatpush1.bf16.msra.mxu0 %v731
        %757 = vmatprep.subr.bf16.mxu0 0
        %758 = vmatpush1.bf16.msra.mxu0 %v730
        %759 = vmatprep.subr.bf16.mxu0 0
        %760 = vmatpush1.bf16.msra.mxu0 %v729
        %761 = vmatprep.subr.bf16.mxu0 0
        %762 = vmatpush2.bf16.msra.mxu0 0
        %763 = vmatprep.subr.bf16.mxu0 0
        %764 = vmatpush2.bf16.msra.mxu0 0
        %765 = vmatprep.subr.bf16.mxu0 0
        %766 = vmatpush2.bf16.msra.mxu0 0
        %767 = vmatprep.subr.bf16.mxu0 0
        %768 = vmatpush2.bf16.msra.mxu0 0
        %769 = vmatprep.subr.bf16.mxu0 0
        %770 = vmatpush2.bf16.msra.mxu0 0
        %771 = vmatprep.subr.bf16.mxu0 0
        %772 = vmatpush2.bf16.msra.mxu0 0
        %773 = vmatprep.subr.bf16.mxu0 0
        %774 = vmatpush2.bf16.msra.mxu0 0
        %775 = vmatprep.subr.bf16.mxu0 0
        %776 = vmatpush2.bf16.msra.mxu0 0
        %777 = vmatprep.mubr.bf16.mxu0 0
        %778 = vmatmul.mubr.bf16.gmra.mxu0 %v552
        %v779 = vpop.f32.mrf.mxu0
        %v780 = vadd.f32 %v695, %v779
        %v781 = vpop.f32.mrf.mxu0
        %v782 = vpop.f32.mrf.mxu0
        %v783 = vadd.f32 %v695, %v782
        %v784 = vpop.f32.mrf.mxu0
        %785 = vmatprep.mubr.bf16.mxu0 0
        %786 = vmatmul.mubr.bf16.gmra.mxu0 %v553
        %v787 = vpop.f32.mrf.mxu0
        %v788 = vadd.f32 %v695, %v787
        %v789 = vpop.f32.mrf.mxu0
        %v790 = vpop.f32.mrf.mxu0
        %v791 = vadd.f32 %v695, %v790
        %v792 = vpop.f32.mrf.mxu0
        %793 = vdwg.mxu0
        %v794 = vld [vmem:[%s7] sm:$0xf]
        %v795 = vld [vmem:[%s7 + $0x4] sm:$0xf]
        %v796 = vld [vmem:[%s7 + $0x8] sm:$0xf]
        %v797 = vld [vmem:[%s7 + $0xc] sm:$0xf]
        %v798 = vld [vmem:[%s7 + $0x10] sm:$0xf]
        %v799 = vld [vmem:[%s7 + $0x14] sm:$0xf]
        %v800 = vld [vmem:[%s7 + $0x18] sm:$0xf]
        %v801 = vld [vmem:[%s7 + $0x1c] sm:$0xf]
        %v802 = vld [vmem:[%s7 + $0x20] sm:$0xf]
        %v803 = vld [vmem:[%s7 + $0x24] sm:$0xf]
        %v804 = vld [vmem:[%s7 + $0x28] sm:$0xf]
        %v805 = vld [vmem:[%s7 + $0x2c] sm:$0xf]
        %v806 = vld [vmem:[%s7 + $0x30] sm:$0xf]
        %v807 = vld [vmem:[%s7 + $0x34] sm:$0xf]
        %v808 = vld [vmem:[%s7 + $0x38] sm:$0xf]
        %v809 = vld [vmem:[%s7 + $0x3c] sm:$0xf]
        %v810 = vld [vmem:[%s10] sm:$0x1]
        %v812 = vlaneseq
        %v813 = vshrl.u32 %v812, 7
        %v814 = vsub.s32 0, %v813
        %v815 = vrot.slane %v810, %v814
        %v833 = vunpack.c.l.b16 %v794
        %v834 = vunpack.c.l.b16 %v795
        %v835 = vunpack.c.l.b16 %v796
        %v836 = vunpack.c.l.b16 %v797
        %v837 = vunpack.c.l.b16 %v798
        %v838 = vunpack.c.l.b16 %v799
        %v839 = vunpack.c.l.b16 %v800
        %v840 = vunpack.c.l.b16 %v801
        %v841 = vunpack.c.l.b16 %v802
        %v842 = vunpack.c.l.b16 %v803
        %v843 = vunpack.c.l.b16 %v804
        %v844 = vunpack.c.l.b16 %v805
        %v845 = vunpack.c.l.b16 %v806
        %v846 = vunpack.c.l.b16 %v807
        %v847 = vunpack.c.l.b16 %v808
        %v848 = vunpack.c.l.b16 %v809
        %v849 = vpack.c.b16 %v834, %v833
        %v850 = vpack.c.b16 %v836, %v835
        %v851 = vpack.c.b16 %v838, %v837
        %v852 = vpack.c.b16 %v840, %v839
        %v853 = vpack.c.b16 %v842, %v841
        %v854 = vpack.c.b16 %v844, %v843
        %v855 = vpack.c.b16 %v846, %v845
        %v856 = vpack.c.b16 %v848, %v847
        %865 = vmatprep.subr.bf16.mxu0 0
        %866 = vmatpush1.bf16.msra.mxu0 %v856
        %867 = vmatprep.subr.bf16.mxu0 0
        %868 = vmatpush1.bf16.msra.mxu0 %v855
        %869 = vmatprep.subr.bf16.mxu0 0
        %870 = vmatpush1.bf16.msra.mxu0 %v854
        %871 = vmatprep.subr.bf16.mxu0 0
        %872 = vmatpush1.bf16.msra.mxu0 %v853
        %873 = vmatprep.subr.bf16.mxu0 0
        %874 = vmatpush1.bf16.msra.mxu0 %v852
        %875 = vmatprep.subr.bf16.mxu0 0
        %876 = vmatpush1.bf16.msra.mxu0 %v851
        %877 = vmatprep.subr.bf16.mxu0 0
        %878 = vmatpush1.bf16.msra.mxu0 %v850
        %879 = vmatprep.subr.bf16.mxu0 0
        %880 = vmatpush1.bf16.msra.mxu0 %v849
        %881 = vmatprep.subr.bf16.mxu0 0
        %882 = vmatpush2.bf16.msra.mxu0 0
        %883 = vmatprep.subr.bf16.mxu0 0
        %884 = vmatpush2.bf16.msra.mxu0 0
        %885 = vmatprep.subr.bf16.mxu0 0
        %886 = vmatpush2.bf16.msra.mxu0 0
        %887 = vmatprep.subr.bf16.mxu0 0
        %888 = vmatpush2.bf16.msra.mxu0 0
        %889 = vmatprep.subr.bf16.mxu0 0
        %890 = vmatpush2.bf16.msra.mxu0 0
        %891 = vmatprep.subr.bf16.mxu0 0
        %892 = vmatpush2.bf16.msra.mxu0 0
        %893 = vmatprep.subr.bf16.mxu0 0
        %894 = vmatpush2.bf16.msra.mxu0 0
        %895 = vmatprep.subr.bf16.mxu0 0
        %896 = vmatpush2.bf16.msra.mxu0 0
        %897 = vmatprep.mubr.bf16.mxu0 0
        %898 = vmatmul.mubr.bf16.gmra.mxu0 %v552
        %v899 = vpop.f32.mrf.mxu0
        %v900 = vadd.f32 %v815, %v899
        %v901 = vpop.f32.mrf.mxu0
        %v902 = vpop.f32.mrf.mxu0
        %v903 = vadd.f32 %v815, %v902
        %v904 = vpop.f32.mrf.mxu0
        %905 = vmatprep.mubr.bf16.mxu0 0
        %906 = vmatmul.mubr.bf16.gmra.mxu0 %v553
        %v907 = vpop.f32.mrf.mxu0
        %v908 = vadd.f32 %v815, %v907
        %v909 = vpop.f32.mrf.mxu0
        %v910 = vpop.f32.mrf.mxu0
        %v911 = vadd.f32 %v815, %v910
        %v912 = vpop.f32.mrf.mxu0
        %913 = vdwg.mxu0
        %v914 = vld [vmem:[%s472] sm:$0x1]
        %v915 = vld [vmem:[%s472 + $0x1] sm:$0x1]
        %v916 = vld [vmem:[%s472 + $0x2] sm:$0x1]
        %v917 = vld [vmem:[%s472 + $0x3] sm:$0x1]
        %v918 = vld [vmem:[%s477] sm:$0x1]
        %v919 = vld [vmem:[%s477 + $0x1] sm:$0x1]
        %v920 = vld [vmem:[%s477 + $0x2] sm:$0x1]
        %v921 = vld [vmem:[%s477 + $0x3] sm:$0x1]
        %v922 = vlaneseq
        %v923 = vshrl.u32 %v922, 7
        %v924 = vlaneseq
        %v925 = vand.u32 %v924, 127
        %vm926 = vcmp.le.s32.totalorder %v925, %v923
        %v927 = vsel %vm926, 0.0, -1e+30
        %vm928 = vcmp.ge.s32.totalorder %v925, 0
        %vm929 = vcmp.lt.s32.totalorder %v925, 32
        %vm930 = vmand %vm928, %vm929
        %v931 = vsel %vm930, 1, 0
        %v932 = vcvt.s32.f32 %v931
        %v933 = vmul.f32 %v660, %v932
        %v934 = vmul.f32 %v663, %v932
        %v935 = vmul.f32 %v668, %v932
        %v936 = vmul.f32 %v671, %v932
        %937 = vmatprep.subr.mxu0 0.0
        %938 = vmatpush1.xpose.msra.mxu0 0.0
        %939 = vmatprep.subr.mxu0 0.0
        %940 = vmatpush1.xpose.msra.mxu0 0.0
        %941 = vmatprep.subr.mxu0 0.0
        %942 = vmatpush1.xpose.msra.mxu0 0.0
        %943 = vmatprep.subr.mxu0 0.0
        %944 = vmatpush1.xpose.msra.mxu0 0.0
        %945 = vmatprep.subr.mxu0 0.0
        %946 = vmatpush1.xpose.msra.mxu0 0.0
        %947 = vmatprep.subr.mxu0 0.0
        %948 = vmatpush1.xpose.msra.mxu0 0.0
        %949 = vmatprep.subr.mxu0 0.0
        %950 = vmatpush1.xpose.msra.mxu0 0.0
        %951 = vmatprep.subr.mxu0 0.0
        %952 = vmatpush1.xpose.msra.mxu0 0.0
        %953 = vmatprep.subr.mxu0 0.0
        %954 = vmatpush1.xpose.msra.mxu0 0.0
        %955 = vmatprep.subr.mxu0 0.0
        %956 = vmatpush1.xpose.msra.mxu0 0.0
        %957 = vmatprep.subr.mxu0 0.0
        %958 = vmatpush1.xpose.msra.mxu0 0.0
        %959 = vmatprep.subr.mxu0 0.0
        %960 = vmatpush1.xpose.msra.mxu0 0.0
        %961 = vmatprep.subr.mxu0 0.0
        %962 = vmatpush1.xpose.msra.mxu0 0.0
        %963 = vmatprep.subr.mxu0 0.0
        %964 = vmatpush1.xpose.msra.mxu0 0.0
        %965 = vmatprep.subr.mxu0 0.0
        %966 = vmatpush1.xpose.msra.mxu0 0.0
        %967 = vmatprep.subr.mxu0 0.0
        %968 = vmatpush1.xpose.msra.mxu0 %v780
        %969 = vmatprep.subr.mxu0 0.0
        %970 = vmatpush2.xpose.msra.mxu0 0.0
        %971 = vmatprep.subr.mxu0 0.0
        %972 = vmatpush2.xpose.msra.mxu0 0.0
        %973 = vmatprep.subr.mxu0 0.0
        %974 = vmatpush2.xpose.msra.mxu0 0.0
        %975 = vmatprep.subr.mxu0 0.0
        %976 = vmatpush2.xpose.msra.mxu0 0.0
        %977 = vmatprep.subr.mxu0 0.0
        %978 = vmatpush2.xpose.msra.mxu0 0.0
        %979 = vmatprep.subr.mxu0 0.0
        %980 = vmatpush2.xpose.msra.mxu0 0.0
        %981 = vmatprep.subr.mxu0 0.0
        %982 = vmatpush2.xpose.msra.mxu0 0.0
        %983 = vmatprep.subr.mxu0 0.0
        %984 = vmatpush2.xpose.msra.mxu0 0.0
        %985 = vmatprep.subr.mxu0 0.0
        %986 = vmatpush2.xpose.msra.mxu0 0.0
        %987 = vmatprep.subr.mxu0 0.0
        %988 = vmatpush2.xpose.msra.mxu0 0.0
        %989 = vmatprep.subr.mxu0 0.0
        %990 = vmatpush2.xpose.msra.mxu0 0.0
        %991 = vmatprep.subr.mxu0 0.0
        %992 = vmatpush2.xpose.msra.mxu0 0.0
        %993 = vmatprep.subr.mxu0 0.0
        %994 = vmatpush2.xpose.msra.mxu0 0.0
        %995 = vmatprep.subr.mxu0 0.0
        %996 = vmatpush2.xpose.msra.mxu0 0.0
        %997 = vmatprep.subr.mxu0 0.0
        %998 = vmatpush2.xpose.msra.mxu0 0.0
        %999 = vmatprep.subr.mxu0 0.0
        %1000 = vmatpush2.xpose.msra.mxu0 0.0
        %1001 = vmatprep.mubr.f32.mxu0 0.0
        %1002 = vmatmul.mubr.f32.gmra.mxu0 %v933
        %v1003 = vpop.f32.mrf.mxu0
        %v1004 = vadd.f32 %v927, %v1003
        %v1005 = vpop.f32.mrf.mxu0
        %1006 = vdwg.mxu0
        %1007 = vmatprep.subr.mxu0 0.0
        %1008 = vmatpush1.xpose.msra.mxu0 0.0
        %1009 = vmatprep.subr.mxu0 0.0
        %1010 = vmatpush1.xpose.msra.mxu0 0.0
        %1011 = vmatprep.subr.mxu0 0.0
        %1012 = vmatpush1.xpose.msra.mxu0 0.0
        %1013 = vmatprep.subr.mxu0 0.0
        %1014 = vmatpush1.xpose.msra.mxu0 0.0
        %1015 = vmatprep.subr.mxu0 0.0
        %1016 = vmatpush1.xpose.msra.mxu0 0.0
        %1017 = vmatprep.subr.mxu0 0.0
        %1018 = vmatpush1.xpose.msra.mxu0 0.0
        %1019 = vmatprep.subr.mxu0 0.0
        %1020 = vmatpush1.xpose.msra.mxu0 0.0
        %1021 = vmatprep.subr.mxu0 0.0
        %1022 = vmatpush1.xpose.msra.mxu0 0.0
        %1023 = vmatprep.subr.mxu0 0.0
        %1024 = vmatpush1.xpose.msra.mxu0 0.0
        %1025 = vmatprep.subr.mxu0 0.0
        %1026 = vmatpush1.xpose.msra.mxu0 0.0
        %1027 = vmatprep.subr.mxu0 0.0
        %1028 = vmatpush1.xpose.msra.mxu0 0.0
        %1029 = vmatprep.subr.mxu0 0.0
        %1030 = vmatpush1.xpose.msra.mxu0 0.0
        %1031 = vmatprep.subr.mxu0 0.0
        %1032 = vmatpush1.xpose.msra.mxu0 0.0
        %1033 = vmatprep.subr.mxu0 0.0
        %1034 = vmatpush1.xpose.msra.mxu0 0.0
        %1035 = vmatprep.subr.mxu0 0.0
        %1036 = vmatpush1.xpose.msra.mxu0 0.0
        %1037 = vmatprep.subr.mxu0 0.0
        %1038 = vmatpush1.xpose.msra.mxu0 %v783
        %1039 = vmatprep.subr.mxu0 0.0
        %1040 = vmatpush2.xpose.msra.mxu0 0.0
        %1041 = vmatprep.subr.mxu0 0.0
        %1042 = vmatpush2.xpose.msra.mxu0 0.0
        %1043 = vmatprep.subr.mxu0 0.0
        %1044 = vmatpush2.xpose.msra.mxu0 0.0
        %1045 = vmatprep.subr.mxu0 0.0
        %1046 = vmatpush2.xpose.msra.mxu0 0.0
        %1047 = vmatprep.subr.mxu0 0.0
        %1048 = vmatpush2.xpose.msra.mxu0 0.0
        %1049 = vmatprep.subr.mxu0 0.0
        %1050 = vmatpush2.xpose.msra.mxu0 0.0
        %1051 = vmatprep.subr.mxu0 0.0
        %1052 = vmatpush2.xpose.msra.mxu0 0.0
        %1053 = vmatprep.subr.mxu0 0.0
        %1054 = vmatpush2.xpose.msra.mxu0 0.0
        %1055 = vmatprep.subr.mxu0 0.0
        %1056 = vmatpush2.xpose.msra.mxu0 0.0
        %1057 = vmatprep.subr.mxu0 0.0
        %1058 = vmatpush2.xpose.msra.mxu0 0.0
        %1059 = vmatprep.subr.mxu0 0.0
        %1060 = vmatpush2.xpose.msra.mxu0 0.0
        %1061 = vmatprep.subr.mxu0 0.0
        %1062 = vmatpush2.xpose.msra.mxu0 0.0
        %1063 = vmatprep.subr.mxu0 0.0
        %1064 = vmatpush2.xpose.msra.mxu0 0.0
        %1065 = vmatprep.subr.mxu0 0.0
        %1066 = vmatpush2.xpose.msra.mxu0 0.0
        %1067 = vmatprep.subr.mxu0 0.0
        %1068 = vmatpush2.xpose.msra.mxu0 0.0
        %1069 = vmatprep.subr.mxu0 0.0
        %1070 = vmatpush2.xpose.msra.mxu0 0.0
        %1071 = vmatprep.mubr.f32.mxu0 0.0
        %1072 = vmatmul.mubr.f32.gmra.mxu0 %v934
        %v1073 = vpop.f32.mrf.mxu0
        %v1074 = vadd.f32 %v927, %v1073
        %v1075 = vpop.f32.mrf.mxu0
        %1076 = vdwg.mxu0
        %1077 = vmatprep.subr.mxu0 0.0
        %1078 = vmatpush1.xpose.msra.mxu0 0.0
        %1079 = vmatprep.subr.mxu0 0.0
        %1080 = vmatpush1.xpose.msra.mxu0 0.0
        %1081 = vmatprep.subr.mxu0 0.0
        %1082 = vmatpush1.xpose.msra.mxu0 0.0
        %1083 = vmatprep.subr.mxu0 0.0
        %1084 = vmatpush1.xpose.msra.mxu0 0.0
        %1085 = vmatprep.subr.mxu0 0.0
        %1086 = vmatpush1.xpose.msra.mxu0 0.0
        %1087 = vmatprep.subr.mxu0 0.0
        %1088 = vmatpush1.xpose.msra.mxu0 0.0
        %1089 = vmatprep.subr.mxu0 0.0
        %1090 = vmatpush1.xpose.msra.mxu0 0.0
        %1091 = vmatprep.subr.mxu0 0.0
        %1092 = vmatpush1.xpose.msra.mxu0 0.0
        %1093 = vmatprep.subr.mxu0 0.0
        %1094 = vmatpush1.xpose.msra.mxu0 0.0
        %1095 = vmatprep.subr.mxu0 0.0
        %1096 = vmatpush1.xpose.msra.mxu0 0.0
        %1097 = vmatprep.subr.mxu0 0.0
        %1098 = vmatpush1.xpose.msra.mxu0 0.0
        %1099 = vmatprep.subr.mxu0 0.0
        %1100 = vmatpush1.xpose.msra.mxu0 0.0
        %1101 = vmatprep.subr.mxu0 0.0
        %1102 = vmatpush1.xpose.msra.mxu0 0.0
        %1103 = vmatprep.subr.mxu0 0.0
        %1104 = vmatpush1.xpose.msra.mxu0 0.0
        %1105 = vmatprep.subr.mxu0 0.0
        %1106 = vmatpush1.xpose.msra.mxu0 0.0
        %1107 = vmatprep.subr.mxu0 0.0
        %1108 = vmatpush1.xpose.msra.mxu0 %v788
        %1109 = vmatprep.subr.mxu0 0.0
        %1110 = vmatpush2.xpose.msra.mxu0 0.0
        %1111 = vmatprep.subr.mxu0 0.0
        %1112 = vmatpush2.xpose.msra.mxu0 0.0
        %1113 = vmatprep.subr.mxu0 0.0
        %1114 = vmatpush2.xpose.msra.mxu0 0.0
        %1115 = vmatprep.subr.mxu0 0.0
        %1116 = vmatpush2.xpose.msra.mxu0 0.0
        %1117 = vmatprep.subr.mxu0 0.0
        %1118 = vmatpush2.xpose.msra.mxu0 0.0
        %1119 = vmatprep.subr.mxu0 0.0
        %1120 = vmatpush2.xpose.msra.mxu0 0.0
        %1121 = vmatprep.subr.mxu0 0.0
        %1122 = vmatpush2.xpose.msra.mxu0 0.0
        %1123 = vmatprep.subr.mxu0 0.0
        %1124 = vmatpush2.xpose.msra.mxu0 0.0
        %1125 = vmatprep.subr.mxu0 0.0
        %1126 = vmatpush2.xpose.msra.mxu0 0.0
        %1127 = vmatprep.subr.mxu0 0.0
        %1128 = vmatpush2.xpose.msra.mxu0 0.0
        %1129 = vmatprep.subr.mxu0 0.0
        %1130 = vmatpush2.xpose.msra.mxu0 0.0
        %1131 = vmatprep.subr.mxu0 0.0
        %1132 = vmatpush2.xpose.msra.mxu0 0.0
        %1133 = vmatprep.subr.mxu0 0.0
        %1134 = vmatpush2.xpose.msra.mxu0 0.0
        %1135 = vmatprep.subr.mxu0 0.0
        %1136 = vmatpush2.xpose.msra.mxu0 0.0
        %1137 = vmatprep.subr.mxu0 0.0
        %1138 = vmatpush2.xpose.msra.mxu0 0.0
        %1139 = vmatprep.subr.mxu0 0.0
        %1140 = vmatpush2.xpose.msra.mxu0 0.0
        %1141 = vmatprep.mubr.f32.mxu0 0.0
        %1142 = vmatmul.mubr.f32.gmra.mxu0 %v935
        %v1143 = vpop.f32.mrf.mxu0
        %v1144 = vadd.f32 %v927, %v1143
        %v1145 = vpop.f32.mrf.mxu0
        %1146 = vdwg.mxu0
        %1147 = vmatprep.subr.mxu0 0.0
        %1148 = vmatpush1.xpose.msra.mxu0 0.0
        %1149 = vmatprep.subr.mxu0 0.0
        %1150 = vmatpush1.xpose.msra.mxu0 0.0
        %1151 = vmatprep.subr.mxu0 0.0
        %1152 = vmatpush1.xpose.msra.mxu0 0.0
        %1153 = vmatprep.subr.mxu0 0.0
        %1154 = vmatpush1.xpose.msra.mxu0 0.0
        %1155 = vmatprep.subr.mxu0 0.0
        %1156 = vmatpush1.xpose.msra.mxu0 0.0
        %1157 = vmatprep.subr.mxu0 0.0
        %1158 = vmatpush1.xpose.msra.mxu0 0.0
        %1159 = vmatprep.subr.mxu0 0.0
        %1160 = vmatpush1.xpose.msra.mxu0 0.0
        %1161 = vmatprep.subr.mxu0 0.0
        %1162 = vmatpush1.xpose.msra.mxu0 0.0
        %1163 = vmatprep.subr.mxu0 0.0
        %1164 = vmatpush1.xpose.msra.mxu0 0.0
        %1165 = vmatprep.subr.mxu0 0.0
        %1166 = vmatpush1.xpose.msra.mxu0 0.0
        %1167 = vmatprep.subr.mxu0 0.0
        %1168 = vmatpush1.xpose.msra.mxu0 0.0
        %1169 = vmatprep.subr.mxu0 0.0
        %1170 = vmatpush1.xpose.msra.mxu0 0.0
        %1171 = vmatprep.subr.mxu0 0.0
        %1172 = vmatpush1.xpose.msra.mxu0 0.0
        %1173 = vmatprep.subr.mxu0 0.0
        %1174 = vmatpush1.xpose.msra.mxu0 0.0
        %1175 = vmatprep.subr.mxu0 0.0
        %1176 = vmatpush1.xpose.msra.mxu0 0.0
        %1177 = vmatprep.subr.mxu0 0.0
        %1178 = vmatpush1.xpose.msra.mxu0 %v791
        %1179 = vmatprep.subr.mxu0 0.0
        %1180 = vmatpush2.xpose.msra.mxu0 0.0
        %1181 = vmatprep.subr.mxu0 0.0
        %1182 = vmatpush2.xpose.msra.mxu0 0.0
        %1183 = vmatprep.subr.mxu0 0.0
        %1184 = vmatpush2.xpose.msra.mxu0 0.0
        %1185 = vmatprep.subr.mxu0 0.0
        %1186 = vmatpush2.xpose.msra.mxu0 0.0
        %1187 = vmatprep.subr.mxu0 0.0
        %1188 = vmatpush2.xpose.msra.mxu0 0.0
        %1189 = vmatprep.subr.mxu0 0.0
        %1190 = vmatpush2.xpose.msra.mxu0 0.0
        %1191 = vmatprep.subr.mxu0 0.0
        %1192 = vmatpush2.xpose.msra.mxu0 0.0
        %1193 = vmatprep.subr.mxu0 0.0
        %1194 = vmatpush2.xpose.msra.mxu0 0.0
        %1195 = vmatprep.subr.mxu0 0.0
        %1196 = vmatpush2.xpose.msra.mxu0 0.0
        %1197 = vmatprep.subr.mxu0 0.0
        %1198 = vmatpush2.xpose.msra.mxu0 0.0
        %1199 = vmatprep.subr.mxu0 0.0
        %1200 = vmatpush2.xpose.msra.mxu0 0.0
        %1201 = vmatprep.subr.mxu0 0.0
        %1202 = vmatpush2.xpose.msra.mxu0 0.0
        %1203 = vmatprep.subr.mxu0 0.0
        %1204 = vmatpush2.xpose.msra.mxu0 0.0
        %1205 = vmatprep.subr.mxu0 0.0
        %1206 = vmatpush2.xpose.msra.mxu0 0.0
        %1207 = vmatprep.subr.mxu0 0.0
        %1208 = vmatpush2.xpose.msra.mxu0 0.0
        %1209 = vmatprep.subr.mxu0 0.0
        %1210 = vmatpush2.xpose.msra.mxu0 0.0
        %1211 = vmatprep.mubr.f32.mxu0 0.0
        %1212 = vmatmul.mubr.f32.gmra.mxu0 %v936
        %v1213 = vpop.f32.mrf.mxu0
        %v1214 = vadd.f32 %v927, %v1213
        %v1215 = vpop.f32.mrf.mxu0
        %1216 = vdwg.mxu0
        %v1221 = vlaneseq
        %v1222 = vshrl.u32 %v1221, 7
        %v1223 = vsub.s32 0, %v1222
        %v1224 = vrot.slane %v914, %v1223
        %v1225 = vlaneseq
        %v1226 = vshrl.u32 %v1225, 7
        %v1227 = vsub.s32 0, %v1226
        %v1228 = vrot.slane %v915, %v1227
        %v1229 = vlaneseq
        %v1230 = vshrl.u32 %v1229, 7
        %v1231 = vsub.s32 0, %v1230
        %v1232 = vrot.slane %v916, %v1231
        %v1233 = vlaneseq
        %v1234 = vshrl.u32 %v1233, 7
        %v1235 = vsub.s32 0, %v1234
        %v1236 = vrot.slane %v917, %v1235
        %v1241 = vmul.f32 %v933, %v1224
        %v1242 = vmul.f32 %v934, %v1228
        %v1243 = vmul.f32 %v935, %v1232
        %v1244 = vmul.f32 %v936, %v1236
        %1245 = vadd.xlane.f32.xlu0 %v1241
        %v1246 = vpop.xlane.xlu0 %1245
        %1247 = vadd.xlane.f32.xlu0 %v1242
        %v1248 = vpop.xlane.xlu0 %1247
        %1249 = vadd.xlane.f32.xlu0 %v1243
        %v1250 = vpop.xlane.xlu0 %1249
        %1251 = vadd.xlane.f32.xlu0 %v1244
        %v1252 = vpop.xlane.xlu0 %1251
        %vm1253 = vcmask 64512
        %v1254 = vsel %vm1253, %v1004, -inf
        %1255 = vmax.xlane.f32.xlu0 %v1254
        %v1256 = vpop.xlane.xlu0 %1255
        %v1257 = vsel %vm1253, %v1074, -inf
        %1258 = vmax.xlane.f32.xlu0 %v1257
        %v1259 = vpop.xlane.xlu0 %1258
        %v1260 = vsel %vm1253, %v1144, -inf
        %1261 = vmax.xlane.f32.xlu0 %v1260
        %v1262 = vpop.xlane.xlu0 %1261
        %v1263 = vsel %vm1253, %v1214, -inf
        %1264 = vmax.xlane.f32.xlu0 %v1263
        %v1265 = vpop.xlane.xlu0 %1264
        %v1266 = vmax.f32 %v1256, %v1246
        %v1267 = vmax.f32 %v1259, %v1248
        %v1268 = vmax.f32 %v1262, %v1250
        %v1269 = vmax.f32 %v1265, %v1252
        %v1270 = vsub.f32 %v1004, %v1266
        %v1271 = vsub.f32 %v1074, %v1267
        %v1272 = vsub.f32 %v1144, %v1268
        %v1273 = vsub.f32 %v1214, %v1269
        %v1274 = vmul.f32 %v1270, 1.442695
        %v1275 = vpow.pop %v1274
        %v1276 = vmul.f32 %v1271, 1.442695
        %v1277 = vpow.pop %v1276
        %v1278 = vmul.f32 %v1272, 1.442695
        %v1279 = vpow.pop %v1278
        %v1280 = vmul.f32 %v1273, 1.442695
        %v1281 = vpow.pop %v1280
        %v1282 = vsub.f32 %v1246, %v1266
        %v1283 = vsub.f32 %v1248, %v1267
        %v1284 = vsub.f32 %v1250, %v1268
        %v1285 = vsub.f32 %v1252, %v1269
        %v1286 = vmul.f32 %v1282, 1.442695
        %v1287 = vpow.pop %v1286
        %v1288 = vmul.f32 %v1283, 1.442695
        %v1289 = vpow.pop %v1288
        %v1290 = vmul.f32 %v1284, 1.442695
        %v1291 = vpow.pop %v1290
        %v1292 = vmul.f32 %v1285, 1.442695
        %v1293 = vpow.pop %v1292
        %v1294 = vsel %vm1253, %v1275, 0.0
        %1295 = vadd.xlane.f32.xlu0 %v1294
        %v1296 = vpop.xlane.xlu0 %1295
        %v1297 = vsel %vm1253, %v1277, 0.0
        %1298 = vadd.xlane.f32.xlu0 %v1297
        %v1299 = vpop.xlane.xlu0 %1298
        %v1300 = vsel %vm1253, %v1279, 0.0
        %1301 = vadd.xlane.f32.xlu0 %v1300
        %v1302 = vpop.xlane.xlu0 %1301
        %v1303 = vsel %vm1253, %v1281, 0.0
        %1304 = vadd.xlane.f32.xlu0 %v1303
        %v1305 = vpop.xlane.xlu0 %1304
        %v1306 = vadd.f32 %v1296, %v1287
        %v1307 = vadd.f32 %v1299, %v1289
        %v1308 = vadd.f32 %v1302, %v1291
        %v1309 = vadd.f32 %v1305, %v1293
        %v1310 = vrcp.pop %v1306
        %v1311 = vrcp.pop %v1307
        %v1312 = vrcp.pop %v1308
        %v1313 = vrcp.pop %v1309
        %v1318 = vlaneseq
        %v1319 = vshrl.u32 %v1318, 7
        %v1320 = vsub.s32 0, %v1319
        %v1321 = vrot.slane %v918, %v1320
        %v1322 = vlaneseq
        %v1323 = vshrl.u32 %v1322, 7
        %v1324 = vsub.s32 0, %v1323
        %v1325 = vrot.slane %v919, %v1324
        %v1326 = vlaneseq
        %v1327 = vshrl.u32 %v1326, 7
        %v1328 = vsub.s32 0, %v1327
        %v1329 = vrot.slane %v920, %v1328
        %v1330 = vlaneseq
        %v1331 = vshrl.u32 %v1330, 7
        %v1332 = vsub.s32 0, %v1331
        %v1333 = vrot.slane %v921, %v1332
        %v1338 = vmul.f32 %v1287, %v1321
        %v1339 = vmul.f32 %v1289, %v1325
        %v1340 = vmul.f32 %v1291, %v1329
        %v1341 = vmul.f32 %v1293, %v1333
        %v1343 = vsel %vm1253, %v1275, 0
        %1345 = vmatprep.subr.mxu0 0.0
        %1346 = vmatpush1.msra.mxu0 0.0
        %1347 = vmatprep.subr.mxu0 0.0
        %1348 = vmatpush1.msra.mxu0 0.0
        %1349 = vmatprep.subr.mxu0 0.0
        %1350 = vmatpush1.msra.mxu0 0.0
        %1351 = vmatprep.subr.mxu0 0.0
        %1352 = vmatpush1.msra.mxu0 0.0
        %1353 = vmatprep.subr.mxu0 0.0
        %1354 = vmatpush1.msra.mxu0 0.0
        %1355 = vmatprep.subr.mxu0 0.0
        %1356 = vmatpush1.msra.mxu0 0.0
        %1357 = vmatprep.subr.mxu0 0.0
        %1358 = vmatpush1.msra.mxu0 0.0
        %1359 = vmatprep.subr.mxu0 0.0
        %1360 = vmatpush1.msra.mxu0 0.0
        %1361 = vmatprep.subr.mxu0 0.0
        %1362 = vmatpush1.msra.mxu0 0.0
        %1363 = vmatprep.subr.mxu0 0.0
        %1364 = vmatpush1.msra.mxu0 0.0
        %1365 = vmatprep.subr.mxu0 0.0
        %1366 = vmatpush1.msra.mxu0 0.0
        %1367 = vmatprep.subr.mxu0 0.0
        %1368 = vmatpush1.msra.mxu0 0.0
        %1369 = vmatprep.subr.mxu0 0.0
        %1370 = vmatpush1.msra.mxu0 0.0
        %1371 = vmatprep.subr.mxu0 0.0
        %1372 = vmatpush1.msra.mxu0 0.0
        %1373 = vmatprep.subr.mxu0 0.0
        %1374 = vmatpush1.msra.mxu0 0.0
        %1375 = vmatprep.subr.mxu0 0.0
        %1376 = vmatpush1.msra.mxu0 %v900
        %1377 = vmatprep.subr.mxu0 0.0
        %1378 = vmatpush2.msra.mxu0 0.0
        %1379 = vmatprep.subr.mxu0 0.0
        %1380 = vmatpush2.msra.mxu0 0.0
        %1381 = vmatprep.subr.mxu0 0.0
        %1382 = vmatpush2.msra.mxu0 0.0
        %1383 = vmatprep.subr.mxu0 0.0
        %1384 = vmatpush2.msra.mxu0 0.0
        %1385 = vmatprep.subr.mxu0 0.0
        %1386 = vmatpush2.msra.mxu0 0.0
        %1387 = vmatprep.subr.mxu0 0.0
        %1388 = vmatpush2.msra.mxu0 0.0
        %1389 = vmatprep.subr.mxu0 0.0
        %1390 = vmatpush2.msra.mxu0 0.0
        %1391 = vmatprep.subr.mxu0 0.0
        %1392 = vmatpush2.msra.mxu0 0.0
        %1393 = vmatprep.subr.mxu0 0.0
        %1394 = vmatpush2.msra.mxu0 0.0
        %1395 = vmatprep.subr.mxu0 0.0
        %1396 = vmatpush2.msra.mxu0 0.0
        %1397 = vmatprep.subr.mxu0 0.0
        %1398 = vmatpush2.msra.mxu0 0.0
        %1399 = vmatprep.subr.mxu0 0.0
        %1400 = vmatpush2.msra.mxu0 0.0
        %1401 = vmatprep.subr.mxu0 0.0
        %1402 = vmatpush2.msra.mxu0 0.0
        %1403 = vmatprep.subr.mxu0 0.0
        %1404 = vmatpush2.msra.mxu0 0.0
        %1405 = vmatprep.subr.mxu0 0.0
        %1406 = vmatpush2.msra.mxu0 0.0
        %1407 = vmatprep.subr.mxu0 0.0
        %1408 = vmatpush2.msra.mxu0 0.0
        %1409 = vmatprep.mubr.f32.mxu0 0.0
        %1410 = vmatmul.mubr.f32.gmra.mxu0 %v1343
        %v1411 = vpop.f32.mrf.mxu0
        %v1412 = vadd.f32 %v1338, %v1411
        %v1413 = vpop.f32.mrf.mxu0
        %1414 = vdwg.mxu0
        %v1416 = vsel %vm1253, %v1277, 0
        %1418 = vmatprep.subr.mxu0 0.0
        %1419 = vmatpush1.msra.mxu0 0.0
        %1420 = vmatprep.subr.mxu0 0.0
        %1421 = vmatpush1.msra.mxu0 0.0
        %1422 = vmatprep.subr.mxu0 0.0
        %1423 = vmatpush1.msra.mxu0 0.0
        %1424 = vmatprep.subr.mxu0 0.0
        %1425 = vmatpush1.msra.mxu0 0.0
        %1426 = vmatprep.subr.mxu0 0.0
        %1427 = vmatpush1.msra.mxu0 0.0
        %1428 = vmatprep.subr.mxu0 0.0
        %1429 = vmatpush1.msra.mxu0 0.0
        %1430 = vmatprep.subr.mxu0 0.0
        %1431 = vmatpush1.msra.mxu0 0.0
        %1432 = vmatprep.subr.mxu0 0.0
        %1433 = vmatpush1.msra.mxu0 0.0
        %1434 = vmatprep.subr.mxu0 0.0
        %1435 = vmatpush1.msra.mxu0 0.0
        %1436 = vmatprep.subr.mxu0 0.0
        %1437 = vmatpush1.msra.mxu0 0.0
        %1438 = vmatprep.subr.mxu0 0.0
        %1439 = vmatpush1.msra.mxu0 0.0
        %1440 = vmatprep.subr.mxu0 0.0
        %1441 = vmatpush1.msra.mxu0 0.0
        %1442 = vmatprep.subr.mxu0 0.0
        %1443 = vmatpush1.msra.mxu0 0.0
        %1444 = vmatprep.subr.mxu0 0.0
        %1445 = vmatpush1.msra.mxu0 0.0
        %1446 = vmatprep.subr.mxu0 0.0
        %1447 = vmatpush1.msra.mxu0 0.0
        %1448 = vmatprep.subr.mxu0 0.0
        %1449 = vmatpush1.msra.mxu0 %v903
        %1450 = vmatprep.subr.mxu0 0.0
        %1451 = vmatpush2.msra.mxu0 0.0
        %1452 = vmatprep.subr.mxu0 0.0
        %1453 = vmatpush2.msra.mxu0 0.0
        %1454 = vmatprep.subr.mxu0 0.0
        %1455 = vmatpush2.msra.mxu0 0.0
        %1456 = vmatprep.subr.mxu0 0.0
        %1457 = vmatpush2.msra.mxu0 0.0
        %1458 = vmatprep.subr.mxu0 0.0
        %1459 = vmatpush2.msra.mxu0 0.0
        %1460 = vmatprep.subr.mxu0 0.0
        %1461 = vmatpush2.msra.mxu0 0.0
        %1462 = vmatprep.subr.mxu0 0.0
        %1463 = vmatpush2.msra.mxu0 0.0
        %1464 = vmatprep.subr.mxu0 0.0
        %1465 = vmatpush2.msra.mxu0 0.0
        %1466 = vmatprep.subr.mxu0 0.0
        %1467 = vmatpush2.msra.mxu0 0.0
        %1468 = vmatprep.subr.mxu0 0.0
        %1469 = vmatpush2.msra.mxu0 0.0
        %1470 = vmatprep.subr.mxu0 0.0
        %1471 = vmatpush2.msra.mxu0 0.0
        %1472 = vmatprep.subr.mxu0 0.0
        %1473 = vmatpush2.msra.mxu0 0.0
        %1474 = vmatprep.subr.mxu0 0.0
        %1475 = vmatpush2.msra.mxu0 0.0
        %1476 = vmatprep.subr.mxu0 0.0
        %1477 = vmatpush2.msra.mxu0 0.0
        %1478 = vmatprep.subr.mxu0 0.0
        %1479 = vmatpush2.msra.mxu0 0.0
        %1480 = vmatprep.subr.mxu0 0.0
        %1481 = vmatpush2.msra.mxu0 0.0
        %1482 = vmatprep.mubr.f32.mxu0 0.0
        %1483 = vmatmul.mubr.f32.gmra.mxu0 %v1416
        %v1484 = vpop.f32.mrf.mxu0
        %v1485 = vadd.f32 %v1339, %v1484
        %v1486 = vpop.f32.mrf.mxu0
        %1487 = vdwg.mxu0
        %v1489 = vsel %vm1253, %v1279, 0
        %1491 = vmatprep.subr.mxu0 0.0
        %1492 = vmatpush1.msra.mxu0 0.0
        %1493 = vmatprep.subr.mxu0 0.0
        %1494 = vmatpush1.msra.mxu0 0.0
        %1495 = vmatprep.subr.mxu0 0.0
        %1496 = vmatpush1.msra.mxu0 0.0
        %1497 = vmatprep.subr.mxu0 0.0
        %1498 = vmatpush1.msra.mxu0 0.0
        %1499 = vmatprep.subr.mxu0 0.0
        %1500 = vmatpush1.msra.mxu0 0.0
        %1501 = vmatprep.subr.mxu0 0.0
        %1502 = vmatpush1.msra.mxu0 0.0
        %1503 = vmatprep.subr.mxu0 0.0
        %1504 = vmatpush1.msra.mxu0 0.0
        %1505 = vmatprep.subr.mxu0 0.0
        %1506 = vmatpush1.msra.mxu0 0.0
        %1507 = vmatprep.subr.mxu0 0.0
        %1508 = vmatpush1.msra.mxu0 0.0
        %1509 = vmatprep.subr.mxu0 0.0
        %1510 = vmatpush1.msra.mxu0 0.0
        %1511 = vmatprep.subr.mxu0 0.0
        %1512 = vmatpush1.msra.mxu0 0.0
        %1513 = vmatprep.subr.mxu0 0.0
        %1514 = vmatpush1.msra.mxu0 0.0
        %1515 = vmatprep.subr.mxu0 0.0
        %1516 = vmatpush1.msra.mxu0 0.0
        %1517 = vmatprep.subr.mxu0 0.0
        %1518 = vmatpush1.msra.mxu0 0.0
        %1519 = vmatprep.subr.mxu0 0.0
        %1520 = vmatpush1.msra.mxu0 0.0
        %1521 = vmatprep.subr.mxu0 0.0
        %1522 = vmatpush1.msra.mxu0 %v908
        %1523 = vmatprep.subr.mxu0 0.0
        %1524 = vmatpush2.msra.mxu0 0.0
        %1525 = vmatprep.subr.mxu0 0.0
        %1526 = vmatpush2.msra.mxu0 0.0
        %1527 = vmatprep.subr.mxu0 0.0
        %1528 = vmatpush2.msra.mxu0 0.0
        %1529 = vmatprep.subr.mxu0 0.0
        %1530 = vmatpush2.msra.mxu0 0.0
        %1531 = vmatprep.subr.mxu0 0.0
        %1532 = vmatpush2.msra.mxu0 0.0
        %1533 = vmatprep.subr.mxu0 0.0
        %1534 = vmatpush2.msra.mxu0 0.0
        %1535 = vmatprep.subr.mxu0 0.0
        %1536 = vmatpush2.msra.mxu0 0.0
        %1537 = vmatprep.subr.mxu0 0.0
        %1538 = vmatpush2.msra.mxu0 0.0
        %1539 = vmatprep.subr.mxu0 0.0
        %1540 = vmatpush2.msra.mxu0 0.0
        %1541 = vmatprep.subr.mxu0 0.0
        %1542 = vmatpush2.msra.mxu0 0.0
        %1543 = vmatprep.subr.mxu0 0.0
        %1544 = vmatpush2.msra.mxu0 0.0
        %1545 = vmatprep.subr.mxu0 0.0
        %1546 = vmatpush2.msra.mxu0 0.0
        %1547 = vmatprep.subr.mxu0 0.0
        %1548 = vmatpush2.msra.mxu0 0.0
        %1549 = vmatprep.subr.mxu0 0.0
        %1550 = vmatpush2.msra.mxu0 0.0
        %1551 = vmatprep.subr.mxu0 0.0
        %1552 = vmatpush2.msra.mxu0 0.0
        %1553 = vmatprep.subr.mxu0 0.0
        %1554 = vmatpush2.msra.mxu0 0.0
        %1555 = vmatprep.mubr.f32.mxu0 0.0
        %1556 = vmatmul.mubr.f32.gmra.mxu0 %v1489
        %v1557 = vpop.f32.mrf.mxu0
        %v1558 = vadd.f32 %v1340, %v1557
        %v1559 = vpop.f32.mrf.mxu0
        %1560 = vdwg.mxu0
        %v1562 = vsel %vm1253, %v1281, 0
        %1564 = vmatprep.subr.mxu0 0.0
        %1565 = vmatpush1.msra.mxu0 0.0
        %1566 = vmatprep.subr.mxu0 0.0
        %1567 = vmatpush1.msra.mxu0 0.0
        %1568 = vmatprep.subr.mxu0 0.0
        %1569 = vmatpush1.msra.mxu0 0.0
        %1570 = vmatprep.subr.mxu0 0.0
        %1571 = vmatpush1.msra.mxu0 0.0
        %1572 = vmatprep.subr.mxu0 0.0
        %1573 = vmatpush1.msra.mxu0 0.0
        %1574 = vmatprep.subr.mxu0 0.0
        %1575 = vmatpush1.msra.mxu0 0.0
        %1576 = vmatprep.subr.mxu0 0.0
        %1577 = vmatpush1.msra.mxu0 0.0
        %1578 = vmatprep.subr.mxu0 0.0
        %1579 = vmatpush1.msra.mxu0 0.0
        %1580 = vmatprep.subr.mxu0 0.0
        %1581 = vmatpush1.msra.mxu0 0.0
        %1582 = vmatprep.subr.mxu0 0.0
        %1583 = vmatpush1.msra.mxu0 0.0
        %1584 = vmatprep.subr.mxu0 0.0
        %1585 = vmatpush1.msra.mxu0 0.0
        %1586 = vmatprep.subr.mxu0 0.0
        %1587 = vmatpush1.msra.mxu0 0.0
        %1588 = vmatprep.subr.mxu0 0.0
        %1589 = vmatpush1.msra.mxu0 0.0
        %1590 = vmatprep.subr.mxu0 0.0
        %1591 = vmatpush1.msra.mxu0 0.0
        %1592 = vmatprep.subr.mxu0 0.0
        %1593 = vmatpush1.msra.mxu0 0.0
        %1594 = vmatprep.subr.mxu0 0.0
        %1595 = vmatpush1.msra.mxu0 %v911
        %1596 = vmatprep.subr.mxu0 0.0
        %1597 = vmatpush2.msra.mxu0 0.0
        %1598 = vmatprep.subr.mxu0 0.0
        %1599 = vmatpush2.msra.mxu0 0.0
        %1600 = vmatprep.subr.mxu0 0.0
        %1601 = vmatpush2.msra.mxu0 0.0
        %1602 = vmatprep.subr.mxu0 0.0
        %1603 = vmatpush2.msra.mxu0 0.0
        %1604 = vmatprep.subr.mxu0 0.0
        %1605 = vmatpush2.msra.mxu0 0.0
        %1606 = vmatprep.subr.mxu0 0.0
        %1607 = vmatpush2.msra.mxu0 0.0
        %1608 = vmatprep.subr.mxu0 0.0
        %1609 = vmatpush2.msra.mxu0 0.0
        %1610 = vmatprep.subr.mxu0 0.0
        %1611 = vmatpush2.msra.mxu0 0.0
        %1612 = vmatprep.subr.mxu0 0.0
        %1613 = vmatpush2.msra.mxu0 0.0
        %1614 = vmatprep.subr.mxu0 0.0
        %1615 = vmatpush2.msra.mxu0 0.0
        %1616 = vmatprep.subr.mxu0 0.0
        %1617 = vmatpush2.msra.mxu0 0.0
        %1618 = vmatprep.subr.mxu0 0.0
        %1619 = vmatpush2.msra.mxu0 0.0
        %1620 = vmatprep.subr.mxu0 0.0
        %1621 = vmatpush2.msra.mxu0 0.0
        %1622 = vmatprep.subr.mxu0 0.0
        %1623 = vmatpush2.msra.mxu0 0.0
        %1624 = vmatprep.subr.mxu0 0.0
        %1625 = vmatpush2.msra.mxu0 0.0
        %1626 = vmatprep.subr.mxu0 0.0
        %1627 = vmatpush2.msra.mxu0 0.0
        %1628 = vmatprep.mubr.f32.mxu0 0.0
        %1629 = vmatmul.mubr.f32.gmra.mxu0 %v1562
        %v1630 = vpop.f32.mrf.mxu0
        %v1631 = vadd.f32 %v1341, %v1630
        %v1632 = vpop.f32.mrf.mxu0
        %1633 = vdwg.mxu0
        %v1634 = vmul.f32 %v1412, %v1310
        %v1635 = vmul.f32 %v1485, %v1311
        %v1636 = vmul.f32 %v1558, %v1312
        %v1637 = vmul.f32 %v1631, %v1313
        %v1638 = vmul.f32 %v1634, %v932
        %v1639 = vmul.f32 %v1635, %v932
        %v1640 = vmul.f32 %v1636, %v932
        %v1641 = vmul.f32 %v1637, %v932
        %v1642 = vadd.f32 %v1638, 0.0
        %v1643 = vadd.f32 %v1639, 0.0
        %v1644 = vadd.f32 %v1640, 0.0
        %v1645 = vadd.f32 %v1641, 0.0
        %vm1646 = vcmp.ge.s32.totalorder %v925, 32
        %vm1647 = vcmp.lt.s32.totalorder %v925, 64
        %vm1648 = vmand %vm1646, %vm1647
        %v1649 = vsel %vm1648, 1, 0
        %v1650 = vcvt.s32.f32 %v1649
        %v1651 = vmul.f32 %v660, %v1650
        %v1652 = vmul.f32 %v663, %v1650
        %v1653 = vmul.f32 %v668, %v1650
        %v1654 = vmul.f32 %v671, %v1650
        %1655 = vmatprep.subr.mxu0 0.0
        %1656 = vmatpush1.xpose.msra.mxu0 0.0
        %1657 = vmatprep.subr.mxu0 0.0
        %1658 = vmatpush1.xpose.msra.mxu0 0.0
        %1659 = vmatprep.subr.mxu0 0.0
        %1660 = vmatpush1.xpose.msra.mxu0 0.0
        %1661 = vmatprep.subr.mxu0 0.0
        %1662 = vmatpush1.xpose.msra.mxu0 0.0
        %1663 = vmatprep.subr.mxu0 0.0
        %1664 = vmatpush1.xpose.msra.mxu0 0.0
        %1665 = vmatprep.subr.mxu0 0.0
        %1666 = vmatpush1.xpose.msra.mxu0 0.0
        %1667 = vmatprep.subr.mxu0 0.0
        %1668 = vmatpush1.xpose.msra.mxu0 0.0
        %1669 = vmatprep.subr.mxu0 0.0
        %1670 = vmatpush1.xpose.msra.mxu0 0.0
        %1671 = vmatprep.subr.mxu0 0.0
        %1672 = vmatpush1.xpose.msra.mxu0 0.0
        %1673 = vmatprep.subr.mxu0 0.0
        %1674 = vmatpush1.xpose.msra.mxu0 0.0
        %1675 = vmatprep.subr.mxu0 0.0
        %1676 = vmatpush1.xpose.msra.mxu0 0.0
        %1677 = vmatprep.subr.mxu0 0.0
        %1678 = vmatpush1.xpose.msra.mxu0 0.0
        %1679 = vmatprep.subr.mxu0 0.0
        %1680 = vmatpush1.xpose.msra.mxu0 0.0
        %1681 = vmatprep.subr.mxu0 0.0
        %1682 = vmatpush1.xpose.msra.mxu0 0.0
        %1683 = vmatprep.subr.mxu0 0.0
        %1684 = vmatpush1.xpose.msra.mxu0 0.0
        %1685 = vmatprep.subr.mxu0 0.0
        %1686 = vmatpush1.xpose.msra.mxu0 %v780
        %1687 = vmatprep.subr.mxu0 0.0
        %1688 = vmatpush2.xpose.msra.mxu0 0.0
        %1689 = vmatprep.subr.mxu0 0.0
        %1690 = vmatpush2.xpose.msra.mxu0 0.0
        %1691 = vmatprep.subr.mxu0 0.0
        %1692 = vmatpush2.xpose.msra.mxu0 0.0
        %1693 = vmatprep.subr.mxu0 0.0
        %1694 = vmatpush2.xpose.msra.mxu0 0.0
        %1695 = vmatprep.subr.mxu0 0.0
        %1696 = vmatpush2.xpose.msra.mxu0 0.0
        %1697 = vmatprep.subr.mxu0 0.0
        %1698 = vmatpush2.xpose.msra.mxu0 0.0
        %1699 = vmatprep.subr.mxu0 0.0
        %1700 = vmatpush2.xpose.msra.mxu0 0.0
        %1701 = vmatprep.subr.mxu0 0.0
        %1702 = vmatpush2.xpose.msra.mxu0 0.0
        %1703 = vmatprep.subr.mxu0 0.0
        %1704 = vmatpush2.xpose.msra.mxu0 0.0
        %1705 = vmatprep.subr.mxu0 0.0
        %1706 = vmatpush2.xpose.msra.mxu0 0.0
        %1707 = vmatprep.subr.mxu0 0.0
        %1708 = vmatpush2.xpose.msra.mxu0 0.0
        %1709 = vmatprep.subr.mxu0 0.0
        %1710 = vmatpush2.xpose.msra.mxu0 0.0
        %1711 = vmatprep.subr.mxu0 0.0
        %1712 = vmatpush2.xpose.msra.mxu0 0.0
        %1713 = vmatprep.subr.mxu0 0.0
        %1714 = vmatpush2.xpose.msra.mxu0 0.0
        %1715 = vmatprep.subr.mxu0 0.0
        %1716 = vmatpush2.xpose.msra.mxu0 0.0
        %1717 = vmatprep.subr.mxu0 0.0
        %1718 = vmatpush2.xpose.msra.mxu0 0.0
        %1719 = vmatprep.mubr.f32.mxu0 0.0
        %1720 = vmatmul.mubr.f32.gmra.mxu0 %v1651
        %v1721 = vpop.f32.mrf.mxu0
        %v1722 = vadd.f32 %v927, %v1721
        %v1723 = vpop.f32.mrf.mxu0
        %1724 = vdwg.mxu0
        %1725 = vmatprep.subr.mxu0 0.0
        %1726 = vmatpush1.xpose.msra.mxu0 0.0
        %1727 = vmatprep.subr.mxu0 0.0
        %1728 = vmatpush1.xpose.msra.mxu0 0.0
        %1729 = vmatprep.subr.mxu0 0.0
        %1730 = vmatpush1.xpose.msra.mxu0 0.0
        %1731 = vmatprep.subr.mxu0 0.0
        %1732 = vmatpush1.xpose.msra.mxu0 0.0
        %1733 = vmatprep.subr.mxu0 0.0
        %1734 = vmatpush1.xpose.msra.mxu0 0.0
        %1735 = vmatprep.subr.mxu0 0.0
        %1736 = vmatpush1.xpose.msra.mxu0 0.0
        %1737 = vmatprep.subr.mxu0 0.0
        %1738 = vmatpush1.xpose.msra.mxu0 0.0
        %1739 = vmatprep.subr.mxu0 0.0
        %1740 = vmatpush1.xpose.msra.mxu0 0.0
        %1741 = vmatprep.subr.mxu0 0.0
        %1742 = vmatpush1.xpose.msra.mxu0 0.0
        %1743 = vmatprep.subr.mxu0 0.0
        %1744 = vmatpush1.xpose.msra.mxu0 0.0
        %1745 = vmatprep.subr.mxu0 0.0
        %1746 = vmatpush1.xpose.msra.mxu0 0.0
        %1747 = vmatprep.subr.mxu0 0.0
        %1748 = vmatpush1.xpose.msra.mxu0 0.0
        %1749 = vmatprep.subr.mxu0 0.0
        %1750 = vmatpush1.xpose.msra.mxu0 0.0
        %1751 = vmatprep.subr.mxu0 0.0
        %1752 = vmatpush1.xpose.msra.mxu0 0.0
        %1753 = vmatprep.subr.mxu0 0.0
        %1754 = vmatpush1.xpose.msra.mxu0 0.0
        %1755 = vmatprep.subr.mxu0 0.0
        %1756 = vmatpush1.xpose.msra.mxu0 %v783
        %1757 = vmatprep.subr.mxu0 0.0
        %1758 = vmatpush2.xpose.msra.mxu0 0.0
        %1759 = vmatprep.subr.mxu0 0.0
        %1760 = vmatpush2.xpose.msra.mxu0 0.0
        %1761 = vmatprep.subr.mxu0 0.0
        %1762 = vmatpush2.xpose.msra.mxu0 0.0
        %1763 = vmatprep.subr.mxu0 0.0
        %1764 = vmatpush2.xpose.msra.mxu0 0.0
        %1765 = vmatprep.subr.mxu0 0.0
        %1766 = vmatpush2.xpose.msra.mxu0 0.0
        %1767 = vmatprep.subr.mxu0 0.0
        %1768 = vmatpush2.xpose.msra.mxu0 0.0
        %1769 = vmatprep.subr.mxu0 0.0
        %1770 = vmatpush2.xpose.msra.mxu0 0.0
        %1771 = vmatprep.subr.mxu0 0.0
        %1772 = vmatpush2.xpose.msra.mxu0 0.0
        %1773 = vmatprep.subr.mxu0 0.0
        %1774 = vmatpush2.xpose.msra.mxu0 0.0
        %1775 = vmatprep.subr.mxu0 0.0
        %1776 = vmatpush2.xpose.msra.mxu0 0.0
        %1777 = vmatprep.subr.mxu0 0.0
        %1778 = vmatpush2.xpose.msra.mxu0 0.0
        %1779 = vmatprep.subr.mxu0 0.0
        %1780 = vmatpush2.xpose.msra.mxu0 0.0
        %1781 = vmatprep.subr.mxu0 0.0
        %1782 = vmatpush2.xpose.msra.mxu0 0.0
        %1783 = vmatprep.subr.mxu0 0.0
        %1784 = vmatpush2.xpose.msra.mxu0 0.0
        %1785 = vmatprep.subr.mxu0 0.0
        %1786 = vmatpush2.xpose.msra.mxu0 0.0
        %1787 = vmatprep.subr.mxu0 0.0
        %1788 = vmatpush2.xpose.msra.mxu0 0.0
        %1789 = vmatprep.mubr.f32.mxu0 0.0
        %1790 = vmatmul.mubr.f32.gmra.mxu0 %v1652
        %v1791 = vpop.f32.mrf.mxu0
        %v1792 = vadd.f32 %v927, %v1791
        %v1793 = vpop.f32.mrf.mxu0
        %1794 = vdwg.mxu0
        %1795 = vmatprep.subr.mxu0 0.0
        %1796 = vmatpush1.xpose.msra.mxu0 0.0
        %1797 = vmatprep.subr.mxu0 0.0
        %1798 = vmatpush1.xpose.msra.mxu0 0.0
        %1799 = vmatprep.subr.mxu0 0.0
        %1800 = vmatpush1.xpose.msra.mxu0 0.0
        %1801 = vmatprep.subr.mxu0 0.0
        %1802 = vmatpush1.xpose.msra.mxu0 0.0
        %1803 = vmatprep.subr.mxu0 0.0
        %1804 = vmatpush1.xpose.msra.mxu0 0.0
        %1805 = vmatprep.subr.mxu0 0.0
        %1806 = vmatpush1.xpose.msra.mxu0 0.0
        %1807 = vmatprep.subr.mxu0 0.0
        %1808 = vmatpush1.xpose.msra.mxu0 0.0
        %1809 = vmatprep.subr.mxu0 0.0
        %1810 = vmatpush1.xpose.msra.mxu0 0.0
        %1811 = vmatprep.subr.mxu0 0.0
        %1812 = vmatpush1.xpose.msra.mxu0 0.0
        %1813 = vmatprep.subr.mxu0 0.0
        %1814 = vmatpush1.xpose.msra.mxu0 0.0
        %1815 = vmatprep.subr.mxu0 0.0
        %1816 = vmatpush1.xpose.msra.mxu0 0.0
        %1817 = vmatprep.subr.mxu0 0.0
        %1818 = vmatpush1.xpose.msra.mxu0 0.0
        %1819 = vmatprep.subr.mxu0 0.0
        %1820 = vmatpush1.xpose.msra.mxu0 0.0
        %1821 = vmatprep.subr.mxu0 0.0
        %1822 = vmatpush1.xpose.msra.mxu0 0.0
        %1823 = vmatprep.subr.mxu0 0.0
        %1824 = vmatpush1.xpose.msra.mxu0 0.0
        %1825 = vmatprep.subr.mxu0 0.0
        %1826 = vmatpush1.xpose.msra.mxu0 %v788
        %1827 = vmatprep.subr.mxu0 0.0
        %1828 = vmatpush2.xpose.msra.mxu0 0.0
        %1829 = vmatprep.subr.mxu0 0.0
        %1830 = vmatpush2.xpose.msra.mxu0 0.0
        %1831 = vmatprep.subr.mxu0 0.0
        %1832 = vmatpush2.xpose.msra.mxu0 0.0
        %1833 = vmatprep.subr.mxu0 0.0
        %1834 = vmatpush2.xpose.msra.mxu0 0.0
        %1835 = vmatprep.subr.mxu0 0.0
        %1836 = vmatpush2.xpose.msra.mxu0 0.0
        %1837 = vmatprep.subr.mxu0 0.0
        %1838 = vmatpush2.xpose.msra.mxu0 0.0
        %1839 = vmatprep.subr.mxu0 0.0
        %1840 = vmatpush2.xpose.msra.mxu0 0.0
        %1841 = vmatprep.subr.mxu0 0.0
        %1842 = vmatpush2.xpose.msra.mxu0 0.0
        %1843 = vmatprep.subr.mxu0 0.0
        %1844 = vmatpush2.xpose.msra.mxu0 0.0
        %1845 = vmatprep.subr.mxu0 0.0
        %1846 = vmatpush2.xpose.msra.mxu0 0.0
        %1847 = vmatprep.subr.mxu0 0.0
        %1848 = vmatpush2.xpose.msra.mxu0 0.0
        %1849 = vmatprep.subr.mxu0 0.0
        %1850 = vmatpush2.xpose.msra.mxu0 0.0
        %1851 = vmatprep.subr.mxu0 0.0
        %1852 = vmatpush2.xpose.msra.mxu0 0.0
        %1853 = vmatprep.subr.mxu0 0.0
        %1854 = vmatpush2.xpose.msra.mxu0 0.0
        %1855 = vmatprep.subr.mxu0 0.0
        %1856 = vmatpush2.xpose.msra.mxu0 0.0
        %1857 = vmatprep.subr.mxu0 0.0
        %1858 = vmatpush2.xpose.msra.mxu0 0.0
        %1859 = vmatprep.mubr.f32.mxu0 0.0
        %1860 = vmatmul.mubr.f32.gmra.mxu0 %v1653
        %v1861 = vpop.f32.mrf.mxu0
        %v1862 = vadd.f32 %v927, %v1861
        %v1863 = vpop.f32.mrf.mxu0
        %1864 = vdwg.mxu0
        %1865 = vmatprep.subr.mxu0 0.0
        %1866 = vmatpush1.xpose.msra.mxu0 0.0
        %1867 = vmatprep.subr.mxu0 0.0
        %1868 = vmatpush1.xpose.msra.mxu0 0.0
        %1869 = vmatprep.subr.mxu0 0.0
        %1870 = vmatpush1.xpose.msra.mxu0 0.0
        %1871 = vmatprep.subr.mxu0 0.0
        %1872 = vmatpush1.xpose.msra.mxu0 0.0
        %1873 = vmatprep.subr.mxu0 0.0
        %1874 = vmatpush1.xpose.msra.mxu0 0.0
        %1875 = vmatprep.subr.mxu0 0.0
        %1876 = vmatpush1.xpose.msra.mxu0 0.0
        %1877 = vmatprep.subr.mxu0 0.0
        %1878 = vmatpush1.xpose.msra.mxu0 0.0
        %1879 = vmatprep.subr.mxu0 0.0
        %1880 = vmatpush1.xpose.msra.mxu0 0.0
        %1881 = vmatprep.subr.mxu0 0.0
        %1882 = vmatpush1.xpose.msra.mxu0 0.0
        %1883 = vmatprep.subr.mxu0 0.0
        %1884 = vmatpush1.xpose.msra.mxu0 0.0
        %1885 = vmatprep.subr.mxu0 0.0
        %1886 = vmatpush1.xpose.msra.mxu0 0.0
        %1887 = vmatprep.subr.mxu0 0.0
        %1888 = vmatpush1.xpose.msra.mxu0 0.0
        %1889 = vmatprep.subr.mxu0 0.0
        %1890 = vmatpush1.xpose.msra.mxu0 0.0
        %1891 = vmatprep.subr.mxu0 0.0
        %1892 = vmatpush1.xpose.msra.mxu0 0.0
        %1893 = vmatprep.subr.mxu0 0.0
        %1894 = vmatpush1.xpose.msra.mxu0 0.0
        %1895 = vmatprep.subr.mxu0 0.0
        %1896 = vmatpush1.xpose.msra.mxu0 %v791
        %1897 = vmatprep.subr.mxu0 0.0
        %1898 = vmatpush2.xpose.msra.mxu0 0.0
        %1899 = vmatprep.subr.mxu0 0.0
        %1900 = vmatpush2.xpose.msra.mxu0 0.0
        %1901 = vmatprep.subr.mxu0 0.0
        %1902 = vmatpush2.xpose.msra.mxu0 0.0
        %1903 = vmatprep.subr.mxu0 0.0
        %1904 = vmatpush2.xpose.msra.mxu0 0.0
        %1905 = vmatprep.subr.mxu0 0.0
        %1906 = vmatpush2.xpose.msra.mxu0 0.0
        %1907 = vmatprep.subr.mxu0 0.0
        %1908 = vmatpush2.xpose.msra.mxu0 0.0
        %1909 = vmatprep.subr.mxu0 0.0
        %1910 = vmatpush2.xpose.msra.mxu0 0.0
        %1911 = vmatprep.subr.mxu0 0.0
        %1912 = vmatpush2.xpose.msra.mxu0 0.0
        %1913 = vmatprep.subr.mxu0 0.0
        %1914 = vmatpush2.xpose.msra.mxu0 0.0
        %1915 = vmatprep.subr.mxu0 0.0
        %1916 = vmatpush2.xpose.msra.mxu0 0.0
        %1917 = vmatprep.subr.mxu0 0.0
        %1918 = vmatpush2.xpose.msra.mxu0 0.0
        %1919 = vmatprep.subr.mxu0 0.0
        %1920 = vmatpush2.xpose.msra.mxu0 0.0
        %1921 = vmatprep.subr.mxu0 0.0
        %1922 = vmatpush2.xpose.msra.mxu0 0.0
        %1923 = vmatprep.subr.mxu0 0.0
        %1924 = vmatpush2.xpose.msra.mxu0 0.0
        %1925 = vmatprep.subr.mxu0 0.0
        %1926 = vmatpush2.xpose.msra.mxu0 0.0
        %1927 = vmatprep.subr.mxu0 0.0
        %1928 = vmatpush2.xpose.msra.mxu0 0.0
        %1929 = vmatprep.mubr.f32.mxu0 0.0
        %1930 = vmatmul.mubr.f32.gmra.mxu0 %v1654
        %v1931 = vpop.f32.mrf.mxu0
        %v1932 = vadd.f32 %v927, %v1931
        %v1933 = vpop.f32.mrf.mxu0
        %1934 = vdwg.mxu0
        %v1935 = vmul.f32 %v1651, %v1224
        %v1936 = vmul.f32 %v1652, %v1228
        %v1937 = vmul.f32 %v1653, %v1232
        %v1938 = vmul.f32 %v1654, %v1236
        %1939 = vadd.xlane.f32.xlu0 %v1935
        %v1940 = vpop.xlane.xlu0 %1939
        %1941 = vadd.xlane.f32.xlu0 %v1936
        %v1942 = vpop.xlane.xlu0 %1941
        %1943 = vadd.xlane.f32.xlu0 %v1937
        %v1944 = vpop.xlane.xlu0 %1943
        %1945 = vadd.xlane.f32.xlu0 %v1938
        %v1946 = vpop.xlane.xlu0 %1945
        %v1947 = vsel %vm1253, %v1722, -inf
        %1948 = vmax.xlane.f32.xlu0 %v1947
        %v1949 = vpop.xlane.xlu0 %1948
        %v1950 = vsel %vm1253, %v1792, -inf
        %1951 = vmax.xlane.f32.xlu0 %v1950
        %v1952 = vpop.xlane.xlu0 %1951
        %v1953 = vsel %vm1253, %v1862, -inf
        %1954 = vmax.xlane.f32.xlu0 %v1953
        %v1955 = vpop.xlane.xlu0 %1954
        %v1956 = vsel %vm1253, %v1932, -inf
        %1957 = vmax.xlane.f32.xlu0 %v1956
        %v1958 = vpop.xlane.xlu0 %1957
        %v1959 = vmax.f32 %v1949, %v1940
        %v1960 = vmax.f32 %v1952, %v1942
        %v1961 = vmax.f32 %v1955, %v1944
        %v1962 = vmax.f32 %v1958, %v1946
        %v1963 = vsub.f32 %v1722, %v1959
        %v1964 = vsub.f32 %v1792, %v1960
        %v1965 = vsub.f32 %v1862, %v1961
        %v1966 = vsub.f32 %v1932, %v1962
        %v1967 = vmul.f32 %v1963, 1.442695
        %v1968 = vpow.pop %v1967
        %v1969 = vmul.f32 %v1964, 1.442695
        %v1970 = vpow.pop %v1969
        %v1971 = vmul.f32 %v1965, 1.442695
        %v1972 = vpow.pop %v1971
        %v1973 = vmul.f32 %v1966, 1.442695
        %v1974 = vpow.pop %v1973
        %v1975 = vsub.f32 %v1940, %v1959
        %v1976 = vsub.f32 %v1942, %v1960
        %v1977 = vsub.f32 %v1944, %v1961
        %v1978 = vsub.f32 %v1946, %v1962
        %v1979 = vmul.f32 %v1975, 1.442695
        %v1980 = vpow.pop %v1979
        %v1981 = vmul.f32 %v1976, 1.442695
        %v1982 = vpow.pop %v1981
        %v1983 = vmul.f32 %v1977, 1.442695
        %v1984 = vpow.pop %v1983
        %v1985 = vmul.f32 %v1978, 1.442695
        %v1986 = vpow.pop %v1985
        %v1987 = vsel %vm1253, %v1968, 0.0
        %1988 = vadd.xlane.f32.xlu0 %v1987
        %v1989 = vpop.xlane.xlu0 %1988
        %v1990 = vsel %vm1253, %v1970, 0.0
        %1991 = vadd.xlane.f32.xlu0 %v1990
        %v1992 = vpop.xlane.xlu0 %1991
        %v1993 = vsel %vm1253, %v1972, 0.0
        %1994 = vadd.xlane.f32.xlu0 %v1993
        %v1995 = vpop.xlane.xlu0 %1994
        %v1996 = vsel %vm1253, %v1974, 0.0
        %1997 = vadd.xlane.f32.xlu0 %v1996
        %v1998 = vpop.xlane.xlu0 %1997
        %v1999 = vadd.f32 %v1989, %v1980
        %v2000 = vadd.f32 %v1992, %v1982
        %v2001 = vadd.f32 %v1995, %v1984
        %v2002 = vadd.f32 %v1998, %v1986
        %v2003 = vrcp.pop %v1999
        %v2004 = vrcp.pop %v2000
        %v2005 = vrcp.pop %v2001
        %v2006 = vrcp.pop %v2002
        %v2007 = vmul.f32 %v1980, %v1321
        %v2008 = vmul.f32 %v1982, %v1325
        %v2009 = vmul.f32 %v1984, %v1329
        %v2010 = vmul.f32 %v1986, %v1333
        %v2012 = vsel %vm1253, %v1968, 0
        %2014 = vmatprep.subr.mxu0 0.0
        %2015 = vmatpush1.msra.mxu0 0.0
        %2016 = vmatprep.subr.mxu0 0.0
        %2017 = vmatpush1.msra.mxu0 0.0
        %2018 = vmatprep.subr.mxu0 0.0
        %2019 = vmatpush1.msra.mxu0 0.0
        %2020 = vmatprep.subr.mxu0 0.0
        %2021 = vmatpush1.msra.mxu0 0.0
        %2022 = vmatprep.subr.mxu0 0.0
        %2023 = vmatpush1.msra.mxu0 0.0
        %2024 = vmatprep.subr.mxu0 0.0
        %2025 = vmatpush1.msra.mxu0 0.0
        %2026 = vmatprep.subr.mxu0 0.0
        %2027 = vmatpush1.msra.mxu0 0.0
        %2028 = vmatprep.subr.mxu0 0.0
        %2029 = vmatpush1.msra.mxu0 0.0
        %2030 = vmatprep.subr.mxu0 0.0
        %2031 = vmatpush1.msra.mxu0 0.0
        %2032 = vmatprep.subr.mxu0 0.0
        %2033 = vmatpush1.msra.mxu0 0.0
        %2034 = vmatprep.subr.mxu0 0.0
        %2035 = vmatpush1.msra.mxu0 0.0
        %2036 = vmatprep.subr.mxu0 0.0
        %2037 = vmatpush1.msra.mxu0 0.0
        %2038 = vmatprep.subr.mxu0 0.0
        %2039 = vmatpush1.msra.mxu0 0.0
        %2040 = vmatprep.subr.mxu0 0.0
        %2041 = vmatpush1.msra.mxu0 0.0
        %2042 = vmatprep.subr.mxu0 0.0
        %2043 = vmatpush1.msra.mxu0 0.0
        %2044 = vmatprep.subr.mxu0 0.0
        %2045 = vmatpush1.msra.mxu0 %v900
        %2046 = vmatprep.subr.mxu0 0.0
        %2047 = vmatpush2.msra.mxu0 0.0
        %2048 = vmatprep.subr.mxu0 0.0
        %2049 = vmatpush2.msra.mxu0 0.0
        %2050 = vmatprep.subr.mxu0 0.0
        %2051 = vmatpush2.msra.mxu0 0.0
        %2052 = vmatprep.subr.mxu0 0.0
        %2053 = vmatpush2.msra.mxu0 0.0
        %2054 = vmatprep.subr.mxu0 0.0
        %2055 = vmatpush2.msra.mxu0 0.0
        %2056 = vmatprep.subr.mxu0 0.0
        %2057 = vmatpush2.msra.mxu0 0.0
        %2058 = vmatprep.subr.mxu0 0.0
        %2059 = vmatpush2.msra.mxu0 0.0
        %2060 = vmatprep.subr.mxu0 0.0
        %2061 = vmatpush2.msra.mxu0 0.0
        %2062 = vmatprep.subr.mxu0 0.0
        %2063 = vmatpush2.msra.mxu0 0.0
        %2064 = vmatprep.subr.mxu0 0.0
        %2065 = vmatpush2.msra.mxu0 0.0
        %2066 = vmatprep.subr.mxu0 0.0
        %2067 = vmatpush2.msra.mxu0 0.0
        %2068 = vmatprep.subr.mxu0 0.0
        %2069 = vmatpush2.msra.mxu0 0.0
        %2070 = vmatprep.subr.mxu0 0.0
        %2071 = vmatpush2.msra.mxu0 0.0
        %2072 = vmatprep.subr.mxu0 0.0
        %2073 = vmatpush2.msra.mxu0 0.0
        %2074 = vmatprep.subr.mxu0 0.0
        %2075 = vmatpush2.msra.mxu0 0.0
        %2076 = vmatprep.subr.mxu0 0.0
        %2077 = vmatpush2.msra.mxu0 0.0
        %2078 = vmatprep.mubr.f32.mxu0 0.0
        %2079 = vmatmul.mubr.f32.gmra.mxu0 %v2012
        %v2080 = vpop.f32.mrf.mxu0
        %v2081 = vadd.f32 %v2007, %v2080
        %v2082 = vpop.f32.mrf.mxu0
        %2083 = vdwg.mxu0
        %v2085 = vsel %vm1253, %v1970, 0
        %2087 = vmatprep.subr.mxu0 0.0
        %2088 = vmatpush1.msra.mxu0 0.0
        %2089 = vmatprep.subr.mxu0 0.0
        %2090 = vmatpush1.msra.mxu0 0.0
        %2091 = vmatprep.subr.mxu0 0.0
        %2092 = vmatpush1.msra.mxu0 0.0
        %2093 = vmatprep.subr.mxu0 0.0
        %2094 = vmatpush1.msra.mxu0 0.0
        %2095 = vmatprep.subr.mxu0 0.0
        %2096 = vmatpush1.msra.mxu0 0.0
        %2097 = vmatprep.subr.mxu0 0.0
        %2098 = vmatpush1.msra.mxu0 0.0
        %2099 = vmatprep.subr.mxu0 0.0
        %2100 = vmatpush1.msra.mxu0 0.0
        %2101 = vmatprep.subr.mxu0 0.0
        %2102 = vmatpush1.msra.mxu0 0.0
        %2103 = vmatprep.subr.mxu0 0.0
        %2104 = vmatpush1.msra.mxu0 0.0
        %2105 = vmatprep.subr.mxu0 0.0
        %2106 = vmatpush1.msra.mxu0 0.0
        %2107 = vmatprep.subr.mxu0 0.0
        %2108 = vmatpush1.msra.mxu0 0.0
        %2109 = vmatprep.subr.mxu0 0.0
        %2110 = vmatpush1.msra.mxu0 0.0
        %2111 = vmatprep.subr.mxu0 0.0
        %2112 = vmatpush1.msra.mxu0 0.0
        %2113 = vmatprep.subr.mxu0 0.0
        %2114 = vmatpush1.msra.mxu0 0.0
        %2115 = vmatprep.subr.mxu0 0.0
        %2116 = vmatpush1.msra.mxu0 0.0
        %2117 = vmatprep.subr.mxu0 0.0
        %2118 = vmatpush1.msra.mxu0 %v903
        %2119 = vmatprep.subr.mxu0 0.0
        %2120 = vmatpush2.msra.mxu0 0.0
        %2121 = vmatprep.subr.mxu0 0.0
        %2122 = vmatpush2.msra.mxu0 0.0
        %2123 = vmatprep.subr.mxu0 0.0
        %2124 = vmatpush2.msra.mxu0 0.0
        %2125 = vmatprep.subr.mxu0 0.0
        %2126 = vmatpush2.msra.mxu0 0.0
        %2127 = vmatprep.subr.mxu0 0.0
        %2128 = vmatpush2.msra.mxu0 0.0
        %2129 = vmatprep.subr.mxu0 0.0
        %2130 = vmatpush2.msra.mxu0 0.0
        %2131 = vmatprep.subr.mxu0 0.0
        %2132 = vmatpush2.msra.mxu0 0.0
        %2133 = vmatprep.subr.mxu0 0.0
        %2134 = vmatpush2.msra.mxu0 0.0
        %2135 = vmatprep.subr.mxu0 0.0
        %2136 = vmatpush2.msra.mxu0 0.0
        %2137 = vmatprep.subr.mxu0 0.0
        %2138 = vmatpush2.msra.mxu0 0.0
        %2139 = vmatprep.subr.mxu0 0.0
        %2140 = vmatpush2.msra.mxu0 0.0
        %2141 = vmatprep.subr.mxu0 0.0
        %2142 = vmatpush2.msra.mxu0 0.0
        %2143 = vmatprep.subr.mxu0 0.0
        %2144 = vmatpush2.msra.mxu0 0.0
        %2145 = vmatprep.subr.mxu0 0.0
        %2146 = vmatpush2.msra.mxu0 0.0
        %2147 = vmatprep.subr.mxu0 0.0
        %2148 = vmatpush2.msra.mxu0 0.0
        %2149 = vmatprep.subr.mxu0 0.0
        %2150 = vmatpush2.msra.mxu0 0.0
        %2151 = vmatprep.mubr.f32.mxu0 0.0
        %2152 = vmatmul.mubr.f32.gmra.mxu0 %v2085
        %v2153 = vpop.f32.mrf.mxu0
        %v2154 = vadd.f32 %v2008, %v2153
        %v2155 = vpop.f32.mrf.mxu0
        %2156 = vdwg.mxu0
        %v2158 = vsel %vm1253, %v1972, 0
        %2160 = vmatprep.subr.mxu0 0.0
        %2161 = vmatpush1.msra.mxu0 0.0
        %2162 = vmatprep.subr.mxu0 0.0
        %2163 = vmatpush1.msra.mxu0 0.0
        %2164 = vmatprep.subr.mxu0 0.0
        %2165 = vmatpush1.msra.mxu0 0.0
        %2166 = vmatprep.subr.mxu0 0.0
        %2167 = vmatpush1.msra.mxu0 0.0
        %2168 = vmatprep.subr.mxu0 0.0
        %2169 = vmatpush1.msra.mxu0 0.0
        %2170 = vmatprep.subr.mxu0 0.0
        %2171 = vmatpush1.msra.mxu0 0.0
        %2172 = vmatprep.subr.mxu0 0.0
        %2173 = vmatpush1.msra.mxu0 0.0
        %2174 = vmatprep.subr.mxu0 0.0
        %2175 = vmatpush1.msra.mxu0 0.0
        %2176 = vmatprep.subr.mxu0 0.0
        %2177 = vmatpush1.msra.mxu0 0.0
        %2178 = vmatprep.subr.mxu0 0.0
        %2179 = vmatpush1.msra.mxu0 0.0
        %2180 = vmatprep.subr.mxu0 0.0
        %2181 = vmatpush1.msra.mxu0 0.0
        %2182 = vmatprep.subr.mxu0 0.0
        %2183 = vmatpush1.msra.mxu0 0.0
        %2184 = vmatprep.subr.mxu0 0.0
        %2185 = vmatpush1.msra.mxu0 0.0
        %2186 = vmatprep.subr.mxu0 0.0
        %2187 = vmatpush1.msra.mxu0 0.0
        %2188 = vmatprep.subr.mxu0 0.0
        %2189 = vmatpush1.msra.mxu0 0.0
        %2190 = vmatprep.subr.mxu0 0.0
        %2191 = vmatpush1.msra.mxu0 %v908
        %2192 = vmatprep.subr.mxu0 0.0
        %2193 = vmatpush2.msra.mxu0 0.0
        %2194 = vmatprep.subr.mxu0 0.0
        %2195 = vmatpush2.msra.mxu0 0.0
        %2196 = vmatprep.subr.mxu0 0.0
        %2197 = vmatpush2.msra.mxu0 0.0
        %2198 = vmatprep.subr.mxu0 0.0
        %2199 = vmatpush2.msra.mxu0 0.0
        %2200 = vmatprep.subr.mxu0 0.0
        %2201 = vmatpush2.msra.mxu0 0.0
        %2202 = vmatprep.subr.mxu0 0.0
        %2203 = vmatpush2.msra.mxu0 0.0
        %2204 = vmatprep.subr.mxu0 0.0
        %2205 = vmatpush2.msra.mxu0 0.0
        %2206 = vmatprep.subr.mxu0 0.0
        %2207 = vmatpush2.msra.mxu0 0.0
        %2208 = vmatprep.subr.mxu0 0.0
        %2209 = vmatpush2.msra.mxu0 0.0
        %2210 = vmatprep.subr.mxu0 0.0
        %2211 = vmatpush2.msra.mxu0 0.0
        %2212 = vmatprep.subr.mxu0 0.0
        %2213 = vmatpush2.msra.mxu0 0.0
        %2214 = vmatprep.subr.mxu0 0.0
        %2215 = vmatpush2.msra.mxu0 0.0
        %2216 = vmatprep.subr.mxu0 0.0
        %2217 = vmatpush2.msra.mxu0 0.0
        %2218 = vmatprep.subr.mxu0 0.0
        %2219 = vmatpush2.msra.mxu0 0.0
        %2220 = vmatprep.subr.mxu0 0.0
        %2221 = vmatpush2.msra.mxu0 0.0
        %2222 = vmatprep.subr.mxu0 0.0
        %2223 = vmatpush2.msra.mxu0 0.0
        %2224 = vmatprep.mubr.f32.mxu0 0.0
        %2225 = vmatmul.mubr.f32.gmra.mxu0 %v2158
        %v2226 = vpop.f32.mrf.mxu0
        %v2227 = vadd.f32 %v2009, %v2226
        %v2228 = vpop.f32.mrf.mxu0
        %2229 = vdwg.mxu0
        %v2231 = vsel %vm1253, %v1974, 0
        %2233 = vmatprep.subr.mxu0 0.0
        %2234 = vmatpush1.msra.mxu0 0.0
        %2235 = vmatprep.subr.mxu0 0.0
        %2236 = vmatpush1.msra.mxu0 0.0
        %2237 = vmatprep.subr.mxu0 0.0
        %2238 = vmatpush1.msra.mxu0 0.0
        %2239 = vmatprep.subr.mxu0 0.0
        %2240 = vmatpush1.msra.mxu0 0.0
        %2241 = vmatprep.subr.mxu0 0.0
        %2242 = vmatpush1.msra.mxu0 0.0
        %2243 = vmatprep.subr.mxu0 0.0
        %2244 = vmatpush1.msra.mxu0 0.0
        %2245 = vmatprep.subr.mxu0 0.0
        %2246 = vmatpush1.msra.mxu0 0.0
        %2247 = vmatprep.subr.mxu0 0.0
        %2248 = vmatpush1.msra.mxu0 0.0
        %2249 = vmatprep.subr.mxu0 0.0
        %2250 = vmatpush1.msra.mxu0 0.0
        %2251 = vmatprep.subr.mxu0 0.0
        %2252 = vmatpush1.msra.mxu0 0.0
        %2253 = vmatprep.subr.mxu0 0.0
        %2254 = vmatpush1.msra.mxu0 0.0
        %2255 = vmatprep.subr.mxu0 0.0
        %2256 = vmatpush1.msra.mxu0 0.0
        %2257 = vmatprep.subr.mxu0 0.0
        %2258 = vmatpush1.msra.mxu0 0.0
        %2259 = vmatprep.subr.mxu0 0.0
        %2260 = vmatpush1.msra.mxu0 0.0
        %2261 = vmatprep.subr.mxu0 0.0
        %2262 = vmatpush1.msra.mxu0 0.0
        %2263 = vmatprep.subr.mxu0 0.0
        %2264 = vmatpush1.msra.mxu0 %v911
        %2265 = vmatprep.subr.mxu0 0.0
        %2266 = vmatpush2.msra.mxu0 0.0
        %2267 = vmatprep.subr.mxu0 0.0
        %2268 = vmatpush2.msra.mxu0 0.0
        %2269 = vmatprep.subr.mxu0 0.0
        %2270 = vmatpush2.msra.mxu0 0.0
        %2271 = vmatprep.subr.mxu0 0.0
        %2272 = vmatpush2.msra.mxu0 0.0
        %2273 = vmatprep.subr.mxu0 0.0
        %2274 = vmatpush2.msra.mxu0 0.0
        %2275 = vmatprep.subr.mxu0 0.0
        %2276 = vmatpush2.msra.mxu0 0.0
        %2277 = vmatprep.subr.mxu0 0.0
        %2278 = vmatpush2.msra.mxu0 0.0
        %2279 = vmatprep.subr.mxu0 0.0
        %2280 = vmatpush2.msra.mxu0 0.0
        %2281 = vmatprep.subr.mxu0 0.0
        %2282 = vmatpush2.msra.mxu0 0.0
        %2283 = vmatprep.subr.mxu0 0.0
        %2284 = vmatpush2.msra.mxu0 0.0
        %2285 = vmatprep.subr.mxu0 0.0
        %2286 = vmatpush2.msra.mxu0 0.0
        %2287 = vmatprep.subr.mxu0 0.0
        %2288 = vmatpush2.msra.mxu0 0.0
        %2289 = vmatprep.subr.mxu0 0.0
        %2290 = vmatpush2.msra.mxu0 0.0
        %2291 = vmatprep.subr.mxu0 0.0
        %2292 = vmatpush2.msra.mxu0 0.0
        %2293 = vmatprep.subr.mxu0 0.0
        %2294 = vmatpush2.msra.mxu0 0.0
        %2295 = vmatprep.subr.mxu0 0.0
        %2296 = vmatpush2.msra.mxu0 0.0
        %2297 = vmatprep.mubr.f32.mxu0 0.0
        %2298 = vmatmul.mubr.f32.gmra.mxu0 %v2231
        %v2299 = vpop.f32.mrf.mxu0
        %v2300 = vadd.f32 %v2010, %v2299
        %v2301 = vpop.f32.mrf.mxu0
        %2302 = vdwg.mxu0
        %v2303 = vmul.f32 %v2081, %v2003
        %v2304 = vmul.f32 %v2154, %v2004
        %v2305 = vmul.f32 %v2227, %v2005
        %v2306 = vmul.f32 %v2300, %v2006
        %v2307 = vmul.f32 %v2303, %v1650
        %v2308 = vmul.f32 %v2304, %v1650
        %v2309 = vmul.f32 %v2305, %v1650
        %v2310 = vmul.f32 %v2306, %v1650
        %v2311 = vadd.f32 %v1642, %v2307
        %v2312 = vadd.f32 %v1643, %v2308
        %v2313 = vadd.f32 %v1644, %v2309
        %v2314 = vadd.f32 %v1645, %v2310
        %vm2315 = vcmp.ge.s32.totalorder %v925, 64
        %vm2316 = vcmp.lt.s32.totalorder %v925, 96
        %vm2317 = vmand %vm2315, %vm2316
        %v2318 = vsel %vm2317, 1, 0
        %v2319 = vcvt.s32.f32 %v2318
        %v2320 = vmul.f32 %v660, %v2319
        %v2321 = vmul.f32 %v663, %v2319
        %v2322 = vmul.f32 %v668, %v2319
        %v2323 = vmul.f32 %v671, %v2319
        %2324 = vmatprep.subr.mxu0 0.0
        %2325 = vmatpush1.xpose.msra.mxu0 0.0
        %2326 = vmatprep.subr.mxu0 0.0
        %2327 = vmatpush1.xpose.msra.mxu0 0.0
        %2328 = vmatprep.subr.mxu0 0.0
        %2329 = vmatpush1.xpose.msra.mxu0 0.0
        %2330 = vmatprep.subr.mxu0 0.0
        %2331 = vmatpush1.xpose.msra.mxu0 0.0
        %2332 = vmatprep.subr.mxu0 0.0
        %2333 = vmatpush1.xpose.msra.mxu0 0.0
        %2334 = vmatprep.subr.mxu0 0.0
        %2335 = vmatpush1.xpose.msra.mxu0 0.0
        %2336 = vmatprep.subr.mxu0 0.0
        %2337 = vmatpush1.xpose.msra.mxu0 0.0
        %2338 = vmatprep.subr.mxu0 0.0
        %2339 = vmatpush1.xpose.msra.mxu0 0.0
        %2340 = vmatprep.subr.mxu0 0.0
        %2341 = vmatpush1.xpose.msra.mxu0 0.0
        %2342 = vmatprep.subr.mxu0 0.0
        %2343 = vmatpush1.xpose.msra.mxu0 0.0
        %2344 = vmatprep.subr.mxu0 0.0
        %2345 = vmatpush1.xpose.msra.mxu0 0.0
        %2346 = vmatprep.subr.mxu0 0.0
        %2347 = vmatpush1.xpose.msra.mxu0 0.0
        %2348 = vmatprep.subr.mxu0 0.0
        %2349 = vmatpush1.xpose.msra.mxu0 0.0
        %2350 = vmatprep.subr.mxu0 0.0
        %2351 = vmatpush1.xpose.msra.mxu0 0.0
        %2352 = vmatprep.subr.mxu0 0.0
        %2353 = vmatpush1.xpose.msra.mxu0 0.0
        %2354 = vmatprep.subr.mxu0 0.0
        %2355 = vmatpush1.xpose.msra.mxu0 %v780
        %2356 = vmatprep.subr.mxu0 0.0
        %2357 = vmatpush2.xpose.msra.mxu0 0.0
        %2358 = vmatprep.subr.mxu0 0.0
        %2359 = vmatpush2.xpose.msra.mxu0 0.0
        %2360 = vmatprep.subr.mxu0 0.0
        %2361 = vmatpush2.xpose.msra.mxu0 0.0
        %2362 = vmatprep.subr.mxu0 0.0
        %2363 = vmatpush2.xpose.msra.mxu0 0.0
        %2364 = vmatprep.subr.mxu0 0.0
        %2365 = vmatpush2.xpose.msra.mxu0 0.0
        %2366 = vmatprep.subr.mxu0 0.0
        %2367 = vmatpush2.xpose.msra.mxu0 0.0
        %2368 = vmatprep.subr.mxu0 0.0
        %2369 = vmatpush2.xpose.msra.mxu0 0.0
        %2370 = vmatprep.subr.mxu0 0.0
        %2371 = vmatpush2.xpose.msra.mxu0 0.0
        %2372 = vmatprep.subr.mxu0 0.0
        %2373 = vmatpush2.xpose.msra.mxu0 0.0
        %2374 = vmatprep.subr.mxu0 0.0
        %2375 = vmatpush2.xpose.msra.mxu0 0.0
        %2376 = vmatprep.subr.mxu0 0.0
        %2377 = vmatpush2.xpose.msra.mxu0 0.0
        %2378 = vmatprep.subr.mxu0 0.0
        %2379 = vmatpush2.xpose.msra.mxu0 0.0
        %2380 = vmatprep.subr.mxu0 0.0
        %2381 = vmatpush2.xpose.msra.mxu0 0.0
        %2382 = vmatprep.subr.mxu0 0.0
        %2383 = vmatpush2.xpose.msra.mxu0 0.0
        %2384 = vmatprep.subr.mxu0 0.0
        %2385 = vmatpush2.xpose.msra.mxu0 0.0
        %2386 = vmatprep.subr.mxu0 0.0
        %2387 = vmatpush2.xpose.msra.mxu0 0.0
        %2388 = vmatprep.mubr.f32.mxu0 0.0
        %2389 = vmatmul.mubr.f32.gmra.mxu0 %v2320
        %v2390 = vpop.f32.mrf.mxu0
        %v2391 = vadd.f32 %v927, %v2390
        %v2392 = vpop.f32.mrf.mxu0
        %2393 = vdwg.mxu0
        %2394 = vmatprep.subr.mxu0 0.0
        %2395 = vmatpush1.xpose.msra.mxu0 0.0
        %2396 = vmatprep.subr.mxu0 0.0
        %2397 = vmatpush1.xpose.msra.mxu0 0.0
        %2398 = vmatprep.subr.mxu0 0.0
        %2399 = vmatpush1.xpose.msra.mxu0 0.0
        %2400 = vmatprep.subr.mxu0 0.0
        %2401 = vmatpush1.xpose.msra.mxu0 0.0
        %2402 = vmatprep.subr.mxu0 0.0
        %2403 = vmatpush1.xpose.msra.mxu0 0.0
        %2404 = vmatprep.subr.mxu0 0.0
        %2405 = vmatpush1.xpose.msra.mxu0 0.0
        %2406 = vmatprep.subr.mxu0 0.0
        %2407 = vmatpush1.xpose.msra.mxu0 0.0
        %2408 = vmatprep.subr.mxu0 0.0
        %2409 = vmatpush1.xpose.msra.mxu0 0.0
        %2410 = vmatprep.subr.mxu0 0.0
        %2411 = vmatpush1.xpose.msra.mxu0 0.0
        %2412 = vmatprep.subr.mxu0 0.0
        %2413 = vmatpush1.xpose.msra.mxu0 0.0
        %2414 = vmatprep.subr.mxu0 0.0
        %2415 = vmatpush1.xpose.msra.mxu0 0.0
        %2416 = vmatprep.subr.mxu0 0.0
        %2417 = vmatpush1.xpose.msra.mxu0 0.0
        %2418 = vmatprep.subr.mxu0 0.0
        %2419 = vmatpush1.xpose.msra.mxu0 0.0
        %2420 = vmatprep.subr.mxu0 0.0
        %2421 = vmatpush1.xpose.msra.mxu0 0.0
        %2422 = vmatprep.subr.mxu0 0.0
        %2423 = vmatpush1.xpose.msra.mxu0 0.0
        %2424 = vmatprep.subr.mxu0 0.0
        %2425 = vmatpush1.xpose.msra.mxu0 %v783
        %2426 = vmatprep.subr.mxu0 0.0
        %2427 = vmatpush2.xpose.msra.mxu0 0.0
        %2428 = vmatprep.subr.mxu0 0.0
        %2429 = vmatpush2.xpose.msra.mxu0 0.0
        %2430 = vmatprep.subr.mxu0 0.0
        %2431 = vmatpush2.xpose.msra.mxu0 0.0
        %2432 = vmatprep.subr.mxu0 0.0
        %2433 = vmatpush2.xpose.msra.mxu0 0.0
        %2434 = vmatprep.subr.mxu0 0.0
        %2435 = vmatpush2.xpose.msra.mxu0 0.0
        %2436 = vmatprep.subr.mxu0 0.0
        %2437 = vmatpush2.xpose.msra.mxu0 0.0
        %2438 = vmatprep.subr.mxu0 0.0
        %2439 = vmatpush2.xpose.msra.mxu0 0.0
        %2440 = vmatprep.subr.mxu0 0.0
        %2441 = vmatpush2.xpose.msra.mxu0 0.0
        %2442 = vmatprep.subr.mxu0 0.0
        %2443 = vmatpush2.xpose.msra.mxu0 0.0
        %2444 = vmatprep.subr.mxu0 0.0
        %2445 = vmatpush2.xpose.msra.mxu0 0.0
        %2446 = vmatprep.subr.mxu0 0.0
        %2447 = vmatpush2.xpose.msra.mxu0 0.0
        %2448 = vmatprep.subr.mxu0 0.0
        %2449 = vmatpush2.xpose.msra.mxu0 0.0
        %2450 = vmatprep.subr.mxu0 0.0
        %2451 = vmatpush2.xpose.msra.mxu0 0.0
        %2452 = vmatprep.subr.mxu0 0.0
        %2453 = vmatpush2.xpose.msra.mxu0 0.0
        %2454 = vmatprep.subr.mxu0 0.0
        %2455 = vmatpush2.xpose.msra.mxu0 0.0
        %2456 = vmatprep.subr.mxu0 0.0
        %2457 = vmatpush2.xpose.msra.mxu0 0.0
        %2458 = vmatprep.mubr.f32.mxu0 0.0
        %2459 = vmatmul.mubr.f32.gmra.mxu0 %v2321
        %v2460 = vpop.f32.mrf.mxu0
        %v2461 = vadd.f32 %v927, %v2460
        %v2462 = vpop.f32.mrf.mxu0
        %2463 = vdwg.mxu0
        %2464 = vmatprep.subr.mxu0 0.0
        %2465 = vmatpush1.xpose.msra.mxu0 0.0
        %2466 = vmatprep.subr.mxu0 0.0
        %2467 = vmatpush1.xpose.msra.mxu0 0.0
        %2468 = vmatprep.subr.mxu0 0.0
        %2469 = vmatpush1.xpose.msra.mxu0 0.0
        %2470 = vmatprep.subr.mxu0 0.0
        %2471 = vmatpush1.xpose.msra.mxu0 0.0
        %2472 = vmatprep.subr.mxu0 0.0
        %2473 = vmatpush1.xpose.msra.mxu0 0.0
        %2474 = vmatprep.subr.mxu0 0.0
        %2475 = vmatpush1.xpose.msra.mxu0 0.0
        %2476 = vmatprep.subr.mxu0 0.0
        %2477 = vmatpush1.xpose.msra.mxu0 0.0
        %2478 = vmatprep.subr.mxu0 0.0
        %2479 = vmatpush1.xpose.msra.mxu0 0.0
        %2480 = vmatprep.subr.mxu0 0.0
        %2481 = vmatpush1.xpose.msra.mxu0 0.0
        %2482 = vmatprep.subr.mxu0 0.0
        %2483 = vmatpush1.xpose.msra.mxu0 0.0
        %2484 = vmatprep.subr.mxu0 0.0
        %2485 = vmatpush1.xpose.msra.mxu0 0.0
        %2486 = vmatprep.subr.mxu0 0.0
        %2487 = vmatpush1.xpose.msra.mxu0 0.0
        %2488 = vmatprep.subr.mxu0 0.0
        %2489 = vmatpush1.xpose.msra.mxu0 0.0
        %2490 = vmatprep.subr.mxu0 0.0
        %2491 = vmatpush1.xpose.msra.mxu0 0.0
        %2492 = vmatprep.subr.mxu0 0.0
        %2493 = vmatpush1.xpose.msra.mxu0 0.0
        %2494 = vmatprep.subr.mxu0 0.0
        %2495 = vmatpush1.xpose.msra.mxu0 %v788
        %2496 = vmatprep.subr.mxu0 0.0
        %2497 = vmatpush2.xpose.msra.mxu0 0.0
        %2498 = vmatprep.subr.mxu0 0.0
        %2499 = vmatpush2.xpose.msra.mxu0 0.0
        %2500 = vmatprep.subr.mxu0 0.0
        %2501 = vmatpush2.xpose.msra.mxu0 0.0
        %2502 = vmatprep.subr.mxu0 0.0
        %2503 = vmatpush2.xpose.msra.mxu0 0.0
        %2504 = vmatprep.subr.mxu0 0.0
        %2505 = vmatpush2.xpose.msra.mxu0 0.0
        %2506 = vmatprep.subr.mxu0 0.0
        %2507 = vmatpush2.xpose.msra.mxu0 0.0
        %2508 = vmatprep.subr.mxu0 0.0
        %2509 = vmatpush2.xpose.msra.mxu0 0.0
        %2510 = vmatprep.subr.mxu0 0.0
        %2511 = vmatpush2.xpose.msra.mxu0 0.0
        %2512 = vmatprep.subr.mxu0 0.0
        %2513 = vmatpush2.xpose.msra.mxu0 0.0
        %2514 = vmatprep.subr.mxu0 0.0
        %2515 = vmatpush2.xpose.msra.mxu0 0.0
        %2516 = vmatprep.subr.mxu0 0.0
        %2517 = vmatpush2.xpose.msra.mxu0 0.0
        %2518 = vmatprep.subr.mxu0 0.0
        %2519 = vmatpush2.xpose.msra.mxu0 0.0
        %2520 = vmatprep.subr.mxu0 0.0
        %2521 = vmatpush2.xpose.msra.mxu0 0.0
        %2522 = vmatprep.subr.mxu0 0.0
        %2523 = vmatpush2.xpose.msra.mxu0 0.0
        %2524 = vmatprep.subr.mxu0 0.0
        %2525 = vmatpush2.xpose.msra.mxu0 0.0
        %2526 = vmatprep.subr.mxu0 0.0
        %2527 = vmatpush2.xpose.msra.mxu0 0.0
        %2528 = vmatprep.mubr.f32.mxu0 0.0
        %2529 = vmatmul.mubr.f32.gmra.mxu0 %v2322
        %v2530 = vpop.f32.mrf.mxu0
        %v2531 = vadd.f32 %v927, %v2530
        %v2532 = vpop.f32.mrf.mxu0
        %2533 = vdwg.mxu0
        %2534 = vmatprep.subr.mxu0 0.0
        %2535 = vmatpush1.xpose.msra.mxu0 0.0
        %2536 = vmatprep.subr.mxu0 0.0
        %2537 = vmatpush1.xpose.msra.mxu0 0.0
        %2538 = vmatprep.subr.mxu0 0.0
        %2539 = vmatpush1.xpose.msra.mxu0 0.0
        %2540 = vmatprep.subr.mxu0 0.0
        %2541 = vmatpush1.xpose.msra.mxu0 0.0
        %2542 = vmatprep.subr.mxu0 0.0
        %2543 = vmatpush1.xpose.msra.mxu0 0.0
        %2544 = vmatprep.subr.mxu0 0.0
        %2545 = vmatpush1.xpose.msra.mxu0 0.0
        %2546 = vmatprep.subr.mxu0 0.0
        %2547 = vmatpush1.xpose.msra.mxu0 0.0
        %2548 = vmatprep.subr.mxu0 0.0
        %2549 = vmatpush1.xpose.msra.mxu0 0.0
        %2550 = vmatprep.subr.mxu0 0.0
        %2551 = vmatpush1.xpose.msra.mxu0 0.0
        %2552 = vmatprep.subr.mxu0 0.0
        %2553 = vmatpush1.xpose.msra.mxu0 0.0
        %2554 = vmatprep.subr.mxu0 0.0
        %2555 = vmatpush1.xpose.msra.mxu0 0.0
        %2556 = vmatprep.subr.mxu0 0.0
        %2557 = vmatpush1.xpose.msra.mxu0 0.0
        %2558 = vmatprep.subr.mxu0 0.0
        %2559 = vmatpush1.xpose.msra.mxu0 0.0
        %2560 = vmatprep.subr.mxu0 0.0
        %2561 = vmatpush1.xpose.msra.mxu0 0.0
        %2562 = vmatprep.subr.mxu0 0.0
        %2563 = vmatpush1.xpose.msra.mxu0 0.0
        %2564 = vmatprep.subr.mxu0 0.0
        %2565 = vmatpush1.xpose.msra.mxu0 %v791
        %2566 = vmatprep.subr.mxu0 0.0
        %2567 = vmatpush2.xpose.msra.mxu0 0.0
        %2568 = vmatprep.subr.mxu0 0.0
        %2569 = vmatpush2.xpose.msra.mxu0 0.0
        %2570 = vmatprep.subr.mxu0 0.0
        %2571 = vmatpush2.xpose.msra.mxu0 0.0
        %2572 = vmatprep.subr.mxu0 0.0
        %2573 = vmatpush2.xpose.msra.mxu0 0.0
        %2574 = vmatprep.subr.mxu0 0.0
        %2575 = vmatpush2.xpose.msra.mxu0 0.0
        %2576 = vmatprep.subr.mxu0 0.0
        %2577 = vmatpush2.xpose.msra.mxu0 0.0
        %2578 = vmatprep.subr.mxu0 0.0
        %2579 = vmatpush2.xpose.msra.mxu0 0.0
        %2580 = vmatprep.subr.mxu0 0.0
        %2581 = vmatpush2.xpose.msra.mxu0 0.0
        %2582 = vmatprep.subr.mxu0 0.0
        %2583 = vmatpush2.xpose.msra.mxu0 0.0
        %2584 = vmatprep.subr.mxu0 0.0
        %2585 = vmatpush2.xpose.msra.mxu0 0.0
        %2586 = vmatprep.subr.mxu0 0.0
        %2587 = vmatpush2.xpose.msra.mxu0 0.0
        %2588 = vmatprep.subr.mxu0 0.0
        %2589 = vmatpush2.xpose.msra.mxu0 0.0
        %2590 = vmatprep.subr.mxu0 0.0
        %2591 = vmatpush2.xpose.msra.mxu0 0.0
        %2592 = vmatprep.subr.mxu0 0.0
        %2593 = vmatpush2.xpose.msra.mxu0 0.0
        %2594 = vmatprep.subr.mxu0 0.0
        %2595 = vmatpush2.xpose.msra.mxu0 0.0
        %2596 = vmatprep.subr.mxu0 0.0
        %2597 = vmatpush2.xpose.msra.mxu0 0.0
        %2598 = vmatprep.mubr.f32.mxu0 0.0
        %2599 = vmatmul.mubr.f32.gmra.mxu0 %v2323
        %v2600 = vpop.f32.mrf.mxu0
        %v2601 = vadd.f32 %v927, %v2600
        %v2602 = vpop.f32.mrf.mxu0
        %2603 = vdwg.mxu0
        %v2604 = vmul.f32 %v2320, %v1224
        %v2605 = vmul.f32 %v2321, %v1228
        %v2606 = vmul.f32 %v2322, %v1232
        %v2607 = vmul.f32 %v2323, %v1236
        %2608 = vadd.xlane.f32.xlu0 %v2604
        %v2609 = vpop.xlane.xlu0 %2608
        %2610 = vadd.xlane.f32.xlu0 %v2605
        %v2611 = vpop.xlane.xlu0 %2610
        %2612 = vadd.xlane.f32.xlu0 %v2606
        %v2613 = vpop.xlane.xlu0 %2612
        %2614 = vadd.xlane.f32.xlu0 %v2607
        %v2615 = vpop.xlane.xlu0 %2614
        %v2616 = vsel %vm1253, %v2391, -inf
        %2617 = vmax.xlane.f32.xlu0 %v2616
        %v2618 = vpop.xlane.xlu0 %2617
        %v2619 = vsel %vm1253, %v2461, -inf
        %2620 = vmax.xlane.f32.xlu0 %v2619
        %v2621 = vpop.xlane.xlu0 %2620
        %v2622 = vsel %vm1253, %v2531, -inf
        %2623 = vmax.xlane.f32.xlu0 %v2622
        %v2624 = vpop.xlane.xlu0 %2623
        %v2625 = vsel %vm1253, %v2601, -inf
        %2626 = vmax.xlane.f32.xlu0 %v2625
        %v2627 = vpop.xlane.xlu0 %2626
        %v2628 = vmax.f32 %v2618, %v2609
        %v2629 = vmax.f32 %v2621, %v2611
        %v2630 = vmax.f32 %v2624, %v2613
        %v2631 = vmax.f32 %v2627, %v2615
        %v2632 = vsub.f32 %v2391, %v2628
        %v2633 = vsub.f32 %v2461, %v2629
        %v2634 = vsub.f32 %v2531, %v2630
        %v2635 = vsub.f32 %v2601, %v2631
        %v2636 = vmul.f32 %v2632, 1.442695
        %v2637 = vpow.pop %v2636
        %v2638 = vmul.f32 %v2633, 1.442695
        %v2639 = vpow.pop %v2638
        %v2640 = vmul.f32 %v2634, 1.442695
        %v2641 = vpow.pop %v2640
        %v2642 = vmul.f32 %v2635, 1.442695
        %v2643 = vpow.pop %v2642
        %v2644 = vsub.f32 %v2609, %v2628
        %v2645 = vsub.f32 %v2611, %v2629
        %v2646 = vsub.f32 %v2613, %v2630
        %v2647 = vsub.f32 %v2615, %v2631
        %v2648 = vmul.f32 %v2644, 1.442695
        %v2649 = vpow.pop %v2648
        %v2650 = vmul.f32 %v2645, 1.442695
        %v2651 = vpow.pop %v2650
        %v2652 = vmul.f32 %v2646, 1.442695
        %v2653 = vpow.pop %v2652
        %v2654 = vmul.f32 %v2647, 1.442695
        %v2655 = vpow.pop %v2654
        %v2656 = vsel %vm1253, %v2637, 0.0
        %2657 = vadd.xlane.f32.xlu0 %v2656
        %v2658 = vpop.xlane.xlu0 %2657
        %v2659 = vsel %vm1253, %v2639, 0.0
        %2660 = vadd.xlane.f32.xlu0 %v2659
        %v2661 = vpop.xlane.xlu0 %2660
        %v2662 = vsel %vm1253, %v2641, 0.0
        %2663 = vadd.xlane.f32.xlu0 %v2662
        %v2664 = vpop.xlane.xlu0 %2663
        %v2665 = vsel %vm1253, %v2643, 0.0
        %2666 = vadd.xlane.f32.xlu0 %v2665
        %v2667 = vpop.xlane.xlu0 %2666
        %v2668 = vadd.f32 %v2658, %v2649
        %v2669 = vadd.f32 %v2661, %v2651
        %v2670 = vadd.f32 %v2664, %v2653
        %v2671 = vadd.f32 %v2667, %v2655
        %v2672 = vrcp.pop %v2668
        %v2673 = vrcp.pop %v2669
        %v2674 = vrcp.pop %v2670
        %v2675 = vrcp.pop %v2671
        %v2676 = vmul.f32 %v2649, %v1321
        %v2677 = vmul.f32 %v2651, %v1325
        %v2678 = vmul.f32 %v2653, %v1329
        %v2679 = vmul.f32 %v2655, %v1333
        %v2681 = vsel %vm1253, %v2637, 0
        %2683 = vmatprep.subr.mxu0 0.0
        %2684 = vmatpush1.msra.mxu0 0.0
        %2685 = vmatprep.subr.mxu0 0.0
        %2686 = vmatpush1.msra.mxu0 0.0
        %2687 = vmatprep.subr.mxu0 0.0
        %2688 = vmatpush1.msra.mxu0 0.0
        %2689 = vmatprep.subr.mxu0 0.0
        %2690 = vmatpush1.msra.mxu0 0.0
        %2691 = vmatprep.subr.mxu0 0.0
        %2692 = vmatpush1.msra.mxu0 0.0
        %2693 = vmatprep.subr.mxu0 0.0
        %2694 = vmatpush1.msra.mxu0 0.0
        %2695 = vmatprep.subr.mxu0 0.0
        %2696 = vmatpush1.msra.mxu0 0.0
        %2697 = vmatprep.subr.mxu0 0.0
        %2698 = vmatpush1.msra.mxu0 0.0
        %2699 = vmatprep.subr.mxu0 0.0
        %2700 = vmatpush1.msra.mxu0 0.0
        %2701 = vmatprep.subr.mxu0 0.0
        %2702 = vmatpush1.msra.mxu0 0.0
        %2703 = vmatprep.subr.mxu0 0.0
        %2704 = vmatpush1.msra.mxu0 0.0
        %2705 = vmatprep.subr.mxu0 0.0
        %2706 = vmatpush1.msra.mxu0 0.0
        %2707 = vmatprep.subr.mxu0 0.0
        %2708 = vmatpush1.msra.mxu0 0.0
        %2709 = vmatprep.subr.mxu0 0.0
        %2710 = vmatpush1.msra.mxu0 0.0
        %2711 = vmatprep.subr.mxu0 0.0
        %2712 = vmatpush1.msra.mxu0 0.0
        %2713 = vmatprep.subr.mxu0 0.0
        %2714 = vmatpush1.msra.mxu0 %v900
        %2715 = vmatprep.subr.mxu0 0.0
        %2716 = vmatpush2.msra.mxu0 0.0
        %2717 = vmatprep.subr.mxu0 0.0
        %2718 = vmatpush2.msra.mxu0 0.0
        %2719 = vmatprep.subr.mxu0 0.0
        %2720 = vmatpush2.msra.mxu0 0.0
        %2721 = vmatprep.subr.mxu0 0.0
        %2722 = vmatpush2.msra.mxu0 0.0
        %2723 = vmatprep.subr.mxu0 0.0
        %2724 = vmatpush2.msra.mxu0 0.0
        %2725 = vmatprep.subr.mxu0 0.0
        %2726 = vmatpush2.msra.mxu0 0.0
        %2727 = vmatprep.subr.mxu0 0.0
        %2728 = vmatpush2.msra.mxu0 0.0
        %2729 = vmatprep.subr.mxu0 0.0
        %2730 = vmatpush2.msra.mxu0 0.0
        %2731 = vmatprep.subr.mxu0 0.0
        %2732 = vmatpush2.msra.mxu0 0.0
        %2733 = vmatprep.subr.mxu0 0.0
        %2734 = vmatpush2.msra.mxu0 0.0
        %2735 = vmatprep.subr.mxu0 0.0
        %2736 = vmatpush2.msra.mxu0 0.0
        %2737 = vmatprep.subr.mxu0 0.0
        %2738 = vmatpush2.msra.mxu0 0.0
        %2739 = vmatprep.subr.mxu0 0.0
        %2740 = vmatpush2.msra.mxu0 0.0
        %2741 = vmatprep.subr.mxu0 0.0
        %2742 = vmatpush2.msra.mxu0 0.0
        %2743 = vmatprep.subr.mxu0 0.0
        %2744 = vmatpush2.msra.mxu0 0.0
        %2745 = vmatprep.subr.mxu0 0.0
        %2746 = vmatpush2.msra.mxu0 0.0
        %2747 = vmatprep.mubr.f32.mxu0 0.0
        %2748 = vmatmul.mubr.f32.gmra.mxu0 %v2681
        %v2749 = vpop.f32.mrf.mxu0
        %v2750 = vadd.f32 %v2676, %v2749
        %v2751 = vpop.f32.mrf.mxu0
        %2752 = vdwg.mxu0
        %v2754 = vsel %vm1253, %v2639, 0
        %2756 = vmatprep.subr.mxu0 0.0
        %2757 = vmatpush1.msra.mxu0 0.0
        %2758 = vmatprep.subr.mxu0 0.0
        %2759 = vmatpush1.msra.mxu0 0.0
        %2760 = vmatprep.subr.mxu0 0.0
        %2761 = vmatpush1.msra.mxu0 0.0
        %2762 = vmatprep.subr.mxu0 0.0
        %2763 = vmatpush1.msra.mxu0 0.0
        %2764 = vmatprep.subr.mxu0 0.0
        %2765 = vmatpush1.msra.mxu0 0.0
        %2766 = vmatprep.subr.mxu0 0.0
        %2767 = vmatpush1.msra.mxu0 0.0
        %2768 = vmatprep.subr.mxu0 0.0
        %2769 = vmatpush1.msra.mxu0 0.0
        %2770 = vmatprep.subr.mxu0 0.0
        %2771 = vmatpush1.msra.mxu0 0.0
        %2772 = vmatprep.subr.mxu0 0.0
        %2773 = vmatpush1.msra.mxu0 0.0
        %2774 = vmatprep.subr.mxu0 0.0
        %2775 = vmatpush1.msra.mxu0 0.0
        %2776 = vmatprep.subr.mxu0 0.0
        %2777 = vmatpush1.msra.mxu0 0.0
        %2778 = vmatprep.subr.mxu0 0.0
        %2779 = vmatpush1.msra.mxu0 0.0
        %2780 = vmatprep.subr.mxu0 0.0
        %2781 = vmatpush1.msra.mxu0 0.0
        %2782 = vmatprep.subr.mxu0 0.0
        %2783 = vmatpush1.msra.mxu0 0.0
        %2784 = vmatprep.subr.mxu0 0.0
        %2785 = vmatpush1.msra.mxu0 0.0
        %2786 = vmatprep.subr.mxu0 0.0
        %2787 = vmatpush1.msra.mxu0 %v903
        %2788 = vmatprep.subr.mxu0 0.0
        %2789 = vmatpush2.msra.mxu0 0.0
        %2790 = vmatprep.subr.mxu0 0.0
        %2791 = vmatpush2.msra.mxu0 0.0
        %2792 = vmatprep.subr.mxu0 0.0
        %2793 = vmatpush2.msra.mxu0 0.0
        %2794 = vmatprep.subr.mxu0 0.0
        %2795 = vmatpush2.msra.mxu0 0.0
        %2796 = vmatprep.subr.mxu0 0.0
        %2797 = vmatpush2.msra.mxu0 0.0
        %2798 = vmatprep.subr.mxu0 0.0
        %2799 = vmatpush2.msra.mxu0 0.0
        %2800 = vmatprep.subr.mxu0 0.0
        %2801 = vmatpush2.msra.mxu0 0.0
        %2802 = vmatprep.subr.mxu0 0.0
        %2803 = vmatpush2.msra.mxu0 0.0
        %2804 = vmatprep.subr.mxu0 0.0
        %2805 = vmatpush2.msra.mxu0 0.0
        %2806 = vmatprep.subr.mxu0 0.0
        %2807 = vmatpush2.msra.mxu0 0.0
        %2808 = vmatprep.subr.mxu0 0.0
        %2809 = vmatpush2.msra.mxu0 0.0
        %2810 = vmatprep.subr.mxu0 0.0
        %2811 = vmatpush2.msra.mxu0 0.0
        %2812 = vmatprep.subr.mxu0 0.0
        %2813 = vmatpush2.msra.mxu0 0.0
        %2814 = vmatprep.subr.mxu0 0.0
        %2815 = vmatpush2.msra.mxu0 0.0
        %2816 = vmatprep.subr.mxu0 0.0
        %2817 = vmatpush2.msra.mxu0 0.0
        %2818 = vmatprep.subr.mxu0 0.0
        %2819 = vmatpush2.msra.mxu0 0.0
        %2820 = vmatprep.mubr.f32.mxu0 0.0
        %2821 = vmatmul.mubr.f32.gmra.mxu0 %v2754
        %v2822 = vpop.f32.mrf.mxu0
        %v2823 = vadd.f32 %v2677, %v2822
        %v2824 = vpop.f32.mrf.mxu0
        %2825 = vdwg.mxu0
        %v2827 = vsel %vm1253, %v2641, 0
        %2829 = vmatprep.subr.mxu0 0.0
        %2830 = vmatpush1.msra.mxu0 0.0
        %2831 = vmatprep.subr.mxu0 0.0
        %2832 = vmatpush1.msra.mxu0 0.0
        %2833 = vmatprep.subr.mxu0 0.0
        %2834 = vmatpush1.msra.mxu0 0.0
        %2835 = vmatprep.subr.mxu0 0.0
        %2836 = vmatpush1.msra.mxu0 0.0
        %2837 = vmatprep.subr.mxu0 0.0
        %2838 = vmatpush1.msra.mxu0 0.0
        %2839 = vmatprep.subr.mxu0 0.0
        %2840 = vmatpush1.msra.mxu0 0.0
        %2841 = vmatprep.subr.mxu0 0.0
        %2842 = vmatpush1.msra.mxu0 0.0
        %2843 = vmatprep.subr.mxu0 0.0
        %2844 = vmatpush1.msra.mxu0 0.0
        %2845 = vmatprep.subr.mxu0 0.0
        %2846 = vmatpush1.msra.mxu0 0.0
        %2847 = vmatprep.subr.mxu0 0.0
        %2848 = vmatpush1.msra.mxu0 0.0
        %2849 = vmatprep.subr.mxu0 0.0
        %2850 = vmatpush1.msra.mxu0 0.0
        %2851 = vmatprep.subr.mxu0 0.0
        %2852 = vmatpush1.msra.mxu0 0.0
        %2853 = vmatprep.subr.mxu0 0.0
        %2854 = vmatpush1.msra.mxu0 0.0
        %2855 = vmatprep.subr.mxu0 0.0
        %2856 = vmatpush1.msra.mxu0 0.0
        %2857 = vmatprep.subr.mxu0 0.0
        %2858 = vmatpush1.msra.mxu0 0.0
        %2859 = vmatprep.subr.mxu0 0.0
        %2860 = vmatpush1.msra.mxu0 %v908
        %2861 = vmatprep.subr.mxu0 0.0
        %2862 = vmatpush2.msra.mxu0 0.0
        %2863 = vmatprep.subr.mxu0 0.0
        %2864 = vmatpush2.msra.mxu0 0.0
        %2865 = vmatprep.subr.mxu0 0.0
        %2866 = vmatpush2.msra.mxu0 0.0
        %2867 = vmatprep.subr.mxu0 0.0
        %2868 = vmatpush2.msra.mxu0 0.0
        %2869 = vmatprep.subr.mxu0 0.0
        %2870 = vmatpush2.msra.mxu0 0.0
        %2871 = vmatprep.subr.mxu0 0.0
        %2872 = vmatpush2.msra.mxu0 0.0
        %2873 = vmatprep.subr.mxu0 0.0
        %2874 = vmatpush2.msra.mxu0 0.0
        %2875 = vmatprep.subr.mxu0 0.0
        %2876 = vmatpush2.msra.mxu0 0.0
        %2877 = vmatprep.subr.mxu0 0.0
        %2878 = vmatpush2.msra.mxu0 0.0
        %2879 = vmatprep.subr.mxu0 0.0
        %2880 = vmatpush2.msra.mxu0 0.0
        %2881 = vmatprep.subr.mxu0 0.0
        %2882 = vmatpush2.msra.mxu0 0.0
        %2883 = vmatprep.subr.mxu0 0.0
        %2884 = vmatpush2.msra.mxu0 0.0
        %2885 = vmatprep.subr.mxu0 0.0
        %2886 = vmatpush2.msra.mxu0 0.0
        %2887 = vmatprep.subr.mxu0 0.0
        %2888 = vmatpush2.msra.mxu0 0.0
        %2889 = vmatprep.subr.mxu0 0.0
        %2890 = vmatpush2.msra.mxu0 0.0
        %2891 = vmatprep.subr.mxu0 0.0
        %2892 = vmatpush2.msra.mxu0 0.0
        %2893 = vmatprep.mubr.f32.mxu0 0.0
        %2894 = vmatmul.mubr.f32.gmra.mxu0 %v2827
        %v2895 = vpop.f32.mrf.mxu0
        %v2896 = vadd.f32 %v2678, %v2895
        %v2897 = vpop.f32.mrf.mxu0
        %2898 = vdwg.mxu0
        %v2900 = vsel %vm1253, %v2643, 0
        %2902 = vmatprep.subr.mxu0 0.0
        %2903 = vmatpush1.msra.mxu0 0.0
        %2904 = vmatprep.subr.mxu0 0.0
        %2905 = vmatpush1.msra.mxu0 0.0
        %2906 = vmatprep.subr.mxu0 0.0
        %2907 = vmatpush1.msra.mxu0 0.0
        %2908 = vmatprep.subr.mxu0 0.0
        %2909 = vmatpush1.msra.mxu0 0.0
        %2910 = vmatprep.subr.mxu0 0.0
        %2911 = vmatpush1.msra.mxu0 0.0
        %2912 = vmatprep.subr.mxu0 0.0
        %2913 = vmatpush1.msra.mxu0 0.0
        %2914 = vmatprep.subr.mxu0 0.0
        %2915 = vmatpush1.msra.mxu0 0.0
        %2916 = vmatprep.subr.mxu0 0.0
        %2917 = vmatpush1.msra.mxu0 0.0
        %2918 = vmatprep.subr.mxu0 0.0
        %2919 = vmatpush1.msra.mxu0 0.0
        %2920 = vmatprep.subr.mxu0 0.0
        %2921 = vmatpush1.msra.mxu0 0.0
        %2922 = vmatprep.subr.mxu0 0.0
        %2923 = vmatpush1.msra.mxu0 0.0
        %2924 = vmatprep.subr.mxu0 0.0
        %2925 = vmatpush1.msra.mxu0 0.0
        %2926 = vmatprep.subr.mxu0 0.0
        %2927 = vmatpush1.msra.mxu0 0.0
        %2928 = vmatprep.subr.mxu0 0.0
        %2929 = vmatpush1.msra.mxu0 0.0
        %2930 = vmatprep.subr.mxu0 0.0
        %2931 = vmatpush1.msra.mxu0 0.0
        %2932 = vmatprep.subr.mxu0 0.0
        %2933 = vmatpush1.msra.mxu0 %v911
        %2934 = vmatprep.subr.mxu0 0.0
        %2935 = vmatpush2.msra.mxu0 0.0
        %2936 = vmatprep.subr.mxu0 0.0
        %2937 = vmatpush2.msra.mxu0 0.0
        %2938 = vmatprep.subr.mxu0 0.0
        %2939 = vmatpush2.msra.mxu0 0.0
        %2940 = vmatprep.subr.mxu0 0.0
        %2941 = vmatpush2.msra.mxu0 0.0
        %2942 = vmatprep.subr.mxu0 0.0
        %2943 = vmatpush2.msra.mxu0 0.0
        %2944 = vmatprep.subr.mxu0 0.0
        %2945 = vmatpush2.msra.mxu0 0.0
        %2946 = vmatprep.subr.mxu0 0.0
        %2947 = vmatpush2.msra.mxu0 0.0
        %2948 = vmatprep.subr.mxu0 0.0
        %2949 = vmatpush2.msra.mxu0 0.0
        %2950 = vmatprep.subr.mxu0 0.0
        %2951 = vmatpush2.msra.mxu0 0.0
        %2952 = vmatprep.subr.mxu0 0.0
        %2953 = vmatpush2.msra.mxu0 0.0
        %2954 = vmatprep.subr.mxu0 0.0
        %2955 = vmatpush2.msra.mxu0 0.0
        %2956 = vmatprep.subr.mxu0 0.0
        %2957 = vmatpush2.msra.mxu0 0.0
        %2958 = vmatprep.subr.mxu0 0.0
        %2959 = vmatpush2.msra.mxu0 0.0
        %2960 = vmatprep.subr.mxu0 0.0
        %2961 = vmatpush2.msra.mxu0 0.0
        %2962 = vmatprep.subr.mxu0 0.0
        %2963 = vmatpush2.msra.mxu0 0.0
        %2964 = vmatprep.subr.mxu0 0.0
        %2965 = vmatpush2.msra.mxu0 0.0
        %2966 = vmatprep.mubr.f32.mxu0 0.0
        %2967 = vmatmul.mubr.f32.gmra.mxu0 %v2900
        %v2968 = vpop.f32.mrf.mxu0
        %v2969 = vadd.f32 %v2679, %v2968
        %v2970 = vpop.f32.mrf.mxu0
        %2971 = vdwg.mxu0
        %v2972 = vmul.f32 %v2750, %v2672
        %v2973 = vmul.f32 %v2823, %v2673
        %v2974 = vmul.f32 %v2896, %v2674
        %v2975 = vmul.f32 %v2969, %v2675
        %v2976 = vmul.f32 %v2972, %v2319
        %v2977 = vmul.f32 %v2973, %v2319
        %v2978 = vmul.f32 %v2974, %v2319
        %v2979 = vmul.f32 %v2975, %v2319
        %v2980 = vadd.f32 %v2311, %v2976
        %v2981 = vadd.f32 %v2312, %v2977
        %v2982 = vadd.f32 %v2313, %v2978
        %v2983 = vadd.f32 %v2314, %v2979
        %vm2984 = vcmp.ge.s32.totalorder %v925, 96
        %vm2985 = vcmp.lt.s32.totalorder %v925, 128
        %vm2986 = vmand %vm2984, %vm2985
        %v2987 = vsel %vm2986, 1, 0
        %v2988 = vcvt.s32.f32 %v2987
        %v2989 = vmul.f32 %v660, %v2988
        %v2990 = vmul.f32 %v663, %v2988
        %v2991 = vmul.f32 %v668, %v2988
        %v2992 = vmul.f32 %v671, %v2988
        %2993 = vmatprep.subr.mxu0 0.0
        %2994 = vmatpush1.xpose.msra.mxu0 0.0
        %2995 = vmatprep.subr.mxu0 0.0
        %2996 = vmatpush1.xpose.msra.mxu0 0.0
        %2997 = vmatprep.subr.mxu0 0.0
        %2998 = vmatpush1.xpose.msra.mxu0 0.0
        %2999 = vmatprep.subr.mxu0 0.0
        %3000 = vmatpush1.xpose.msra.mxu0 0.0
        %3001 = vmatprep.subr.mxu0 0.0
        %3002 = vmatpush1.xpose.msra.mxu0 0.0
        %3003 = vmatprep.subr.mxu0 0.0
        %3004 = vmatpush1.xpose.msra.mxu0 0.0
        %3005 = vmatprep.subr.mxu0 0.0
        %3006 = vmatpush1.xpose.msra.mxu0 0.0
        %3007 = vmatprep.subr.mxu0 0.0
        %3008 = vmatpush1.xpose.msra.mxu0 0.0
        %3009 = vmatprep.subr.mxu0 0.0
        %3010 = vmatpush1.xpose.msra.mxu0 0.0
        %3011 = vmatprep.subr.mxu0 0.0
        %3012 = vmatpush1.xpose.msra.mxu0 0.0
        %3013 = vmatprep.subr.mxu0 0.0
        %3014 = vmatpush1.xpose.msra.mxu0 0.0
        %3015 = vmatprep.subr.mxu0 0.0
        %3016 = vmatpush1.xpose.msra.mxu0 0.0
        %3017 = vmatprep.subr.mxu0 0.0
        %3018 = vmatpush1.xpose.msra.mxu0 0.0
        %3019 = vmatprep.subr.mxu0 0.0
        %3020 = vmatpush1.xpose.msra.mxu0 0.0
        %3021 = vmatprep.subr.mxu0 0.0
        %3022 = vmatpush1.xpose.msra.mxu0 0.0
        %3023 = vmatprep.subr.mxu0 0.0
        %3024 = vmatpush1.xpose.msra.mxu0 %v780
        %3025 = vmatprep.subr.mxu0 0.0
        %3026 = vmatpush2.xpose.msra.mxu0 0.0
        %3027 = vmatprep.subr.mxu0 0.0
        %3028 = vmatpush2.xpose.msra.mxu0 0.0
        %3029 = vmatprep.subr.mxu0 0.0
        %3030 = vmatpush2.xpose.msra.mxu0 0.0
        %3031 = vmatprep.subr.mxu0 0.0
        %3032 = vmatpush2.xpose.msra.mxu0 0.0
        %3033 = vmatprep.subr.mxu0 0.0
        %3034 = vmatpush2.xpose.msra.mxu0 0.0
        %3035 = vmatprep.subr.mxu0 0.0
        %3036 = vmatpush2.xpose.msra.mxu0 0.0
        %3037 = vmatprep.subr.mxu0 0.0
        %3038 = vmatpush2.xpose.msra.mxu0 0.0
        %3039 = vmatprep.subr.mxu0 0.0
        %3040 = vmatpush2.xpose.msra.mxu0 0.0
        %3041 = vmatprep.subr.mxu0 0.0
        %3042 = vmatpush2.xpose.msra.mxu0 0.0
        %3043 = vmatprep.subr.mxu0 0.0
        %3044 = vmatpush2.xpose.msra.mxu0 0.0
        %3045 = vmatprep.subr.mxu0 0.0
        %3046 = vmatpush2.xpose.msra.mxu0 0.0
        %3047 = vmatprep.subr.mxu0 0.0
        %3048 = vmatpush2.xpose.msra.mxu0 0.0
        %3049 = vmatprep.subr.mxu0 0.0
        %3050 = vmatpush2.xpose.msra.mxu0 0.0
        %3051 = vmatprep.subr.mxu0 0.0
        %3052 = vmatpush2.xpose.msra.mxu0 0.0
        %3053 = vmatprep.subr.mxu0 0.0
        %3054 = vmatpush2.xpose.msra.mxu0 0.0
        %3055 = vmatprep.subr.mxu0 0.0
        %3056 = vmatpush2.xpose.msra.mxu0 0.0
        %3057 = vmatprep.mubr.f32.mxu0 0.0
        %3058 = vmatmul.mubr.f32.gmra.mxu0 %v2989
        %v3059 = vpop.f32.mrf.mxu0
        %v3060 = vadd.f32 %v927, %v3059
        %v3061 = vpop.f32.mrf.mxu0
        %3062 = vdwg.mxu0
        %3063 = vmatprep.subr.mxu0 0.0
        %3064 = vmatpush1.xpose.msra.mxu0 0.0
        %3065 = vmatprep.subr.mxu0 0.0
        %3066 = vmatpush1.xpose.msra.mxu0 0.0
        %3067 = vmatprep.subr.mxu0 0.0
        %3068 = vmatpush1.xpose.msra.mxu0 0.0
        %3069 = vmatprep.subr.mxu0 0.0
        %3070 = vmatpush1.xpose.msra.mxu0 0.0
        %3071 = vmatprep.subr.mxu0 0.0
        %3072 = vmatpush1.xpose.msra.mxu0 0.0
        %3073 = vmatprep.subr.mxu0 0.0
        %3074 = vmatpush1.xpose.msra.mxu0 0.0
        %3075 = vmatprep.subr.mxu0 0.0
        %3076 = vmatpush1.xpose.msra.mxu0 0.0
        %3077 = vmatprep.subr.mxu0 0.0
        %3078 = vmatpush1.xpose.msra.mxu0 0.0
        %3079 = vmatprep.subr.mxu0 0.0
        %3080 = vmatpush1.xpose.msra.mxu0 0.0
        %3081 = vmatprep.subr.mxu0 0.0
        %3082 = vmatpush1.xpose.msra.mxu0 0.0
        %3083 = vmatprep.subr.mxu0 0.0
        %3084 = vmatpush1.xpose.msra.mxu0 0.0
        %3085 = vmatprep.subr.mxu0 0.0
        %3086 = vmatpush1.xpose.msra.mxu0 0.0
        %3087 = vmatprep.subr.mxu0 0.0
        %3088 = vmatpush1.xpose.msra.mxu0 0.0
        %3089 = vmatprep.subr.mxu0 0.0
        %3090 = vmatpush1.xpose.msra.mxu0 0.0
        %3091 = vmatprep.subr.mxu0 0.0
        %3092 = vmatpush1.xpose.msra.mxu0 0.0
        %3093 = vmatprep.subr.mxu0 0.0
        %3094 = vmatpush1.xpose.msra.mxu0 %v783
        %3095 = vmatprep.subr.mxu0 0.0
        %3096 = vmatpush2.xpose.msra.mxu0 0.0
        %3097 = vmatprep.subr.mxu0 0.0
        %3098 = vmatpush2.xpose.msra.mxu0 0.0
        %3099 = vmatprep.subr.mxu0 0.0
        %3100 = vmatpush2.xpose.msra.mxu0 0.0
        %3101 = vmatprep.subr.mxu0 0.0
        %3102 = vmatpush2.xpose.msra.mxu0 0.0
        %3103 = vmatprep.subr.mxu0 0.0
        %3104 = vmatpush2.xpose.msra.mxu0 0.0
        %3105 = vmatprep.subr.mxu0 0.0
        %3106 = vmatpush2.xpose.msra.mxu0 0.0
        %3107 = vmatprep.subr.mxu0 0.0
        %3108 = vmatpush2.xpose.msra.mxu0 0.0
        %3109 = vmatprep.subr.mxu0 0.0
        %3110 = vmatpush2.xpose.msra.mxu0 0.0
        %3111 = vmatprep.subr.mxu0 0.0
        %3112 = vmatpush2.xpose.msra.mxu0 0.0
        %3113 = vmatprep.subr.mxu0 0.0
        %3114 = vmatpush2.xpose.msra.mxu0 0.0
        %3115 = vmatprep.subr.mxu0 0.0
        %3116 = vmatpush2.xpose.msra.mxu0 0.0
        %3117 = vmatprep.subr.mxu0 0.0
        %3118 = vmatpush2.xpose.msra.mxu0 0.0
        %3119 = vmatprep.subr.mxu0 0.0
        %3120 = vmatpush2.xpose.msra.mxu0 0.0
        %3121 = vmatprep.subr.mxu0 0.0
        %3122 = vmatpush2.xpose.msra.mxu0 0.0
        %3123 = vmatprep.subr.mxu0 0.0
        %3124 = vmatpush2.xpose.msra.mxu0 0.0
        %3125 = vmatprep.subr.mxu0 0.0
        %3126 = vmatpush2.xpose.msra.mxu0 0.0
        %3127 = vmatprep.mubr.f32.mxu0 0.0
        %3128 = vmatmul.mubr.f32.gmra.mxu0 %v2990
        %v3129 = vpop.f32.mrf.mxu0
        %v3130 = vadd.f32 %v927, %v3129
        %v3131 = vpop.f32.mrf.mxu0
        %3132 = vdwg.mxu0
        %3133 = vmatprep.subr.mxu0 0.0
        %3134 = vmatpush1.xpose.msra.mxu0 0.0
        %3135 = vmatprep.subr.mxu0 0.0
        %3136 = vmatpush1.xpose.msra.mxu0 0.0
        %3137 = vmatprep.subr.mxu0 0.0
        %3138 = vmatpush1.xpose.msra.mxu0 0.0
        %3139 = vmatprep.subr.mxu0 0.0
        %3140 = vmatpush1.xpose.msra.mxu0 0.0
        %3141 = vmatprep.subr.mxu0 0.0
        %3142 = vmatpush1.xpose.msra.mxu0 0.0
        %3143 = vmatprep.subr.mxu0 0.0
        %3144 = vmatpush1.xpose.msra.mxu0 0.0
        %3145 = vmatprep.subr.mxu0 0.0
        %3146 = vmatpush1.xpose.msra.mxu0 0.0
        %3147 = vmatprep.subr.mxu0 0.0
        %3148 = vmatpush1.xpose.msra.mxu0 0.0
        %3149 = vmatprep.subr.mxu0 0.0
        %3150 = vmatpush1.xpose.msra.mxu0 0.0
        %3151 = vmatprep.subr.mxu0 0.0
        %3152 = vmatpush1.xpose.msra.mxu0 0.0
        %3153 = vmatprep.subr.mxu0 0.0
        %3154 = vmatpush1.xpose.msra.mxu0 0.0
        %3155 = vmatprep.subr.mxu0 0.0
        %3156 = vmatpush1.xpose.msra.mxu0 0.0
        %3157 = vmatprep.subr.mxu0 0.0
        %3158 = vmatpush1.xpose.msra.mxu0 0.0
        %3159 = vmatprep.subr.mxu0 0.0
        %3160 = vmatpush1.xpose.msra.mxu0 0.0
        %3161 = vmatprep.subr.mxu0 0.0
        %3162 = vmatpush1.xpose.msra.mxu0 0.0
        %3163 = vmatprep.subr.mxu0 0.0
        %3164 = vmatpush1.xpose.msra.mxu0 %v788
        %3165 = vmatprep.subr.mxu0 0.0
        %3166 = vmatpush2.xpose.msra.mxu0 0.0
        %3167 = vmatprep.subr.mxu0 0.0
        %3168 = vmatpush2.xpose.msra.mxu0 0.0
        %3169 = vmatprep.subr.mxu0 0.0
        %3170 = vmatpush2.xpose.msra.mxu0 0.0
        %3171 = vmatprep.subr.mxu0 0.0
        %3172 = vmatpush2.xpose.msra.mxu0 0.0
        %3173 = vmatprep.subr.mxu0 0.0
        %3174 = vmatpush2.xpose.msra.mxu0 0.0
        %3175 = vmatprep.subr.mxu0 0.0
        %3176 = vmatpush2.xpose.msra.mxu0 0.0
        %3177 = vmatprep.subr.mxu0 0.0
        %3178 = vmatpush2.xpose.msra.mxu0 0.0
        %3179 = vmatprep.subr.mxu0 0.0
        %3180 = vmatpush2.xpose.msra.mxu0 0.0
        %3181 = vmatprep.subr.mxu0 0.0
        %3182 = vmatpush2.xpose.msra.mxu0 0.0
        %3183 = vmatprep.subr.mxu0 0.0
        %3184 = vmatpush2.xpose.msra.mxu0 0.0
        %3185 = vmatprep.subr.mxu0 0.0
        %3186 = vmatpush2.xpose.msra.mxu0 0.0
        %3187 = vmatprep.subr.mxu0 0.0
        %3188 = vmatpush2.xpose.msra.mxu0 0.0
        %3189 = vmatprep.subr.mxu0 0.0
        %3190 = vmatpush2.xpose.msra.mxu0 0.0
        %3191 = vmatprep.subr.mxu0 0.0
        %3192 = vmatpush2.xpose.msra.mxu0 0.0
        %3193 = vmatprep.subr.mxu0 0.0
        %3194 = vmatpush2.xpose.msra.mxu0 0.0
        %3195 = vmatprep.subr.mxu0 0.0
        %3196 = vmatpush2.xpose.msra.mxu0 0.0
        %3197 = vmatprep.mubr.f32.mxu0 0.0
        %3198 = vmatmul.mubr.f32.gmra.mxu0 %v2991
        %v3199 = vpop.f32.mrf.mxu0
        %v3200 = vadd.f32 %v927, %v3199
        %v3201 = vpop.f32.mrf.mxu0
        %3202 = vdwg.mxu0
        %3203 = vmatprep.subr.mxu0 0.0
        %3204 = vmatpush1.xpose.msra.mxu0 0.0
        %3205 = vmatprep.subr.mxu0 0.0
        %3206 = vmatpush1.xpose.msra.mxu0 0.0
        %3207 = vmatprep.subr.mxu0 0.0
        %3208 = vmatpush1.xpose.msra.mxu0 0.0
        %3209 = vmatprep.subr.mxu0 0.0
        %3210 = vmatpush1.xpose.msra.mxu0 0.0
        %3211 = vmatprep.subr.mxu0 0.0
        %3212 = vmatpush1.xpose.msra.mxu0 0.0
        %3213 = vmatprep.subr.mxu0 0.0
        %3214 = vmatpush1.xpose.msra.mxu0 0.0
        %3215 = vmatprep.subr.mxu0 0.0
        %3216 = vmatpush1.xpose.msra.mxu0 0.0
        %3217 = vmatprep.subr.mxu0 0.0
        %3218 = vmatpush1.xpose.msra.mxu0 0.0
        %3219 = vmatprep.subr.mxu0 0.0
        %3220 = vmatpush1.xpose.msra.mxu0 0.0
        %3221 = vmatprep.subr.mxu0 0.0
        %3222 = vmatpush1.xpose.msra.mxu0 0.0
        %3223 = vmatprep.subr.mxu0 0.0
        %3224 = vmatpush1.xpose.msra.mxu0 0.0
        %3225 = vmatprep.subr.mxu0 0.0
        %3226 = vmatpush1.xpose.msra.mxu0 0.0
        %3227 = vmatprep.subr.mxu0 0.0
        %3228 = vmatpush1.xpose.msra.mxu0 0.0
        %3229 = vmatprep.subr.mxu0 0.0
        %3230 = vmatpush1.xpose.msra.mxu0 0.0
        %3231 = vmatprep.subr.mxu0 0.0
        %3232 = vmatpush1.xpose.msra.mxu0 0.0
        %3233 = vmatprep.subr.mxu0 0.0
        %3234 = vmatpush1.xpose.msra.mxu0 %v791
        %3235 = vmatprep.subr.mxu0 0.0
        %3236 = vmatpush2.xpose.msra.mxu0 0.0
        %3237 = vmatprep.subr.mxu0 0.0
        %3238 = vmatpush2.xpose.msra.mxu0 0.0
        %3239 = vmatprep.subr.mxu0 0.0
        %3240 = vmatpush2.xpose.msra.mxu0 0.0
        %3241 = vmatprep.subr.mxu0 0.0
        %3242 = vmatpush2.xpose.msra.mxu0 0.0
        %3243 = vmatprep.subr.mxu0 0.0
        %3244 = vmatpush2.xpose.msra.mxu0 0.0
        %3245 = vmatprep.subr.mxu0 0.0
        %3246 = vmatpush2.xpose.msra.mxu0 0.0
        %3247 = vmatprep.subr.mxu0 0.0
        %3248 = vmatpush2.xpose.msra.mxu0 0.0
        %3249 = vmatprep.subr.mxu0 0.0
        %3250 = vmatpush2.xpose.msra.mxu0 0.0
        %3251 = vmatprep.subr.mxu0 0.0
        %3252 = vmatpush2.xpose.msra.mxu0 0.0
        %3253 = vmatprep.subr.mxu0 0.0
        %3254 = vmatpush2.xpose.msra.mxu0 0.0
        %3255 = vmatprep.subr.mxu0 0.0
        %3256 = vmatpush2.xpose.msra.mxu0 0.0
        %3257 = vmatprep.subr.mxu0 0.0
        %3258 = vmatpush2.xpose.msra.mxu0 0.0
        %3259 = vmatprep.subr.mxu0 0.0
        %3260 = vmatpush2.xpose.msra.mxu0 0.0
        %3261 = vmatprep.subr.mxu0 0.0
        %3262 = vmatpush2.xpose.msra.mxu0 0.0
        %3263 = vmatprep.subr.mxu0 0.0
        %3264 = vmatpush2.xpose.msra.mxu0 0.0
        %3265 = vmatprep.subr.mxu0 0.0
        %3266 = vmatpush2.xpose.msra.mxu0 0.0
        %3267 = vmatprep.mubr.f32.mxu0 0.0
        %3268 = vmatmul.mubr.f32.gmra.mxu0 %v2992
        %v3269 = vpop.f32.mrf.mxu0
        %v3270 = vadd.f32 %v927, %v3269
        %v3271 = vpop.f32.mrf.mxu0
        %3272 = vdwg.mxu0
        %v3273 = vmul.f32 %v2989, %v1224
        %v3274 = vmul.f32 %v2990, %v1228
        %v3275 = vmul.f32 %v2991, %v1232
        %v3276 = vmul.f32 %v2992, %v1236
        %3277 = vadd.xlane.f32.xlu0 %v3273
        %v3278 = vpop.xlane.xlu0 %3277
        %3279 = vadd.xlane.f32.xlu0 %v3274
        %v3280 = vpop.xlane.xlu0 %3279
        %3281 = vadd.xlane.f32.xlu0 %v3275
        %v3282 = vpop.xlane.xlu0 %3281
        %3283 = vadd.xlane.f32.xlu0 %v3276
        %v3284 = vpop.xlane.xlu0 %3283
        %v3285 = vsel %vm1253, %v3060, -inf
        %3286 = vmax.xlane.f32.xlu0 %v3285
        %v3287 = vpop.xlane.xlu0 %3286
        %v3288 = vsel %vm1253, %v3130, -inf
        %3289 = vmax.xlane.f32.xlu0 %v3288
        %v3290 = vpop.xlane.xlu0 %3289
        %v3291 = vsel %vm1253, %v3200, -inf
        %3292 = vmax.xlane.f32.xlu0 %v3291
        %v3293 = vpop.xlane.xlu0 %3292
        %v3294 = vsel %vm1253, %v3270, -inf
        %3295 = vmax.xlane.f32.xlu0 %v3294
        %v3296 = vpop.xlane.xlu0 %3295
        %v3297 = vmax.f32 %v3287, %v3278
        %v3298 = vmax.f32 %v3290, %v3280
        %v3299 = vmax.f32 %v3293, %v3282
        %v3300 = vmax.f32 %v3296, %v3284
        %v3301 = vsub.f32 %v3060, %v3297
        %v3302 = vsub.f32 %v3130, %v3298
        %v3303 = vsub.f32 %v3200, %v3299
        %v3304 = vsub.f32 %v3270, %v3300
        %v3305 = vmul.f32 %v3301, 1.442695
        %v3306 = vpow.pop %v3305
        %v3307 = vmul.f32 %v3302, 1.442695
        %v3308 = vpow.pop %v3307
        %v3309 = vmul.f32 %v3303, 1.442695
        %v3310 = vpow.pop %v3309
        %v3311 = vmul.f32 %v3304, 1.442695
        %v3312 = vpow.pop %v3311
        %v3313 = vsub.f32 %v3278, %v3297
        %v3314 = vsub.f32 %v3280, %v3298
        %v3315 = vsub.f32 %v3282, %v3299
        %v3316 = vsub.f32 %v3284, %v3300
        %v3317 = vmul.f32 %v3313, 1.442695
        %v3318 = vpow.pop %v3317
        %v3319 = vmul.f32 %v3314, 1.442695
        %v3320 = vpow.pop %v3319
        %v3321 = vmul.f32 %v3315, 1.442695
        %v3322 = vpow.pop %v3321
        %v3323 = vmul.f32 %v3316, 1.442695
        %v3324 = vpow.pop %v3323
        %v3325 = vsel %vm1253, %v3306, 0.0
        %3326 = vadd.xlane.f32.xlu0 %v3325
        %v3327 = vpop.xlane.xlu0 %3326
        %v3328 = vsel %vm1253, %v3308, 0.0
        %3329 = vadd.xlane.f32.xlu0 %v3328
        %v3330 = vpop.xlane.xlu0 %3329
        %v3331 = vsel %vm1253, %v3310, 0.0
        %3332 = vadd.xlane.f32.xlu0 %v3331
        %v3333 = vpop.xlane.xlu0 %3332
        %v3334 = vsel %vm1253, %v3312, 0.0
        %3335 = vadd.xlane.f32.xlu0 %v3334
        %v3336 = vpop.xlane.xlu0 %3335
        %v3337 = vadd.f32 %v3327, %v3318
        %v3338 = vadd.f32 %v3330, %v3320
        %v3339 = vadd.f32 %v3333, %v3322
        %v3340 = vadd.f32 %v3336, %v3324
        %v3341 = vrcp.pop %v3337
        %v3342 = vrcp.pop %v3338
        %v3343 = vrcp.pop %v3339
        %v3344 = vrcp.pop %v3340
        %v3345 = vmul.f32 %v3318, %v1321
        %v3346 = vmul.f32 %v3320, %v1325
        %v3347 = vmul.f32 %v3322, %v1329
        %v3348 = vmul.f32 %v3324, %v1333
        %v3350 = vsel %vm1253, %v3306, 0
        %3352 = vmatprep.subr.mxu0 0.0
        %3353 = vmatpush1.msra.mxu0 0.0
        %3354 = vmatprep.subr.mxu0 0.0
        %3355 = vmatpush1.msra.mxu0 0.0
        %3356 = vmatprep.subr.mxu0 0.0
        %3357 = vmatpush1.msra.mxu0 0.0
        %3358 = vmatprep.subr.mxu0 0.0
        %3359 = vmatpush1.msra.mxu0 0.0
        %3360 = vmatprep.subr.mxu0 0.0
        %3361 = vmatpush1.msra.mxu0 0.0
        %3362 = vmatprep.subr.mxu0 0.0
        %3363 = vmatpush1.msra.mxu0 0.0
        %3364 = vmatprep.subr.mxu0 0.0
        %3365 = vmatpush1.msra.mxu0 0.0
        %3366 = vmatprep.subr.mxu0 0.0
        %3367 = vmatpush1.msra.mxu0 0.0
        %3368 = vmatprep.subr.mxu0 0.0
        %3369 = vmatpush1.msra.mxu0 0.0
        %3370 = vmatprep.subr.mxu0 0.0
        %3371 = vmatpush1.msra.mxu0 0.0
        %3372 = vmatprep.subr.mxu0 0.0
        %3373 = vmatpush1.msra.mxu0 0.0
        %3374 = vmatprep.subr.mxu0 0.0
        %3375 = vmatpush1.msra.mxu0 0.0
        %3376 = vmatprep.subr.mxu0 0.0
        %3377 = vmatpush1.msra.mxu0 0.0
        %3378 = vmatprep.subr.mxu0 0.0
        %3379 = vmatpush1.msra.mxu0 0.0
        %3380 = vmatprep.subr.mxu0 0.0
        %3381 = vmatpush1.msra.mxu0 0.0
        %3382 = vmatprep.subr.mxu0 0.0
        %3383 = vmatpush1.msra.mxu0 %v900
        %3384 = vmatprep.subr.mxu0 0.0
        %3385 = vmatpush2.msra.mxu0 0.0
        %3386 = vmatprep.subr.mxu0 0.0
        %3387 = vmatpush2.msra.mxu0 0.0
        %3388 = vmatprep.subr.mxu0 0.0
        %3389 = vmatpush2.msra.mxu0 0.0
        %3390 = vmatprep.subr.mxu0 0.0
        %3391 = vmatpush2.msra.mxu0 0.0
        %3392 = vmatprep.subr.mxu0 0.0
        %3393 = vmatpush2.msra.mxu0 0.0
        %3394 = vmatprep.subr.mxu0 0.0
        %3395 = vmatpush2.msra.mxu0 0.0
        %3396 = vmatprep.subr.mxu0 0.0
        %3397 = vmatpush2.msra.mxu0 0.0
        %3398 = vmatprep.subr.mxu0 0.0
        %3399 = vmatpush2.msra.mxu0 0.0
        %3400 = vmatprep.subr.mxu0 0.0
        %3401 = vmatpush2.msra.mxu0 0.0
        %3402 = vmatprep.subr.mxu0 0.0
        %3403 = vmatpush2.msra.mxu0 0.0
        %3404 = vmatprep.subr.mxu0 0.0
        %3405 = vmatpush2.msra.mxu0 0.0
        %3406 = vmatprep.subr.mxu0 0.0
        %3407 = vmatpush2.msra.mxu0 0.0
        %3408 = vmatprep.subr.mxu0 0.0
        %3409 = vmatpush2.msra.mxu0 0.0
        %3410 = vmatprep.subr.mxu0 0.0
        %3411 = vmatpush2.msra.mxu0 0.0
        %3412 = vmatprep.subr.mxu0 0.0
        %3413 = vmatpush2.msra.mxu0 0.0
        %3414 = vmatprep.subr.mxu0 0.0
        %3415 = vmatpush2.msra.mxu0 0.0
        %3416 = vmatprep.mubr.f32.mxu0 0.0
        %3417 = vmatmul.mubr.f32.gmra.mxu0 %v3350
        %v3418 = vpop.f32.mrf.mxu0
        %v3419 = vadd.f32 %v3345, %v3418
        %v3420 = vpop.f32.mrf.mxu0
        %3421 = vdwg.mxu0
        %v3423 = vsel %vm1253, %v3308, 0
        %3425 = vmatprep.subr.mxu0 0.0
        %3426 = vmatpush1.msra.mxu0 0.0
        %3427 = vmatprep.subr.mxu0 0.0
        %3428 = vmatpush1.msra.mxu0 0.0
        %3429 = vmatprep.subr.mxu0 0.0
        %3430 = vmatpush1.msra.mxu0 0.0
        %3431 = vmatprep.subr.mxu0 0.0
        %3432 = vmatpush1.msra.mxu0 0.0
        %3433 = vmatprep.subr.mxu0 0.0
        %3434 = vmatpush1.msra.mxu0 0.0
        %3435 = vmatprep.subr.mxu0 0.0
        %3436 = vmatpush1.msra.mxu0 0.0
        %3437 = vmatprep.subr.mxu0 0.0
        %3438 = vmatpush1.msra.mxu0 0.0
        %3439 = vmatprep.subr.mxu0 0.0
        %3440 = vmatpush1.msra.mxu0 0.0
        %3441 = vmatprep.subr.mxu0 0.0
        %3442 = vmatpush1.msra.mxu0 0.0
        %3443 = vmatprep.subr.mxu0 0.0
        %3444 = vmatpush1.msra.mxu0 0.0
        %3445 = vmatprep.subr.mxu0 0.0
        %3446 = vmatpush1.msra.mxu0 0.0
        %3447 = vmatprep.subr.mxu0 0.0
        %3448 = vmatpush1.msra.mxu0 0.0
        %3449 = vmatprep.subr.mxu0 0.0
        %3450 = vmatpush1.msra.mxu0 0.0
        %3451 = vmatprep.subr.mxu0 0.0
        %3452 = vmatpush1.msra.mxu0 0.0
        %3453 = vmatprep.subr.mxu0 0.0
        %3454 = vmatpush1.msra.mxu0 0.0
        %3455 = vmatprep.subr.mxu0 0.0
        %3456 = vmatpush1.msra.mxu0 %v903
        %3457 = vmatprep.subr.mxu0 0.0
        %3458 = vmatpush2.msra.mxu0 0.0
        %3459 = vmatprep.subr.mxu0 0.0
        %3460 = vmatpush2.msra.mxu0 0.0
        %3461 = vmatprep.subr.mxu0 0.0
        %3462 = vmatpush2.msra.mxu0 0.0
        %3463 = vmatprep.subr.mxu0 0.0
        %3464 = vmatpush2.msra.mxu0 0.0
        %3465 = vmatprep.subr.mxu0 0.0
        %3466 = vmatpush2.msra.mxu0 0.0
        %3467 = vmatprep.subr.mxu0 0.0
        %3468 = vmatpush2.msra.mxu0 0.0
        %3469 = vmatprep.subr.mxu0 0.0
        %3470 = vmatpush2.msra.mxu0 0.0
        %3471 = vmatprep.subr.mxu0 0.0
        %3472 = vmatpush2.msra.mxu0 0.0
        %3473 = vmatprep.subr.mxu0 0.0
        %3474 = vmatpush2.msra.mxu0 0.0
        %3475 = vmatprep.subr.mxu0 0.0
        %3476 = vmatpush2.msra.mxu0 0.0
        %3477 = vmatprep.subr.mxu0 0.0
        %3478 = vmatpush2.msra.mxu0 0.0
        %3479 = vmatprep.subr.mxu0 0.0
        %3480 = vmatpush2.msra.mxu0 0.0
        %3481 = vmatprep.subr.mxu0 0.0
        %3482 = vmatpush2.msra.mxu0 0.0
        %3483 = vmatprep.subr.mxu0 0.0
        %3484 = vmatpush2.msra.mxu0 0.0
        %3485 = vmatprep.subr.mxu0 0.0
        %3486 = vmatpush2.msra.mxu0 0.0
        %3487 = vmatprep.subr.mxu0 0.0
        %3488 = vmatpush2.msra.mxu0 0.0
        %3489 = vmatprep.mubr.f32.mxu0 0.0
        %3490 = vmatmul.mubr.f32.gmra.mxu0 %v3423
        %v3491 = vpop.f32.mrf.mxu0
        %v3492 = vadd.f32 %v3346, %v3491
        %v3493 = vpop.f32.mrf.mxu0
        %3494 = vdwg.mxu0
        %v3496 = vsel %vm1253, %v3310, 0
        %3498 = vmatprep.subr.mxu0 0.0
        %3499 = vmatpush1.msra.mxu0 0.0
        %3500 = vmatprep.subr.mxu0 0.0
        %3501 = vmatpush1.msra.mxu0 0.0
        %3502 = vmatprep.subr.mxu0 0.0
        %3503 = vmatpush1.msra.mxu0 0.0
        %3504 = vmatprep.subr.mxu0 0.0
        %3505 = vmatpush1.msra.mxu0 0.0
        %3506 = vmatprep.subr.mxu0 0.0
        %3507 = vmatpush1.msra.mxu0 0.0
        %3508 = vmatprep.subr.mxu0 0.0
        %3509 = vmatpush1.msra.mxu0 0.0
        %3510 = vmatprep.subr.mxu0 0.0
        %3511 = vmatpush1.msra.mxu0 0.0
        %3512 = vmatprep.subr.mxu0 0.0
        %3513 = vmatpush1.msra.mxu0 0.0
        %3514 = vmatprep.subr.mxu0 0.0
        %3515 = vmatpush1.msra.mxu0 0.0
        %3516 = vmatprep.subr.mxu0 0.0
        %3517 = vmatpush1.msra.mxu0 0.0
        %3518 = vmatprep.subr.mxu0 0.0
        %3519 = vmatpush1.msra.mxu0 0.0
        %3520 = vmatprep.subr.mxu0 0.0
        %3521 = vmatpush1.msra.mxu0 0.0
        %3522 = vmatprep.subr.mxu0 0.0
        %3523 = vmatpush1.msra.mxu0 0.0
        %3524 = vmatprep.subr.mxu0 0.0
        %3525 = vmatpush1.msra.mxu0 0.0
        %3526 = vmatprep.subr.mxu0 0.0
        %3527 = vmatpush1.msra.mxu0 0.0
        %3528 = vmatprep.subr.mxu0 0.0
        %3529 = vmatpush1.msra.mxu0 %v908
        %3530 = vmatprep.subr.mxu0 0.0
        %3531 = vmatpush2.msra.mxu0 0.0
        %3532 = vmatprep.subr.mxu0 0.0
        %3533 = vmatpush2.msra.mxu0 0.0
        %3534 = vmatprep.subr.mxu0 0.0
        %3535 = vmatpush2.msra.mxu0 0.0
        %3536 = vmatprep.subr.mxu0 0.0
        %3537 = vmatpush2.msra.mxu0 0.0
        %3538 = vmatprep.subr.mxu0 0.0
        %3539 = vmatpush2.msra.mxu0 0.0
        %3540 = vmatprep.subr.mxu0 0.0
        %3541 = vmatpush2.msra.mxu0 0.0
        %3542 = vmatprep.subr.mxu0 0.0
        %3543 = vmatpush2.msra.mxu0 0.0
        %3544 = vmatprep.subr.mxu0 0.0
        %3545 = vmatpush2.msra.mxu0 0.0
        %3546 = vmatprep.subr.mxu0 0.0
        %3547 = vmatpush2.msra.mxu0 0.0
        %3548 = vmatprep.subr.mxu0 0.0
        %3549 = vmatpush2.msra.mxu0 0.0
        %3550 = vmatprep.subr.mxu0 0.0
        %3551 = vmatpush2.msra.mxu0 0.0
        %3552 = vmatprep.subr.mxu0 0.0
        %3553 = vmatpush2.msra.mxu0 0.0
        %3554 = vmatprep.subr.mxu0 0.0
        %3555 = vmatpush2.msra.mxu0 0.0
        %3556 = vmatprep.subr.mxu0 0.0
        %3557 = vmatpush2.msra.mxu0 0.0
        %3558 = vmatprep.subr.mxu0 0.0
        %3559 = vmatpush2.msra.mxu0 0.0
        %3560 = vmatprep.subr.mxu0 0.0
        %3561 = vmatpush2.msra.mxu0 0.0
        %3562 = vmatprep.mubr.f32.mxu0 0.0
        %3563 = vmatmul.mubr.f32.gmra.mxu0 %v3496
        %v3564 = vpop.f32.mrf.mxu0
        %v3565 = vadd.f32 %v3347, %v3564
        %v3566 = vpop.f32.mrf.mxu0
        %3567 = vdwg.mxu0
        %v3569 = vsel %vm1253, %v3312, 0
        %3571 = vmatprep.subr.mxu0 0.0
        %3572 = vmatpush1.msra.mxu0 0.0
        %3573 = vmatprep.subr.mxu0 0.0
        %3574 = vmatpush1.msra.mxu0 0.0
        %3575 = vmatprep.subr.mxu0 0.0
        %3576 = vmatpush1.msra.mxu0 0.0
        %3577 = vmatprep.subr.mxu0 0.0
        %3578 = vmatpush1.msra.mxu0 0.0
        %3579 = vmatprep.subr.mxu0 0.0
        %3580 = vmatpush1.msra.mxu0 0.0
        %3581 = vmatprep.subr.mxu0 0.0
        %3582 = vmatpush1.msra.mxu0 0.0
        %3583 = vmatprep.subr.mxu0 0.0
        %3584 = vmatpush1.msra.mxu0 0.0
        %3585 = vmatprep.subr.mxu0 0.0
        %3586 = vmatpush1.msra.mxu0 0.0
        %3587 = vmatprep.subr.mxu0 0.0
        %3588 = vmatpush1.msra.mxu0 0.0
        %3589 = vmatprep.subr.mxu0 0.0
        %3590 = vmatpush1.msra.mxu0 0.0
        %3591 = vmatprep.subr.mxu0 0.0
        %3592 = vmatpush1.msra.mxu0 0.0
        %3593 = vmatprep.subr.mxu0 0.0
        %3594 = vmatpush1.msra.mxu0 0.0
        %3595 = vmatprep.subr.mxu0 0.0
        %3596 = vmatpush1.msra.mxu0 0.0
        %3597 = vmatprep.subr.mxu0 0.0
        %3598 = vmatpush1.msra.mxu0 0.0
        %3599 = vmatprep.subr.mxu0 0.0
        %3600 = vmatpush1.msra.mxu0 0.0
        %3601 = vmatprep.subr.mxu0 0.0
        %3602 = vmatpush1.msra.mxu0 %v911
        %3603 = vmatprep.subr.mxu0 0.0
        %3604 = vmatpush2.msra.mxu0 0.0
        %3605 = vmatprep.subr.mxu0 0.0
        %3606 = vmatpush2.msra.mxu0 0.0
        %3607 = vmatprep.subr.mxu0 0.0
        %3608 = vmatpush2.msra.mxu0 0.0
        %3609 = vmatprep.subr.mxu0 0.0
        %3610 = vmatpush2.msra.mxu0 0.0
        %3611 = vmatprep.subr.mxu0 0.0
        %3612 = vmatpush2.msra.mxu0 0.0
        %3613 = vmatprep.subr.mxu0 0.0
        %3614 = vmatpush2.msra.mxu0 0.0
        %3615 = vmatprep.subr.mxu0 0.0
        %3616 = vmatpush2.msra.mxu0 0.0
        %3617 = vmatprep.subr.mxu0 0.0
        %3618 = vmatpush2.msra.mxu0 0.0
        %3619 = vmatprep.subr.mxu0 0.0
        %3620 = vmatpush2.msra.mxu0 0.0
        %3621 = vmatprep.subr.mxu0 0.0
        %3622 = vmatpush2.msra.mxu0 0.0
        %3623 = vmatprep.subr.mxu0 0.0
        %3624 = vmatpush2.msra.mxu0 0.0
        %3625 = vmatprep.subr.mxu0 0.0
        %3626 = vmatpush2.msra.mxu0 0.0
        %3627 = vmatprep.subr.mxu0 0.0
        %3628 = vmatpush2.msra.mxu0 0.0
        %3629 = vmatprep.subr.mxu0 0.0
        %3630 = vmatpush2.msra.mxu0 0.0
        %3631 = vmatprep.subr.mxu0 0.0
        %3632 = vmatpush2.msra.mxu0 0.0
        %3633 = vmatprep.subr.mxu0 0.0
        %3634 = vmatpush2.msra.mxu0 0.0
        %3635 = vmatprep.mubr.f32.mxu0 0.0
        %3636 = vmatmul.mubr.f32.gmra.mxu0 %v3569
        %v3637 = vpop.f32.mrf.mxu0
        %v3638 = vadd.f32 %v3348, %v3637
        %v3639 = vpop.f32.mrf.mxu0
        %3640 = vdwg.mxu0
        %v3641 = vmul.f32 %v3419, %v3341
        %v3642 = vmul.f32 %v3492, %v3342
        %v3643 = vmul.f32 %v3565, %v3343
        %v3644 = vmul.f32 %v3638, %v3344
        %v3645 = vmul.f32 %v3641, %v2988
        %v3646 = vmul.f32 %v3642, %v2988
        %v3647 = vmul.f32 %v3643, %v2988
        %v3648 = vmul.f32 %v3644, %v2988
        %v3649 = vadd.f32 %v2980, %v3645
        %v3650 = vadd.f32 %v2981, %v3646
        %v3651 = vadd.f32 %v2982, %v3647
        %v3652 = vadd.f32 %v2983, %v3648
        %v3653 = vpack.c.bf16 %v3650, %v3649
        %v3654 = vpack.c.bf16 %v3652, %v3651
        %v3655 = vld [vmem:[%s11] sm:$0xf]
        %v3656 = vld [vmem:[%s11 + $0x4] sm:$0xf]
        %v3657 = vld [vmem:[%s11 + $0x8] sm:$0xf]
        %v3658 = vld [vmem:[%s11 + $0xc] sm:$0xf]
        %v3659 = vld [vmem:[%s11 + $0x10] sm:$0xf]
        %v3660 = vld [vmem:[%s11 + $0x14] sm:$0xf]
        %v3661 = vld [vmem:[%s11 + $0x18] sm:$0xf]
        %v3662 = vld [vmem:[%s11 + $0x1c] sm:$0xf]
        %v3663 = vld [vmem:[%s11 + $0x20] sm:$0xf]
        %v3664 = vld [vmem:[%s11 + $0x24] sm:$0xf]
        %v3665 = vld [vmem:[%s11 + $0x28] sm:$0xf]
        %v3666 = vld [vmem:[%s11 + $0x2c] sm:$0xf]
        %v3667 = vld [vmem:[%s11 + $0x30] sm:$0xf]
        %v3668 = vld [vmem:[%s11 + $0x34] sm:$0xf]
        %v3669 = vld [vmem:[%s11 + $0x38] sm:$0xf]
        %v3670 = vld [vmem:[%s11 + $0x3c] sm:$0xf]
        %v3671 = vld [vmem:[%s12] sm:$0x1]
        %v3673 = vlaneseq
        %v3674 = vshrl.u32 %v3673, 7
        %v3675 = vsub.s32 0, %v3674
        %v3676 = vrot.slane %v3671, %v3675
        %v3694 = vunpack.c.l.b16 %v3655
        %v3695 = vunpack.c.l.b16 %v3656
        %v3696 = vunpack.c.l.b16 %v3657
        %v3697 = vunpack.c.l.b16 %v3658
        %v3698 = vunpack.c.l.b16 %v3659
        %v3699 = vunpack.c.l.b16 %v3660
        %v3700 = vunpack.c.l.b16 %v3661
        %v3701 = vunpack.c.l.b16 %v3662
        %v3702 = vunpack.c.l.b16 %v3663
        %v3703 = vunpack.c.l.b16 %v3664
        %v3704 = vunpack.c.l.b16 %v3665
        %v3705 = vunpack.c.l.b16 %v3666
        %v3706 = vunpack.c.l.b16 %v3667
        %v3707 = vunpack.c.l.b16 %v3668
        %v3708 = vunpack.c.l.b16 %v3669
        %v3709 = vunpack.c.l.b16 %v3670
        %v3710 = vpack.c.b16 %v3695, %v3694
        %v3711 = vpack.c.b16 %v3697, %v3696
        %v3712 = vpack.c.b16 %v3699, %v3698
        %v3713 = vpack.c.b16 %v3701, %v3700
        %v3714 = vpack.c.b16 %v3703, %v3702
        %v3715 = vpack.c.b16 %v3705, %v3704
        %v3716 = vpack.c.b16 %v3707, %v3706
        %v3717 = vpack.c.b16 %v3709, %v3708
        %3726 = vmatprep.subr.bf16.mxu0 0
        %3727 = vmatpush1.bf16.msra.mxu0 %v3717
        %3728 = vmatprep.subr.bf16.mxu0 0
        %3729 = vmatpush1.bf16.msra.mxu0 %v3716
        %3730 = vmatprep.subr.bf16.mxu0 0
        %3731 = vmatpush1.bf16.msra.mxu0 %v3715
        %3732 = vmatprep.subr.bf16.mxu0 0
        %3733 = vmatpush1.bf16.msra.mxu0 %v3714
        %3734 = vmatprep.subr.bf16.mxu0 0
        %3735 = vmatpush1.bf16.msra.mxu0 %v3713
        %3736 = vmatprep.subr.bf16.mxu0 0
        %3737 = vmatpush1.bf16.msra.mxu0 %v3712
        %3738 = vmatprep.subr.bf16.mxu0 0
        %3739 = vmatpush1.bf16.msra.mxu0 %v3711
        %3740 = vmatprep.subr.bf16.mxu0 0
        %3741 = vmatpush1.bf16.msra.mxu0 %v3710
        %3742 = vmatprep.subr.bf16.mxu0 0
        %3743 = vmatpush2.bf16.msra.mxu0 0
        %3744 = vmatprep.subr.bf16.mxu0 0
        %3745 = vmatpush2.bf16.msra.mxu0 0
        %3746 = vmatprep.subr.bf16.mxu0 0
        %3747 = vmatpush2.bf16.msra.mxu0 0
        %3748 = vmatprep.subr.bf16.mxu0 0
        %3749 = vmatpush2.bf16.msra.mxu0 0
        %3750 = vmatprep.subr.bf16.mxu0 0
        %3751 = vmatpush2.bf16.msra.mxu0 0
        %3752 = vmatprep.subr.bf16.mxu0 0
        %3753 = vmatpush2.bf16.msra.mxu0 0
        %3754 = vmatprep.subr.bf16.mxu0 0
        %3755 = vmatpush2.bf16.msra.mxu0 0
        %3756 = vmatprep.subr.bf16.mxu0 0
        %3757 = vmatpush2.bf16.msra.mxu0 0
        %3758 = vmatprep.mubr.bf16.mxu0 0
        %3759 = vmatmul.mubr.bf16.gmra.mxu0 %v3653
        %v3760 = vpop.f32.mrf.mxu0
        %v3761 = vadd.f32 %v3676, %v3760
        %v3762 = vpop.f32.mrf.mxu0
        %v3763 = vpop.f32.mrf.mxu0
        %v3764 = vadd.f32 %v3676, %v3763
        %v3765 = vpop.f32.mrf.mxu0
        %3766 = vmatprep.mubr.bf16.mxu0 0
        %3767 = vmatmul.mubr.bf16.gmra.mxu0 %v3654
        %v3768 = vpop.f32.mrf.mxu0
        %v3769 = vadd.f32 %v3676, %v3768
        %v3770 = vpop.f32.mrf.mxu0
        %v3771 = vpop.f32.mrf.mxu0
        %v3772 = vadd.f32 %v3676, %v3771
        %v3773 = vpop.f32.mrf.mxu0
        %3774 = vdwg.mxu0
        %v3775 = vadd.f32 %v481, %v3761
        %v3776 = vadd.f32 %v482, %v3764
        %v3777 = vadd.f32 %v483, %v3769
        %v3778 = vadd.f32 %v484, %v3772
        %3779 = vst [vmem:[%s462] sm:$0xff] %v3775
        %3780 = vst [vmem:[%s462 + $0x8] sm:$0xff] %v3776
        %3781 = vst [vmem:[%s462 + $0x10] sm:$0xff] %v3777
        %3782 = vst [vmem:[%s462 + $0x18] sm:$0xff] %v3778
        %s3783 = sand.u32 %s323, 1
        %s3784 = scalar_lea.sflag [#allocation3], %s3783
        %s3785 = sand.u32 %s323, 1
        %s3786 = smul.addr %s3785, 32
        %s3787 = scalar_lea.vmem [#allocation2], %s3786
        // Predicated region
        $region73: #{flash_attention_latent_injection.1} parent=71 // pred_check
          %p3788 = pneg %p333
        $region74: #{flash_attention_latent_injection.1} parent=71 // pred_check_branch
          %3790 = sbr.rel (%p3788) target = $region76
        $region75: #{flash_attention_latent_injection.1} parent=71 // pred_region
          %s3791 = smul.u32 4, %s27
          %s3793 = ssub.s32 512, 512
          %3794 = vsyncadd %s3784, %s3793
          %s3795 = smul.addr %s3791, 128
          %s3796 = scalar_lea.hbm %s13, %s3795
          %s3797 = sshll.u32 %s3787, 4
          %s3798 = int_to_ptr.vmem [resolvable:$true] %s3797
          %3803 = dma.vmem_to_hbm [thread:$0]  %s3798, 512, %s3796, %s3784, 128, 128, 8
        $region76: #{flash_attention_latent_injection.1} parent=71 // pred_fallthru
          _
      $region72: #{flash_attention_latent_injection.1} parent=5 // pred_fallthru
        _
      %p3804 = scmp.le.s32.totalorder 2, %s22
      // Predicated region
      $region77: #{flash_attention_latent_injection.1} parent=5 // pred_check
        %p3805 = pneg %p3804
      $region78: #{flash_attention_latent_injection.1} parent=5 // pred_check_branch
        %3807 = sbr.rel (%p3805) target = $region80
      $region79: #{flash_attention_latent_injection.1} parent=5 // pred_region
        %s3808 = ssub.s32 %s22, 2
        // Predicated region
        $region81: #{flash_attention_latent_injection.1} parent=79 // pred_check
          %p3809 = pneg %p339
        $region82: #{flash_attention_latent_injection.1} parent=79 // pred_check_branch
          %3811 = sbr.rel (%p3809) target = $region84
        $region83: #{flash_attention_latent_injection.1} parent=79 // pred_region
          %s3812 = sand.u32 %s324, 1
          %s3813 = scalar_lea.sflag [#allocation3], %s3812
          %s3814 = sand.u32 %s324, 1
          %s3815 = smul.addr %s3814, 32
          %s3816 = scalar_lea.vmem [#allocation2], %s3815
          %3817 = dma.done %s3813, 512
        $region84: #{flash_attention_latent_injection.1} parent=79 // pred_fallthru
          _
      $region80: #{flash_attention_latent_injection.1} parent=5 // pred_fallthru
        _
    $region6: #{flash_attention_latent_injection.1} parent=1 // loop_footer
      %s26 = sadd.s32 1, %s22
    $region7: #{flash_attention_latent_injection.1} parent=1 // loop_footer_branch
      %21 = sbr.rel target = $region3
    $region8: #{flash_attention_latent_injection.1} parent=1 // loop_exit
      _
    %3818 = vsyncpa [#allocation3], 1
    %s3819 = scalar_lea.sflag [#allocation3], 1
    %3820 = vsyncpa %s3819, 1

</llo_original>
